<compile_context>
chip_gen: v7x
topology: tpu7x:2x2x1
jax: 0.10.0
libtpu: 0.0.40
codegen_flags: <defaults>
</compile_context>

<pallas_src>
import functools

import jax
import jax.numpy as jnp
from jax import lax
from jax.experimental import pallas as pl
from jax.experimental.pallas import tpu as pltpu

LEAKY_SLOPE = 0.3
BN_EPS = 1e-5


# ----------------------------------------------------------------------------
# Static layout helpers (shared by init_params, wrapper and kernel)
# ----------------------------------------------------------------------------
def _conv_offsets(K):
    pad = (K - 1) // 2
    return [d for d in range(-pad, pad + 1) if d != 0]


def _round_up(n, m):
    return -(-n // m) * m


def _vec_layout(c1, c2, depth):
    """Packed (C,1) column slab: conv biases, BN gammas, BN betas."""
    entries = []
    for i in (1, 2):
        entries += [(f's1c{i}_b', c1), (f's1bn{i}_g', c1), (f's1bn{i}_b', c1)]
    for i in (1, 2):
        entries += [(f's2c{i}_b', c2), (f's2bn{i}_g', c2), (f's2bn{i}_b', c2)]
    for n in ('b1_skipbn', 'b1_bn1', 'b1_bn2', 'b2_bn1', 'b2_bn2'):
        entries += [(f'{n}_g', depth), (f'{n}_b', depth)]
    table, off = {}, 0
    for name, c in entries:
        table[name] = (off, c)
        off += c
    return table, off


def _dw_layout(c2, depth):
    """Packed depthwise slab (K, total, 1)."""
    entries = [('b1_s1_dw', c2), ('b1_s2_dw', depth),
               ('b2_s1_dw', depth), ('b2_s2_dw', depth)]
    table, off = {}, 0
    for name, c in entries:
        table[name] = (off, c)
        off += c
    return table, off


def _pw_layout(c2, depth, align=128):
    """Packed pointwise / skip slab (depth, total_cols), 128-lane aligned segments."""
    entries = [('b1_skip_w', c2), ('b1_s1_pw', c2), ('b1_s2_pw', depth),
               ('b2_s1_pw', depth), ('b2_s2_pw', depth)]
    table, off = {}, 0
    for name, c in entries:
        table[name] = (off, c)
        off += _round_up(c, align)
    return table, off


def _boundary_masks(B, L, K):
    """Row i <-> offset _conv_offsets(K)[i]; 1.0 where a rolled read stays inside the
    batch slab of the packed (C, B*L) layout, 0.0 where it would cross (== zero pad)."""
    offs = _conv_offsets(K)
    q = jnp.arange(B * L, dtype=jnp.int32) % L        # position within slab
    rows = []
    for d in offs:
        ok = (q < L - d) if d > 0 else (q >= -d)
        rows.append(ok.astype(jnp.float32))
    if not rows:                                       # K == 1
        rows = [jnp.ones((B * L,), jnp.float32)]
    return jnp.stack(rows, axis=0)                     # (max(K-1,1), B*L)


def _padded_bytes(rows, cols, itemsize=4):
    return _round_up(max(rows, 1), 8) * _round_up(max(cols, 1), 128) * itemsize


def _vmem_limit_bytes(B, L, c1, c2, depth, K):
    """Rough, padding-aware VMEM budget, clamped to leave headroom on v7x (64 MiB)."""
    BL, BL2 = B * L, B * (L // 2)
    est = 0
    est += 4 * _padded_bytes(max(c1, 8), BL)            # stem_1 live activations / taps
    est += 2 * _padded_bytes(K * c1, BL)                 # stacked tap slab (stem_1)
    est += 2 * _padded_bytes(BL, c1)                     # pool scratch
    est += 8 * _padded_bytes(depth, BL2)                 # stem_2 / block live activations
    est += 2 * _padded_bytes(K * max(c2, depth), BL2)    # stacked tap slab (half res)
    est += 4 * 1024 * 1024                               # packed params, masks, spills
    return int(min(max(2 * est, 16 * 1024 * 1024), 56 * 1024 * 1024))


def _leaky(x):
    return jnp.where(x >= 0, x, LEAKY_SLOPE * x)


# ----------------------------------------------------------------------------
# The single fused kernel
# ----------------------------------------------------------------------------
def _xception_kernel(x_ref, mf_ref, mh_ref,
                     s1c1_ref, s1c2_ref, s2c1_ref, s2c2_ref,
                     dw_ref, pw_ref, vec_ref,
                     o_ref, pool_ref, *,
                     B, L, K, dims, vec_off, dw_off, pw_off):
    cin0, c1, c2, depth = dims
    pad = (K - 1) // 2
    L2 = L // 2
    BL, BL2 = B * L, B * L2
    offs = _conv_offsets(K)

    # ---- packed parameter slabs (loaded once, sliced with static offsets) ----
    vec = vec_ref[...]                      # (vec_total, 1) f32
    dw_all = dw_ref[...]                    # (K, dw_total, 1) f32
    pw_all = pw_ref[...]                    # (depth, pw_total) bf16

    def v(name):
        off, c = vec_off[name]
        return vec[off:off + c, :]

    def dwp(name):
        off, c = dw_off[name]
        return dw_all[:, off:off + c, :]    # (K, Cin, 1)

    def pwp(name):
        off, c = pw_off[name]
        return pw_all[:, off:off + c]       # (depth, Cin) bf16

    mf = mf_ref[...]                        # (max(K-1,1), BL) f32
    mh = mh_ref[...]                        # (max(K-1,1), BL2) f32
    masks_f = {d: mf[i:i + 1, :] for i, d in enumerate(offs)}
    masks_h = {d: mh[i:i + 1, :] for i, d in enumerate(offs)}

    # ---- building blocks (all on packed (C, lanes) f32 values) ----
    def shifted(x, d, masks):
        n = x.shape[1]
        # xs[:, j] = x[:, j + d] inside the batch slab, else 0 (== zero padding).
        return pltpu.roll(x, (-d) % n, 1) * masks[d]

    def conv_same(x, w_bf, bias, masks):
        """Conv1d, stride 1, 'same', with bias; taps fused into one MXU contraction.
        x: (Cin, N); w_bf: (Cout, K*Cin) bf16; bias: (Cout, 1)."""
        taps = [x if (t - pad) == 0 else shifted(x, t - pad, masks) for t in range(K)]
        xk = taps[0] if K == 1 else jnp.concatenate(taps, axis=0)        # (K*Cin, N)
        y = jnp.dot(w_bf, xk.astype(jnp.bfloat16),
                    preferred_element_type=jnp.float32)
        return y + bias

    def sep_conv(x, dw_k, pw_m, masks):
        """SeparableConv1dACT: depthwise (K, groups=Cin) + pointwise 1x1, no bias.
        dw_k: (K, Cin, 1) f32; pw_m: (Cout, Cin) bf16."""
        acc = None
        for t in range(K):
            d = t - pad
            xs = x if d == 0 else shifted(x, d, masks)
            term = dw_k[t] * xs                                          # (Cin, N)
            acc = term if acc is None else acc + term
        return jnp.dot(pw_m, acc.astype(jnp.bfloat16),
                       preferred_element_type=jnp.float32)

    def batchnorm(x, g, b, count, act):
        """Training-mode BatchNorm1d (biased variance), single-pass stats in f32."""
        inv_n = 1.0 / count
        s1 = jnp.sum(x, axis=1, keepdims=True)
        s2 = jnp.sum(x * x, axis=1, keepdims=True)
        mean = s1 * inv_n
        var = jnp.maximum(s2 * inv_n - mean * mean, 0.0)
        y = (x - mean) * lax.rsqrt(var + BN_EPS) * g + b
        return _leaky(y) if act else y

    cnt1 = float(BL)
    cnt2 = float(BL2)

    # ---- stem_1 on the full-resolution packed layout (cin0 -> c1, lanes = B*L) ----
    h = x_ref[...].astype(jnp.float32)
    h = conv_same(h, s1c1_ref[...], v('s1c1_b'), masks_f)
    h = batchnorm(h, v('s1bn1_g'), v('s1bn1_b'), cnt1, True)
    h = conv_same(h, s1c2_ref[...], v('s1c2_b'), masks_f)
    h = batchnorm(h, v('s1bn2_g'), v('s1bn2_b'), cnt1, True)

    # ---- MaxPool1d(2): pairwise max via roll, stride-2 downselect via a
    #      sublane-strided read of a transposed VMEM scratch ----
    m = jnp.maximum(h, pltpu.roll(h, BL - 1, 1))          # m[:, j] = max(x[j], x[j+1])
    pool_ref[...] = m.T                                    # (BL, c1) scratch
    h = pool_ref[pl.ds(0, BL2, stride=2), :].T             # even lanes -> (c1, BL2)

    # ---- stem_2 on the pooled layout (c1 -> c2, lanes = B*L/2) ----
    h = conv_same(h, s2c1_ref[...], v('s2c1_b'), masks_h)
    h = batchnorm(h, v('s2bn1_g'), v('s2bn1_b'), cnt2, True)
    h = conv_same(h, s2c2_ref[...], v('s2c2_b'), masks_h)
    h = batchnorm(h, v('s2bn2_g'), v('s2bn2_b'), cnt2, True)

    # ---- block1: rep = [Sep(c2->depth), BN, act, Sep, BN]; skip = BN(1x1 conv) ----
    inp = h
    skip = jnp.dot(pwp('b1_skip_w'), inp.astype(jnp.bfloat16),
                   preferred_element_type=jnp.float32)
    skip = batchnorm(skip, v('b1_skipbn_g'), v('b1_skipbn_b'), cnt2, False)
    r = sep_conv(inp, dwp('b1_s1_dw'), pwp('b1_s1_pw'), masks_h)
    r = batchnorm(r, v('b1_bn1_g'), v('b1_bn1_b'), cnt2, True)
    r = sep_conv(r, dwp('b1_s2_dw'), pwp('b1_s2_pw'), masks_h)
    r = batchnorm(r, v('b1_bn2_g'), v('b1_bn2_b'), cnt2, False)
    h = r + skip

    # ---- block2: rep = [act, Sep, BN, act, Sep, BN]; identity skip ----
    inp = h
    r = sep_conv(_leaky(inp), dwp('b2_s1_dw'), pwp('b2_s1_pw'), masks_h)
    r = batchnorm(r, v('b2_bn1_g'), v('b2_bn1_b'), cnt2, True)
    r = sep_conv(r, dwp('b2_s2_dw'), pwp('b2_s2_pw'), masks_h)
    r = batchnorm(r, v('b2_bn2_g'), v('b2_bn2_b'), cnt2, False)
    h = r + inp

    o_ref[...] = h.astype(o_ref.dtype)


# ----------------------------------------------------------------------------
# Wrapper (pure layout plumbing)
# ----------------------------------------------------------------------------
def xception_forward(params, x):
    """x: (B, Cin, L) float32 -> (B, depth, L//2), matching Xception.forward defaults."""
    B, cin0, L = x.shape
    assert L % 2 == 0, "wavenumber must be even for MaxPool1d(2)"
    K = params['dw'].shape[0]
    c1 = params['s1c1_w'].shape[0]
    assert params['s1c1_w'].shape[1] == K * cin0, "input channels mismatch"
    c2 = params['s2c1_w'].shape[0]
    depth = params['pw'].shape[0]
    L2 = L // 2
    BL, BL2 = B * L, B * L2

    vec_off, _ = _vec_layout(c1, c2, depth)
    dw_off, _ = _dw_layout(c2, depth)
    pw_off, _ = _pw_layout(c2, depth)

    # Fold batch into the lane axis: (Cin, B*L); batch-boundary masks for the conv taps.
    x_packed = jnp.transpose(x, (1, 0, 2)).reshape(cin0, BL)
    mf = _boundary_masks(B, L, K)      # full resolution
    mh = _boundary_masks(B, L2, K)     # after MaxPool1d(2)

    kernel = functools.partial(
        _xception_kernel, B=B, L=L, K=K, dims=(cin0, c1, c2, depth),
        vec_off=vec_off, dw_off=dw_off, pw_off=pw_off)

    out = pl.pallas_call(
        kernel,
        out_shape=jax.ShapeDtypeStruct((depth, BL2), jnp.float32),
        scratch_shapes=[pltpu.VMEM((BL, c1), jnp.float32)],   # maxpool transpose buffer
        compiler_params=pltpu.CompilerParams(
            vmem_limit_bytes=_vmem_limit_bytes(B, L, c1, c2, depth, K)),
    )(x_packed, mf, mh,
      params['s1c1_w'], params['s1c2_w'], params['s2c1_w'], params['s2c2_w'],
      params['dw'], params['pw'], params['vec'])

    # Back to NCL layout.
    return jnp.transpose(out.reshape(depth, B, L2), (1, 0, 2))


# ----------------------------------------------------------------------------
# Parameter init (pre-packed / pre-laid-out for the kernel)
# ----------------------------------------------------------------------------
def init_params(key, *, stem_kernel=3, data_input_channel=1, stem_max_dim=32, depth=64):
    """Deterministic init (conv ~ N(0, 0.05), biases 0, BN gamma=1 beta=0).
    Stem conv weights are stored as bf16 (Cout, K*Cin) [from PyTorch (Cout,Cin,K):
    w.transpose(0,2,1).reshape(Cout, K*Cin)], depthwise weights in one (K, total, 1) f32
    slab, pointwise/skip matrices in one 128-aligned (depth, total) bf16 slab, and all
    (C,1) bias / gamma / beta columns in one (total, 1) f32 slab."""
    if stem_max_dim in (64, 128):
        c1, c2 = 32, 64
    elif stem_max_dim == 32:
        c1, c2 = 16, 32
    else:
        raise ValueError("stem_max_dim must be 32, 64 or 128")
    K = stem_kernel
    assert K % 2 == 1, "stem_kernel must be odd for 'same'-length convolutions"
    cin0 = data_input_channel
    keys = iter(jax.random.split(key, 16))

    def conv_w(k, cout, cin):
        w = 0.05 * jax.random.normal(k, (cout, K, cin), dtype=jnp.float32)
        return w.reshape(cout, K * cin).astype(jnp.bfloat16)

    p = {}
    # stem convs (with bias -> bias lives in the vec slab)
    p['s1c1_w'] = conv_w(next(keys), c1, cin0)
    p['s1c2_w'] = conv_w(next(keys), c1, c1)
    p['s2c1_w'] = conv_w(next(keys), c2, c1)
    p['s2c2_w'] = conv_w(next(keys), c2, c2)

    # (C,1) columns: biases 0, BN gamma 1, BN beta 0
    vec_off, vec_total = _vec_layout(c1, c2, depth)
    vec = jnp.zeros((vec_total, 1), jnp.float32)
    for name, (off, c) in vec_off.items():
        if name.endswith('_g'):
            vec = vec.at[off:off + c, :].set(1.0)
    p['vec'] = vec

    # depthwise weights (K, total, 1)
    dw_off, dw_total = _dw_layout(c2, depth)
    dw = jnp.zeros((K, dw_total, 1), jnp.float32)
    for name, (off, c) in dw_off.items():
        dw = dw.at[:, off:off + c, :].set(
            0.05 * jax.random.normal(next(keys), (K, c, 1), dtype=jnp.float32))
    p['dw'] = dw

    # pointwise / skip matrices (depth, total), 128-aligned segments
    pw_off, pw_total = _pw_layout(c2, depth)
    pw = jnp.zeros((depth, pw_total), jnp.float32)
    for name, (off, c) in pw_off.items():
        pw = pw.at[:, off:off + c].set(
            0.05 * jax.random.normal(next(keys), (depth, c), dtype=jnp.float32))
    p['pw'] = pw.astype(jnp.bfloat16)
    return p


if __name__ == "__main__":
    key = jax.random.PRNGKey(0)
    pkey, xkey = jax.random.split(key)

    # Small but structurally faithful, lane-dense config: B*L = 256, B*L/2 = 128.
    B, data_input_channel, wavenumber = 2, 1, 128
    stem_kernel, stem_max_dim, depth = 3, 32, 64

    params = init_params(pkey, stem_kernel=stem_kernel,
                         data_input_channel=data_input_channel,
                         stem_max_dim=stem_max_dim, depth=depth)
    x = jax.random.normal(xkey, (B, data_input_channel, wavenumber), dtype=jnp.float32)

    fwd = jax.jit(xception_forward)
    out = jax.block_until_ready(fwd(params, x))

    assert out.shape == (B, depth, wavenumber // 2), out.shape
    assert bool(jnp.all(jnp.isfinite(out)))
    print("KERNEL_OK")
</pallas_src>

<mosaic_0001>
module attributes {stable_mosaic.version = 11 : i64} {
  func.func @_xception_kernel(%arg0: memref<1x256xf32, #tpu.memory_space<vmem>>, %arg1: memref<2x256xf32, #tpu.memory_space<vmem>>, %arg2: memref<2x128xf32, #tpu.memory_space<vmem>>, %arg3: memref<16x3xbf16, #tpu.memory_space<vmem>>, %arg4: memref<16x48xbf16, #tpu.memory_space<vmem>>, %arg5: memref<32x48xbf16, #tpu.memory_space<vmem>>, %arg6: memref<32x96xbf16, #tpu.memory_space<vmem>>, %arg7: memref<3x224x1xf32, #tpu.memory_space<vmem>>, %arg8: memref<64x640xbf16, #tpu.memory_space<vmem>>, %arg9: memref<928x1xf32, #tpu.memory_space<vmem>>, %arg10: memref<64x128xf32, #tpu.memory_space<vmem>>, %arg11: memref<256x16xf32, #tpu.memory_space<vmem>>) attributes {dimension_semantics = [], scalar_prefetch = 0 : i64, scratch_operands = 1 : i64, tpu.core_type = #tpu.core_type<tc>} {
    %c0 = arith.constant 0 : index
    %c0_0 = arith.constant 0 : index
    %0 = vector.load %arg9[%c0, %c0_0] : memref<928x1xf32, #tpu.memory_space<vmem>>, vector<928x1xf32>
    %c0_1 = arith.constant 0 : index
    %c0_2 = arith.constant 0 : index
    %c0_3 = arith.constant 0 : index
    %1 = vector.load %arg7[%c0_1, %c0_2, %c0_3] : memref<3x224x1xf32, #tpu.memory_space<vmem>>, vector<3x224x1xf32>
    %c0_4 = arith.constant 0 : index
    %c0_5 = arith.constant 0 : index
    %2 = vector.load %arg8[%c0_4, %c0_5] : memref<64x640xbf16, #tpu.memory_space<vmem>>, vector<64x640xbf16>
    %c0_6 = arith.constant 0 : index
    %c0_7 = arith.constant 0 : index
    %3 = vector.load %arg1[%c0_6, %c0_7] : memref<2x256xf32, #tpu.memory_space<vmem>>, vector<2x256xf32>
    %c0_8 = arith.constant 0 : index
    %c0_9 = arith.constant 0 : index
    %4 = vector.load %arg2[%c0_8, %c0_9] : memref<2x128xf32, #tpu.memory_space<vmem>>, vector<2x128xf32>
    %5 = vector.extract_strided_slice %3 {offsets = [0, 0], sizes = [1, 256], strides = [1, 1]} : vector<2x256xf32> to vector<1x256xf32>
    %6 = vector.extract_strided_slice %3 {offsets = [1, 0], sizes = [1, 256], strides = [1, 1]} : vector<2x256xf32> to vector<1x256xf32>
    %7 = vector.extract_strided_slice %4 {offsets = [0, 0], sizes = [1, 128], strides = [1, 1]} : vector<2x128xf32> to vector<1x128xf32>
    %8 = vector.extract_strided_slice %4 {offsets = [1, 0], sizes = [1, 128], strides = [1, 1]} : vector<2x128xf32> to vector<1x128xf32>
    %c0_10 = arith.constant 0 : index
    %c0_11 = arith.constant 0 : index
    %9 = vector.load %arg0[%c0_10, %c0_11] : memref<1x256xf32, #tpu.memory_space<vmem>>, vector<1x256xf32>
    %c0_12 = arith.constant 0 : index
    %c0_13 = arith.constant 0 : index
    %10 = vector.load %arg3[%c0_12, %c0_13] : memref<16x3xbf16, #tpu.memory_space<vmem>>, vector<16x3xbf16>
    %11 = vector.extract_strided_slice %0 {offsets = [0, 0], sizes = [16, 1], strides = [1, 1]} : vector<928x1xf32> to vector<16x1xf32>
    %c1_i32 = arith.constant 1 : i32
    %12 = tpu.dynamic_rotate %9 by %c1_i32 dim 1 : vector<1x256xf32>, i32 -> vector<1x256xf32>
    %13 = arith.mulf %12, %5 : vector<1x256xf32>
    %c255_i32 = arith.constant 255 : i32
    %14 = tpu.dynamic_rotate %9 by %c255_i32 dim 1 : vector<1x256xf32>, i32 -> vector<1x256xf32>
    %15 = arith.mulf %14, %6 : vector<1x256xf32>
    %16 = tpu.concatenate %13, %9, %15 in 0 : vector<1x256xf32>, vector<1x256xf32>, vector<1x256xf32> -> vector<3x256xf32>
    %17 = arith.truncf %16 : vector<3x256xf32> to vector<3x256xbf16>
    %cst = arith.constant dense<0.000000e+00> : vector<16x256xf32>
    %18 = tpu.matmul %10, %17, %cst {dimension_numbers = #tpu.dot_dimension_numbers<[1], [0], [0], [1], [0, 0, 1, 1], [], []>} : vector<16x3xbf16>, vector<3x256xbf16>, vector<16x256xf32> -> vector<16x256xf32>
    %19 = vector.broadcast %11 : vector<16x1xf32> to vector<16x256xf32>
    %20 = arith.addf %18, %19 : vector<16x256xf32>
    %21 = vector.extract_strided_slice %0 {offsets = [16, 0], sizes = [16, 1], strides = [1, 1]} : vector<928x1xf32> to vector<16x1xf32>
    %22 = vector.extract_strided_slice %0 {offsets = [32, 0], sizes = [16, 1], strides = [1, 1]} : vector<928x1xf32> to vector<16x1xf32>
    %cst_14 = arith.constant dense<0.000000e+00> : vector<16xf32>
    %23 = vector.multi_reduction <add>, %20, %cst_14 [1] : vector<16x256xf32> to vector<16xf32>
    %24 = vector.shape_cast %23 : vector<16xf32> to vector<16x1xf32>
    %25 = arith.mulf %20, %20 : vector<16x256xf32>
    %cst_15 = arith.constant dense<0.000000e+00> : vector<16xf32>
    %26 = vector.multi_reduction <add>, %25, %cst_15 [1] : vector<16x256xf32> to vector<16xf32>
    %27 = vector.shape_cast %26 : vector<16xf32> to vector<16x1xf32>
    %cst_16 = arith.constant 3.906250e-03 : f32
    %28 = vector.broadcast %cst_16 : f32 to vector<16x1xf32>
    %29 = arith.mulf %24, %28 : vector<16x1xf32>
    %cst_17 = arith.constant 3.906250e-03 : f32
    %30 = vector.broadcast %cst_17 : f32 to vector<16x1xf32>
    %31 = arith.mulf %27, %30 : vector<16x1xf32>
    %32 = arith.mulf %29, %29 : vector<16x1xf32>
    %33 = arith.subf %31, %32 : vector<16x1xf32>
    %cst_18 = arith.constant 0.000000e+00 : f32
    %34 = vector.broadcast %cst_18 : f32 to vector<16x1xf32>
    %35 = arith.maximumf %33, %34 : vector<16x1xf32>
    %36 = vector.broadcast %29 : vector<16x1xf32> to vector<16x256xf32>
    %37 = arith.subf %20, %36 : vector<16x256xf32>
    %cst_19 = arith.constant 9.99999974E-6 : f32
    %38 = vector.broadcast %cst_19 : f32 to vector<16x1xf32>
    %39 = arith.addf %35, %38 : vector<16x1xf32>
    %40 = math.rsqrt %39 : vector<16x1xf32>
    %41 = vector.broadcast %40 : vector<16x1xf32> to vector<16x256xf32>
    %42 = arith.mulf %37, %41 : vector<16x256xf32>
    %43 = vector.broadcast %21 : vector<16x1xf32> to vector<16x256xf32>
    %44 = arith.mulf %42, %43 : vector<16x256xf32>
    %45 = vector.broadcast %22 : vector<16x1xf32> to vector<16x256xf32>
    %46 = arith.addf %44, %45 : vector<16x256xf32>
    %cst_20 = arith.constant 0.000000e+00 : f32
    %47 = vector.broadcast %cst_20 : f32 to vector<16x256xf32>
    %48 = arith.cmpf oge, %46, %47 : vector<16x256xf32>
    %cst_21 = arith.constant 3.000000e-01 : f32
    %49 = vector.broadcast %cst_21 : f32 to vector<16x256xf32>
    %50 = arith.mulf %49, %46 : vector<16x256xf32>
    %51 = arith.select %48, %46, %50 : vector<16x256xi1>, vector<16x256xf32>
    %c0_22 = arith.constant 0 : index
    %c0_23 = arith.constant 0 : index
    %52 = vector.load %arg4[%c0_22, %c0_23] : memref<16x48xbf16, #tpu.memory_space<vmem>>, vector<16x48xbf16>
    %53 = vector.extract_strided_slice %0 {offsets = [48, 0], sizes = [16, 1], strides = [1, 1]} : vector<928x1xf32> to vector<16x1xf32>
    %c1_i32_24 = arith.constant 1 : i32
    %54 = tpu.dynamic_rotate %51 by %c1_i32_24 dim 1 : vector<16x256xf32>, i32 -> vector<16x256xf32>
    %55 = vector.broadcast %5 : vector<1x256xf32> to vector<16x256xf32>
    %56 = arith.mulf %54, %55 : vector<16x256xf32>
    %c255_i32_25 = arith.constant 255 : i32
    %57 = tpu.dynamic_rotate %51 by %c255_i32_25 dim 1 : vector<16x256xf32>, i32 -> vector<16x256xf32>
    %58 = vector.broadcast %6 : vector<1x256xf32> to vector<16x256xf32>
    %59 = arith.mulf %57, %58 : vector<16x256xf32>
    %60 = tpu.concatenate %56, %51, %59 in 0 : vector<16x256xf32>, vector<16x256xf32>, vector<16x256xf32> -> vector<48x256xf32>
    %61 = arith.truncf %60 : vector<48x256xf32> to vector<48x256xbf16>
    %cst_26 = arith.constant dense<0.000000e+00> : vector<16x256xf32>
    %62 = tpu.matmul %52, %61, %cst_26 {dimension_numbers = #tpu.dot_dimension_numbers<[1], [0], [0], [1], [0, 0, 1, 1], [], []>} : vector<16x48xbf16>, vector<48x256xbf16>, vector<16x256xf32> -> vector<16x256xf32>
    %63 = vector.broadcast %53 : vector<16x1xf32> to vector<16x256xf32>
    %64 = arith.addf %62, %63 : vector<16x256xf32>
    %65 = vector.extract_strided_slice %0 {offsets = [64, 0], sizes = [16, 1], strides = [1, 1]} : vector<928x1xf32> to vector<16x1xf32>
    %66 = vector.extract_strided_slice %0 {offsets = [80, 0], sizes = [16, 1], strides = [1, 1]} : vector<928x1xf32> to vector<16x1xf32>
    %cst_27 = arith.constant dense<0.000000e+00> : vector<16xf32>
    %67 = vector.multi_reduction <add>, %64, %cst_27 [1] : vector<16x256xf32> to vector<16xf32>
    %68 = vector.shape_cast %67 : vector<16xf32> to vector<16x1xf32>
    %69 = arith.mulf %64, %64 : vector<16x256xf32>
    %cst_28 = arith.constant dense<0.000000e+00> : vector<16xf32>
    %70 = vector.multi_reduction <add>, %69, %cst_28 [1] : vector<16x256xf32> to vector<16xf32>
    %71 = vector.shape_cast %70 : vector<16xf32> to vector<16x1xf32>
    %cst_29 = arith.constant 3.906250e-03 : f32
    %72 = vector.broadcast %cst_29 : f32 to vector<16x1xf32>
    %73 = arith.mulf %68, %72 : vector<16x1xf32>
    %cst_30 = arith.constant 3.906250e-03 : f32
    %74 = vector.broadcast %cst_30 : f32 to vector<16x1xf32>
    %75 = arith.mulf %71, %74 : vector<16x1xf32>
    %76 = arith.mulf %73, %73 : vector<16x1xf32>
    %77 = arith.subf %75, %76 : vector<16x1xf32>
    %cst_31 = arith.constant 0.000000e+00 : f32
    %78 = vector.broadcast %cst_31 : f32 to vector<16x1xf32>
    %79 = arith.maximumf %77, %78 : vector<16x1xf32>
    %80 = vector.broadcast %73 : vector<16x1xf32> to vector<16x256xf32>
    %81 = arith.subf %64, %80 : vector<16x256xf32>
    %cst_32 = arith.constant 9.99999974E-6 : f32
    %82 = vector.broadcast %cst_32 : f32 to vector<16x1xf32>
    %83 = arith.addf %79, %82 : vector<16x1xf32>
    %84 = math.rsqrt %83 : vector<16x1xf32>
    %85 = vector.broadcast %84 : vector<16x1xf32> to vector<16x256xf32>
    %86 = arith.mulf %81, %85 : vector<16x256xf32>
    %87 = vector.broadcast %65 : vector<16x1xf32> to vector<16x256xf32>
    %88 = arith.mulf %86, %87 : vector<16x256xf32>
    %89 = vector.broadcast %66 : vector<16x1xf32> to vector<16x256xf32>
    %90 = arith.addf %88, %89 : vector<16x256xf32>
    %cst_33 = arith.constant 0.000000e+00 : f32
    %91 = vector.broadcast %cst_33 : f32 to vector<16x256xf32>
    %92 = arith.cmpf oge, %90, %91 : vector<16x256xf32>
    %cst_34 = arith.constant 3.000000e-01 : f32
    %93 = vector.broadcast %cst_34 : f32 to vector<16x256xf32>
    %94 = arith.mulf %93, %90 : vector<16x256xf32>
    %95 = arith.select %92, %90, %94 : vector<16x256xi1>, vector<16x256xf32>
    %c255_i32_35 = arith.constant 255 : i32
    %96 = tpu.dynamic_rotate %95 by %c255_i32_35 dim 1 : vector<16x256xf32>, i32 -> vector<16x256xf32>
    %97 = arith.maximumf %95, %96 : vector<16x256xf32>
    %98 = tpu.transpose %97, [1, 0] : vector<16x256xf32> -> vector<256x16xf32>
    %c0_36 = arith.constant 0 : index
    %c0_37 = arith.constant 0 : index
    %99 = vector.load %arg11[%c0_36, %c0_37] : memref<256x16xf32, #tpu.memory_space<vmem>>, vector<256x16xf32>
    tpu.vector_store %arg11[%c0_36, %c0_37], %98 {strides = array<i32>} : memref<256x16xf32, #tpu.memory_space<vmem>>, vector<256x16xf32>,
    %c0_38 = arith.constant 0 : index
    %c0_39 = arith.constant 0 : index
    %100 = tpu.strided_load %arg11[%c0_38, %c0_39] {strides = array<i32: 2, 1>} : memref<256x16xf32, #tpu.memory_space<vmem>>, vector<128x16xf32>
    %101 = tpu.transpose %100, [1, 0] : vector<128x16xf32> -> vector<16x128xf32>
    %c0_40 = arith.constant 0 : index
    %c0_41 = arith.constant 0 : index
    %102 = vector.load %arg5[%c0_40, %c0_41] : memref<32x48xbf16, #tpu.memory_space<vmem>>, vector<32x48xbf16>
    %103 = vector.extract_strided_slice %0 {offsets = [96, 0], sizes = [32, 1], strides = [1, 1]} : vector<928x1xf32> to vector<32x1xf32>
    %c1_i32_42 = arith.constant 1 : i32
    %104 = tpu.dynamic_rotate %101 by %c1_i32_42 dim 1 : vector<16x128xf32>, i32 -> vector<16x128xf32>
    %105 = vector.broadcast %7 : vector<1x128xf32> to vector<16x128xf32>
    %106 = arith.mulf %104, %105 : vector<16x128xf32>
    %c127_i32 = arith.constant 127 : i32
    %107 = tpu.dynamic_rotate %101 by %c127_i32 dim 1 : vector<16x128xf32>, i32 -> vector<16x128xf32>
    %108 = vector.broadcast %8 : vector<1x128xf32> to vector<16x128xf32>
    %109 = arith.mulf %107, %108 : vector<16x128xf32>
    %110 = tpu.concatenate %106, %101, %109 in 0 : vector<16x128xf32>, vector<16x128xf32>, vector<16x128xf32> -> vector<48x128xf32>
    %111 = arith.truncf %110 : vector<48x128xf32> to vector<48x128xbf16>
    %cst_43 = arith.constant dense<0.000000e+00> : vector<32x128xf32>
    %112 = tpu.matmul %102, %111, %cst_43 {dimension_numbers = #tpu.dot_dimension_numbers<[1], [0], [0], [1], [0, 0, 1, 1], [], []>} : vector<32x48xbf16>, vector<48x128xbf16>, vector<32x128xf32> -> vector<32x128xf32>
    %113 = vector.broadcast %103 : vector<32x1xf32> to vector<32x128xf32>
    %114 = arith.addf %112, %113 : vector<32x128xf32>
    %115 = vector.extract_strided_slice %0 {offsets = [128, 0], sizes = [32, 1], strides = [1, 1]} : vector<928x1xf32> to vector<32x1xf32>
    %116 = vector.extract_strided_slice %0 {offsets = [160, 0], sizes = [32, 1], strides = [1, 1]} : vector<928x1xf32> to vector<32x1xf32>
    %cst_44 = arith.constant dense<0.000000e+00> : vector<32xf32>
    %117 = vector.multi_reduction <add>, %114, %cst_44 [1] : vector<32x128xf32> to vector<32xf32>
    %118 = vector.shape_cast %117 : vector<32xf32> to vector<32x1xf32>
    %119 = arith.mulf %114, %114 : vector<32x128xf32>
    %cst_45 = arith.constant dense<0.000000e+00> : vector<32xf32>
    %120 = vector.multi_reduction <add>, %119, %cst_45 [1] : vector<32x128xf32> to vector<32xf32>
    %121 = vector.shape_cast %120 : vector<32xf32> to vector<32x1xf32>
    %cst_46 = arith.constant 7.812500e-03 : f32
    %122 = vector.broadcast %cst_46 : f32 to vector<32x1xf32>
    %123 = arith.mulf %118, %122 : vector<32x1xf32>
    %cst_47 = arith.constant 7.812500e-03 : f32
    %124 = vector.broadcast %cst_47 : f32 to vector<32x1xf32>
    %125 = arith.mulf %121, %124 : vector<32x1xf32>
    %126 = arith.mulf %123, %123 : vector<32x1xf32>
    %127 = arith.subf %125, %126 : vector<32x1xf32>
    %cst_48 = arith.constant 0.000000e+00 : f32
    %128 = vector.broadcast %cst_48 : f32 to vector<32x1xf32>
    %129 = arith.maximumf %127, %128 : vector<32x1xf32>
    %130 = vector.broadcast %123 : vector<32x1xf32> to vector<32x128xf32>
    %131 = arith.subf %114, %130 : vector<32x128xf32>
    %cst_49 = arith.constant 9.99999974E-6 : f32
    %132 = vector.broadcast %cst_49 : f32 to vector<32x1xf32>
    %133 = arith.addf %129, %132 : vector<32x1xf32>
    %134 = math.rsqrt %133 : vector<32x1xf32>
    %135 = vector.broadcast %134 : vector<32x1xf32> to vector<32x128xf32>
    %136 = arith.mulf %131, %135 : vector<32x128xf32>
    %137 = vector.broadcast %115 : vector<32x1xf32> to vector<32x128xf32>
    %138 = arith.mulf %136, %137 : vector<32x128xf32>
    %139 = vector.broadcast %116 : vector<32x1xf32> to vector<32x128xf32>
    %140 = arith.addf %138, %139 : vector<32x128xf32>
    %cst_50 = arith.constant 0.000000e+00 : f32
    %141 = vector.broadcast %cst_50 : f32 to vector<32x128xf32>
    %142 = arith.cmpf oge, %140, %141 : vector<32x128xf32>
    %cst_51 = arith.constant 3.000000e-01 : f32
    %143 = vector.broadcast %cst_51 : f32 to vector<32x128xf32>
    %144 = arith.mulf %143, %140 : vector<32x128xf32>
    %145 = arith.select %142, %140, %144 : vector<32x128xi1>, vector<32x128xf32>
    %c0_52 = arith.constant 0 : index
    %c0_53 = arith.constant 0 : index
    %146 = vector.load %arg6[%c0_52, %c0_53] : memref<32x96xbf16, #tpu.memory_space<vmem>>, vector<32x96xbf16>
    %147 = vector.extract_strided_slice %0 {offsets = [192, 0], sizes = [32, 1], strides = [1, 1]} : vector<928x1xf32> to vector<32x1xf32>
    %c1_i32_54 = arith.constant 1 : i32
    %148 = tpu.dynamic_rotate %145 by %c1_i32_54 dim 1 : vector<32x128xf32>, i32 -> vector<32x128xf32>
    %149 = vector.broadcast %7 : vector<1x128xf32> to vector<32x128xf32>
    %150 = arith.mulf %148, %149 : vector<32x128xf32>
    %c127_i32_55 = arith.constant 127 : i32
    %151 = tpu.dynamic_rotate %145 by %c127_i32_55 dim 1 : vector<32x128xf32>, i32 -> vector<32x128xf32>
    %152 = vector.broadcast %8 : vector<1x128xf32> to vector<32x128xf32>
    %153 = arith.mulf %151, %152 : vector<32x128xf32>
    %154 = tpu.concatenate %150, %145, %153 in 0 : vector<32x128xf32>, vector<32x128xf32>, vector<32x128xf32> -> vector<96x128xf32>
    %155 = arith.truncf %154 : vector<96x128xf32> to vector<96x128xbf16>
    %cst_56 = arith.constant dense<0.000000e+00> : vector<32x128xf32>
    %156 = tpu.matmul %146, %155, %cst_56 {dimension_numbers = #tpu.dot_dimension_numbers<[1], [0], [0], [1], [0, 0, 1, 1], [], []>} : vector<32x96xbf16>, vector<96x128xbf16>, vector<32x128xf32> -> vector<32x128xf32>
    %157 = vector.broadcast %147 : vector<32x1xf32> to vector<32x128xf32>
    %158 = arith.addf %156, %157 : vector<32x128xf32>
    %159 = vector.extract_strided_slice %0 {offsets = [224, 0], sizes = [32, 1], strides = [1, 1]} : vector<928x1xf32> to vector<32x1xf32>
    %160 = vector.extract_strided_slice %0 {offsets = [256, 0], sizes = [32, 1], strides = [1, 1]} : vector<928x1xf32> to vector<32x1xf32>
    %cst_57 = arith.constant dense<0.000000e+00> : vector<32xf32>
    %161 = vector.multi_reduction <add>, %158, %cst_57 [1] : vector<32x128xf32> to vector<32xf32>
    %162 = vector.shape_cast %161 : vector<32xf32> to vector<32x1xf32>
    %163 = arith.mulf %158, %158 : vector<32x128xf32>
    %cst_58 = arith.constant dense<0.000000e+00> : vector<32xf32>
    %164 = vector.multi_reduction <add>, %163, %cst_58 [1] : vector<32x128xf32> to vector<32xf32>
    %165 = vector.shape_cast %164 : vector<32xf32> to vector<32x1xf32>
    %cst_59 = arith.constant 7.812500e-03 : f32
    %166 = vector.broadcast %cst_59 : f32 to vector<32x1xf32>
    %167 = arith.mulf %162, %166 : vector<32x1xf32>
    %cst_60 = arith.constant 7.812500e-03 : f32
    %168 = vector.broadcast %cst_60 : f32 to vector<32x1xf32>
    %169 = arith.mulf %165, %168 : vector<32x1xf32>
    %170 = arith.mulf %167, %167 : vector<32x1xf32>
    %171 = arith.subf %169, %170 : vector<32x1xf32>
    %cst_61 = arith.constant 0.000000e+00 : f32
    %172 = vector.broadcast %cst_61 : f32 to vector<32x1xf32>
    %173 = arith.maximumf %171, %172 : vector<32x1xf32>
    %174 = vector.broadcast %167 : vector<32x1xf32> to vector<32x128xf32>
    %175 = arith.subf %158, %174 : vector<32x128xf32>
    %cst_62 = arith.constant 9.99999974E-6 : f32
    %176 = vector.broadcast %cst_62 : f32 to vector<32x1xf32>
    %177 = arith.addf %173, %176 : vector<32x1xf32>
    %178 = math.rsqrt %177 : vector<32x1xf32>
    %179 = vector.broadcast %178 : vector<32x1xf32> to vector<32x128xf32>
    %180 = arith.mulf %175, %179 : vector<32x128xf32>
    %181 = vector.broadcast %159 : vector<32x1xf32> to vector<32x128xf32>
    %182 = arith.mulf %180, %181 : vector<32x128xf32>
    %183 = vector.broadcast %160 : vector<32x1xf32> to vector<32x128xf32>
    %184 = arith.addf %182, %183 : vector<32x128xf32>
    %cst_63 = arith.constant 0.000000e+00 : f32
    %185 = vector.broadcast %cst_63 : f32 to vector<32x128xf32>
    %186 = arith.cmpf oge, %184, %185 : vector<32x128xf32>
    %cst_64 = arith.constant 3.000000e-01 : f32
    %187 = vector.broadcast %cst_64 : f32 to vector<32x128xf32>
    %188 = arith.mulf %187, %184 : vector<32x128xf32>
    %189 = arith.select %186, %184, %188 : vector<32x128xi1>, vector<32x128xf32>
    %190 = vector.extract_strided_slice %2 {offsets = [0, 0], sizes = [64, 32], strides = [1, 1]} : vector<64x640xbf16> to vector<64x32xbf16>
    %191 = arith.truncf %189 : vector<32x128xf32> to vector<32x128xbf16>
    %cst_65 = arith.constant dense<0.000000e+00> : vector<64x128xf32>
    %192 = tpu.matmul %190, %191, %cst_65 {dimension_numbers = #tpu.dot_dimension_numbers<[1], [0], [0], [1], [0, 0, 1, 1], [], []>} : vector<64x32xbf16>, vector<32x128xbf16>, vector<64x128xf32> -> vector<64x128xf32>
    %193 = vector.extract_strided_slice %0 {offsets = [288, 0], sizes = [64, 1], strides = [1, 1]} : vector<928x1xf32> to vector<64x1xf32>
    %194 = vector.extract_strided_slice %0 {offsets = [352, 0], sizes = [64, 1], strides = [1, 1]} : vector<928x1xf32> to vector<64x1xf32>
    %cst_66 = arith.constant dense<0.000000e+00> : vector<64xf32>
    %195 = vector.multi_reduction <add>, %192, %cst_66 [1] : vector<64x128xf32> to vector<64xf32>
    %196 = vector.shape_cast %195 : vector<64xf32> to vector<64x1xf32>
    %197 = arith.mulf %192, %192 : vector<64x128xf32>
    %cst_67 = arith.constant dense<0.000000e+00> : vector<64xf32>
    %198 = vector.multi_reduction <add>, %197, %cst_67 [1] : vector<64x128xf32> to vector<64xf32>
    %199 = vector.shape_cast %198 : vector<64xf32> to vector<64x1xf32>
    %cst_68 = arith.constant 7.812500e-03 : f32
    %200 = vector.broadcast %cst_68 : f32 to vector<64x1xf32>
    %201 = arith.mulf %196, %200 : vector<64x1xf32>
    %cst_69 = arith.constant 7.812500e-03 : f32
    %202 = vector.broadcast %cst_69 : f32 to vector<64x1xf32>
    %203 = arith.mulf %199, %202 : vector<64x1xf32>
    %204 = arith.mulf %201, %201 : vector<64x1xf32>
    %205 = arith.subf %203, %204 : vector<64x1xf32>
    %cst_70 = arith.constant 0.000000e+00 : f32
    %206 = vector.broadcast %cst_70 : f32 to vector<64x1xf32>
    %207 = arith.maximumf %205, %206 : vector<64x1xf32>
    %208 = vector.broadcast %201 : vector<64x1xf32> to vector<64x128xf32>
    %209 = arith.subf %192, %208 : vector<64x128xf32>
    %cst_71 = arith.constant 9.99999974E-6 : f32
    %210 = vector.broadcast %cst_71 : f32 to vector<64x1xf32>
    %211 = arith.addf %207, %210 : vector<64x1xf32>
    %212 = math.rsqrt %211 : vector<64x1xf32>
    %213 = vector.broadcast %212 : vector<64x1xf32> to vector<64x128xf32>
    %214 = arith.mulf %209, %213 : vector<64x128xf32>
    %215 = vector.broadcast %193 : vector<64x1xf32> to vector<64x128xf32>
    %216 = arith.mulf %214, %215 : vector<64x128xf32>
    %217 = vector.broadcast %194 : vector<64x1xf32> to vector<64x128xf32>
    %218 = arith.addf %216, %217 : vector<64x128xf32>
    %219 = vector.extract_strided_slice %1 {offsets = [0, 0, 0], sizes = [3, 32, 1], strides = [1, 1, 1]} : vector<3x224x1xf32> to vector<3x32x1xf32>
    %220 = vector.extract_strided_slice %2 {offsets = [0, 128], sizes = [64, 32], strides = [1, 1]} : vector<64x640xbf16> to vector<64x32xbf16>
    %c1_i32_72 = arith.constant 1 : i32
    %221 = tpu.dynamic_rotate %189 by %c1_i32_72 dim 1 : vector<32x128xf32>, i32 -> vector<32x128xf32>
    %222 = vector.broadcast %7 : vector<1x128xf32> to vector<32x128xf32>
    %223 = arith.mulf %221, %222 : vector<32x128xf32>
    %224 = vector.extract_strided_slice %219 {offsets = [0, 0, 0], sizes = [1, 32, 1], strides = [1, 1, 1]} : vector<3x32x1xf32> to vector<1x32x1xf32>
    %225 = vector.shape_cast %224 : vector<1x32x1xf32> to vector<32x1xf32>
    %226 = vector.broadcast %225 : vector<32x1xf32> to vector<32x128xf32>
    %227 = arith.mulf %226, %223 : vector<32x128xf32>
    %228 = vector.extract_strided_slice %219 {offsets = [1, 0, 0], sizes = [1, 32, 1], strides = [1, 1, 1]} : vector<3x32x1xf32> to vector<1x32x1xf32>
    %229 = vector.shape_cast %228 : vector<1x32x1xf32> to vector<32x1xf32>
    %230 = vector.broadcast %229 : vector<32x1xf32> to vector<32x128xf32>
    %231 = arith.mulf %230, %189 : vector<32x128xf32>
    %232 = arith.addf %227, %231 : vector<32x128xf32>
    %c127_i32_73 = arith.constant 127 : i32
    %233 = tpu.dynamic_rotate %189 by %c127_i32_73 dim 1 : vector<32x128xf32>, i32 -> vector<32x128xf32>
    %234 = vector.broadcast %8 : vector<1x128xf32> to vector<32x128xf32>
    %235 = arith.mulf %233, %234 : vector<32x128xf32>
    %236 = vector.extract_strided_slice %219 {offsets = [2, 0, 0], sizes = [1, 32, 1], strides = [1, 1, 1]} : vector<3x32x1xf32> to vector<1x32x1xf32>
    %237 = vector.shape_cast %236 : vector<1x32x1xf32> to vector<32x1xf32>
    %238 = vector.broadcast %237 : vector<32x1xf32> to vector<32x128xf32>
    %239 = arith.mulf %238, %235 : vector<32x128xf32>
    %240 = arith.addf %232, %239 : vector<32x128xf32>
    %241 = arith.truncf %240 : vector<32x128xf32> to vector<32x128xbf16>
    %cst_74 = arith.constant dense<0.000000e+00> : vector<64x128xf32>
    %242 = tpu.matmul %220, %241, %cst_74 {dimension_numbers = #tpu.dot_dimension_numbers<[1], [0], [0], [1], [0, 0, 1, 1], [], []>} : vector<64x32xbf16>, vector<32x128xbf16>, vector<64x128xf32> -> vector<64x128xf32>
    %243 = vector.extract_strided_slice %0 {offsets = [416, 0], sizes = [64, 1], strides = [1, 1]} : vector<928x1xf32> to vector<64x1xf32>
    %244 = vector.extract_strided_slice %0 {offsets = [480, 0], sizes = [64, 1], strides = [1, 1]} : vector<928x1xf32> to vector<64x1xf32>
    %cst_75 = arith.constant dense<0.000000e+00> : vector<64xf32>
    %245 = vector.multi_reduction <add>, %242, %cst_75 [1] : vector<64x128xf32> to vector<64xf32>
    %246 = vector.shape_cast %245 : vector<64xf32> to vector<64x1xf32>
    %247 = arith.mulf %242, %242 : vector<64x128xf32>
    %cst_76 = arith.constant dense<0.000000e+00> : vector<64xf32>
    %248 = vector.multi_reduction <add>, %247, %cst_76 [1] : vector<64x128xf32> to vector<64xf32>
    %249 = vector.shape_cast %248 : vector<64xf32> to vector<64x1xf32>
    %cst_77 = arith.constant 7.812500e-03 : f32
    %250 = vector.broadcast %cst_77 : f32 to vector<64x1xf32>
    %251 = arith.mulf %246, %250 : vector<64x1xf32>
    %cst_78 = arith.constant 7.812500e-03 : f32
    %252 = vector.broadcast %cst_78 : f32 to vector<64x1xf32>
    %253 = arith.mulf %249, %252 : vector<64x1xf32>
    %254 = arith.mulf %251, %251 : vector<64x1xf32>
    %255 = arith.subf %253, %254 : vector<64x1xf32>
    %cst_79 = arith.constant 0.000000e+00 : f32
    %256 = vector.broadcast %cst_79 : f32 to vector<64x1xf32>
    %257 = arith.maximumf %255, %256 : vector<64x1xf32>
    %258 = vector.broadcast %251 : vector<64x1xf32> to vector<64x128xf32>
    %259 = arith.subf %242, %258 : vector<64x128xf32>
    %cst_80 = arith.constant 9.99999974E-6 : f32
    %260 = vector.broadcast %cst_80 : f32 to vector<64x1xf32>
    %261 = arith.addf %257, %260 : vector<64x1xf32>
    %262 = math.rsqrt %261 : vector<64x1xf32>
    %263 = vector.broadcast %262 : vector<64x1xf32> to vector<64x128xf32>
    %264 = arith.mulf %259, %263 : vector<64x128xf32>
    %265 = vector.broadcast %243 : vector<64x1xf32> to vector<64x128xf32>
    %266 = arith.mulf %264, %265 : vector<64x128xf32>
    %267 = vector.broadcast %244 : vector<64x1xf32> to vector<64x128xf32>
    %268 = arith.addf %266, %267 : vector<64x128xf32>
    %cst_81 = arith.constant 0.000000e+00 : f32
    %269 = vector.broadcast %cst_81 : f32 to vector<64x128xf32>
    %270 = arith.cmpf oge, %268, %269 : vector<64x128xf32>
    %cst_82 = arith.constant 3.000000e-01 : f32
    %271 = vector.broadcast %cst_82 : f32 to vector<64x128xf32>
    %272 = arith.mulf %271, %268 : vector<64x128xf32>
    %273 = arith.select %270, %268, %272 : vector<64x128xi1>, vector<64x128xf32>
    %274 = vector.extract_strided_slice %1 {offsets = [0, 32, 0], sizes = [3, 64, 1], strides = [1, 1, 1]} : vector<3x224x1xf32> to vector<3x64x1xf32>
    %275 = vector.extract_strided_slice %2 {offsets = [0, 256], sizes = [64, 64], strides = [1, 1]} : vector<64x640xbf16> to vector<64x64xbf16>
    %c1_i32_83 = arith.constant 1 : i32
    %276 = tpu.dynamic_rotate %273 by %c1_i32_83 dim 1 : vector<64x128xf32>, i32 -> vector<64x128xf32>
    %277 = vector.broadcast %7 : vector<1x128xf32> to vector<64x128xf32>
    %278 = arith.mulf %276, %277 : vector<64x128xf32>
    %279 = vector.extract_strided_slice %274 {offsets = [0, 0, 0], sizes = [1, 64, 1], strides = [1, 1, 1]} : vector<3x64x1xf32> to vector<1x64x1xf32>
    %280 = vector.shape_cast %279 : vector<1x64x1xf32> to vector<64x1xf32>
    %281 = vector.broadcast %280 : vector<64x1xf32> to vector<64x128xf32>
    %282 = arith.mulf %281, %278 : vector<64x128xf32>
    %283 = vector.extract_strided_slice %274 {offsets = [1, 0, 0], sizes = [1, 64, 1], strides = [1, 1, 1]} : vector<3x64x1xf32> to vector<1x64x1xf32>
    %284 = vector.shape_cast %283 : vector<1x64x1xf32> to vector<64x1xf32>
    %285 = vector.broadcast %284 : vector<64x1xf32> to vector<64x128xf32>
    %286 = arith.mulf %285, %273 : vector<64x128xf32>
    %287 = arith.addf %282, %286 : vector<64x128xf32>
    %c127_i32_84 = arith.constant 127 : i32
    %288 = tpu.dynamic_rotate %273 by %c127_i32_84 dim 1 : vector<64x128xf32>, i32 -> vector<64x128xf32>
    %289 = vector.broadcast %8 : vector<1x128xf32> to vector<64x128xf32>
    %290 = arith.mulf %288, %289 : vector<64x128xf32>
    %291 = vector.extract_strided_slice %274 {offsets = [2, 0, 0], sizes = [1, 64, 1], strides = [1, 1, 1]} : vector<3x64x1xf32> to vector<1x64x1xf32>
    %292 = vector.shape_cast %291 : vector<1x64x1xf32> to vector<64x1xf32>
    %293 = vector.broadcast %292 : vector<64x1xf32> to vector<64x128xf32>
    %294 = arith.mulf %293, %290 : vector<64x128xf32>
    %295 = arith.addf %287, %294 : vector<64x128xf32>
    %296 = arith.truncf %295 : vector<64x128xf32> to vector<64x128xbf16>
    %cst_85 = arith.constant dense<0.000000e+00> : vector<64x128xf32>
    %297 = tpu.matmul %275, %296, %cst_85 {dimension_numbers = #tpu.dot_dimension_numbers<[1], [0], [0], [1], [0, 0, 1, 1], [], []>} : vector<64x64xbf16>, vector<64x128xbf16>, vector<64x128xf32> -> vector<64x128xf32>
    %298 = vector.extract_strided_slice %0 {offsets = [544, 0], sizes = [64, 1], strides = [1, 1]} : vector<928x1xf32> to vector<64x1xf32>
    %299 = vector.extract_strided_slice %0 {offsets = [608, 0], sizes = [64, 1], strides = [1, 1]} : vector<928x1xf32> to vector<64x1xf32>
    %cst_86 = arith.constant dense<0.000000e+00> : vector<64xf32>
    %300 = vector.multi_reduction <add>, %297, %cst_86 [1] : vector<64x128xf32> to vector<64xf32>
    %301 = vector.shape_cast %300 : vector<64xf32> to vector<64x1xf32>
    %302 = arith.mulf %297, %297 : vector<64x128xf32>
    %cst_87 = arith.constant dense<0.000000e+00> : vector<64xf32>
    %303 = vector.multi_reduction <add>, %302, %cst_87 [1] : vector<64x128xf32> to vector<64xf32>
    %304 = vector.shape_cast %303 : vector<64xf32> to vector<64x1xf32>
    %cst_88 = arith.constant 7.812500e-03 : f32
    %305 = vector.broadcast %cst_88 : f32 to vector<64x1xf32>
    %306 = arith.mulf %301, %305 : vector<64x1xf32>
    %cst_89 = arith.constant 7.812500e-03 : f32
    %307 = vector.broadcast %cst_89 : f32 to vector<64x1xf32>
    %308 = arith.mulf %304, %307 : vector<64x1xf32>
    %309 = arith.mulf %306, %306 : vector<64x1xf32>
    %310 = arith.subf %308, %309 : vector<64x1xf32>
    %cst_90 = arith.constant 0.000000e+00 : f32
    %311 = vector.broadcast %cst_90 : f32 to vector<64x1xf32>
    %312 = arith.maximumf %310, %311 : vector<64x1xf32>
    %313 = vector.broadcast %306 : vector<64x1xf32> to vector<64x128xf32>
    %314 = arith.subf %297, %313 : vector<64x128xf32>
    %cst_91 = arith.constant 9.99999974E-6 : f32
    %315 = vector.broadcast %cst_91 : f32 to vector<64x1xf32>
    %316 = arith.addf %312, %315 : vector<64x1xf32>
    %317 = math.rsqrt %316 : vector<64x1xf32>
    %318 = vector.broadcast %317 : vector<64x1xf32> to vector<64x128xf32>
    %319 = arith.mulf %314, %318 : vector<64x128xf32>
    %320 = vector.broadcast %298 : vector<64x1xf32> to vector<64x128xf32>
    %321 = arith.mulf %319, %320 : vector<64x128xf32>
    %322 = vector.broadcast %299 : vector<64x1xf32> to vector<64x128xf32>
    %323 = arith.addf %321, %322 : vector<64x128xf32>
    %324 = arith.addf %323, %218 : vector<64x128xf32>
    %cst_92 = arith.constant 0.000000e+00 : f32
    %325 = vector.broadcast %cst_92 : f32 to vector<64x128xf32>
    %326 = arith.cmpf oge, %324, %325 : vector<64x128xf32>
    %cst_93 = arith.constant 3.000000e-01 : f32
    %327 = vector.broadcast %cst_93 : f32 to vector<64x128xf32>
    %328 = arith.mulf %327, %324 : vector<64x128xf32>
    %329 = arith.select %326, %324, %328 : vector<64x128xi1>, vector<64x128xf32>
    %330 = vector.extract_strided_slice %1 {offsets = [0, 96, 0], sizes = [3, 64, 1], strides = [1, 1, 1]} : vector<3x224x1xf32> to vector<3x64x1xf32>
    %331 = vector.extract_strided_slice %2 {offsets = [0, 384], sizes = [64, 64], strides = [1, 1]} : vector<64x640xbf16> to vector<64x64xbf16>
    %c1_i32_94 = arith.constant 1 : i32
    %332 = tpu.dynamic_rotate %329 by %c1_i32_94 dim 1 : vector<64x128xf32>, i32 -> vector<64x128xf32>
    %333 = vector.broadcast %7 : vector<1x128xf32> to vector<64x128xf32>
    %334 = arith.mulf %332, %333 : vector<64x128xf32>
    %335 = vector.extract_strided_slice %330 {offsets = [0, 0, 0], sizes = [1, 64, 1], strides = [1, 1, 1]} : vector<3x64x1xf32> to vector<1x64x1xf32>
    %336 = vector.shape_cast %335 : vector<1x64x1xf32> to vector<64x1xf32>
    %337 = vector.broadcast %336 : vector<64x1xf32> to vector<64x128xf32>
    %338 = arith.mulf %337, %334 : vector<64x128xf32>
    %339 = vector.extract_strided_slice %330 {offsets = [1, 0, 0], sizes = [1, 64, 1], strides = [1, 1, 1]} : vector<3x64x1xf32> to vector<1x64x1xf32>
    %340 = vector.shape_cast %339 : vector<1x64x1xf32> to vector<64x1xf32>
    %341 = vector.broadcast %340 : vector<64x1xf32> to vector<64x128xf32>
    %342 = arith.mulf %341, %329 : vector<64x128xf32>
    %343 = arith.addf %338, %342 : vector<64x128xf32>
    %c127_i32_95 = arith.constant 127 : i32
    %344 = tpu.dynamic_rotate %329 by %c127_i32_95 dim 1 : vector<64x128xf32>, i32 -> vector<64x128xf32>
    %345 = vector.broadcast %8 : vector<1x128xf32> to vector<64x128xf32>
    %346 = arith.mulf %344, %345 : vector<64x128xf32>
    %347 = vector.extract_strided_slice %330 {offsets = [2, 0, 0], sizes = [1, 64, 1], strides = [1, 1, 1]} : vector<3x64x1xf32> to vector<1x64x1xf32>
    %348 = vector.shape_cast %347 : vector<1x64x1xf32> to vector<64x1xf32>
    %349 = vector.broadcast %348 : vector<64x1xf32> to vector<64x128xf32>
    %350 = arith.mulf %349, %346 : vector<64x128xf32>
    %351 = arith.addf %343, %350 : vector<64x128xf32>
    %352 = arith.truncf %351 : vector<64x128xf32> to vector<64x128xbf16>
    %cst_96 = arith.constant dense<0.000000e+00> : vector<64x128xf32>
    %353 = tpu.matmul %331, %352, %cst_96 {dimension_numbers = #tpu.dot_dimension_numbers<[1], [0], [0], [1], [0, 0, 1, 1], [], []>} : vector<64x64xbf16>, vector<64x128xbf16>, vector<64x128xf32> -> vector<64x128xf32>
    %354 = vector.extract_strided_slice %0 {offsets = [672, 0], sizes = [64, 1], strides = [1, 1]} : vector<928x1xf32> to vector<64x1xf32>
    %355 = vector.extract_strided_slice %0 {offsets = [736, 0], sizes = [64, 1], strides = [1, 1]} : vector<928x1xf32> to vector<64x1xf32>
    %cst_97 = arith.constant dense<0.000000e+00> : vector<64xf32>
    %356 = vector.multi_reduction <add>, %353, %cst_97 [1] : vector<64x128xf32> to vector<64xf32>
    %357 = vector.shape_cast %356 : vector<64xf32> to vector<64x1xf32>
    %358 = arith.mulf %353, %353 : vector<64x128xf32>
    %cst_98 = arith.constant dense<0.000000e+00> : vector<64xf32>
    %359 = vector.multi_reduction <add>, %358, %cst_98 [1] : vector<64x128xf32> to vector<64xf32>
    %360 = vector.shape_cast %359 : vector<64xf32> to vector<64x1xf32>
    %cst_99 = arith.constant 7.812500e-03 : f32
    %361 = vector.broadcast %cst_99 : f32 to vector<64x1xf32>
    %362 = arith.mulf %357, %361 : vector<64x1xf32>
    %cst_100 = arith.constant 7.812500e-03 : f32
    %363 = vector.broadcast %cst_100 : f32 to vector<64x1xf32>
    %364 = arith.mulf %360, %363 : vector<64x1xf32>
    %365 = arith.mulf %362, %362 : vector<64x1xf32>
    %366 = arith.subf %364, %365 : vector<64x1xf32>
    %cst_101 = arith.constant 0.000000e+00 : f32
    %367 = vector.broadcast %cst_101 : f32 to vector<64x1xf32>
    %368 = arith.maximumf %366, %367 : vector<64x1xf32>
    %369 = vector.broadcast %362 : vector<64x1xf32> to vector<64x128xf32>
    %370 = arith.subf %353, %369 : vector<64x128xf32>
    %cst_102 = arith.constant 9.99999974E-6 : f32
    %371 = vector.broadcast %cst_102 : f32 to vector<64x1xf32>
    %372 = arith.addf %368, %371 : vector<64x1xf32>
    %373 = math.rsqrt %372 : vector<64x1xf32>
    %374 = vector.broadcast %373 : vector<64x1xf32> to vector<64x128xf32>
    %375 = arith.mulf %370, %374 : vector<64x128xf32>
    %376 = vector.broadcast %354 : vector<64x1xf32> to vector<64x128xf32>
    %377 = arith.mulf %375, %376 : vector<64x128xf32>
    %378 = vector.broadcast %355 : vector<64x1xf32> to vector<64x128xf32>
    %379 = arith.addf %377, %378 : vector<64x128xf32>
    %cst_103 = arith.constant 0.000000e+00 : f32
    %380 = vector.broadcast %cst_103 : f32 to vector<64x128xf32>
    %381 = arith.cmpf oge, %379, %380 : vector<64x128xf32>
    %cst_104 = arith.constant 3.000000e-01 : f32
    %382 = vector.broadcast %cst_104 : f32 to vector<64x128xf32>
    %383 = arith.mulf %382, %379 : vector<64x128xf32>
    %384 = arith.select %381, %379, %383 : vector<64x128xi1>, vector<64x128xf32>
    %385 = vector.extract_strided_slice %1 {offsets = [0, 160, 0], sizes = [3, 64, 1], strides = [1, 1, 1]} : vector<3x224x1xf32> to vector<3x64x1xf32>
    %386 = vector.extract_strided_slice %2 {offsets = [0, 512], sizes = [64, 64], strides = [1, 1]} : vector<64x640xbf16> to vector<64x64xbf16>
    %c1_i32_105 = arith.constant 1 : i32
    %387 = tpu.dynamic_rotate %384 by %c1_i32_105 dim 1 : vector<64x128xf32>, i32 -> vector<64x128xf32>
    %388 = vector.broadcast %7 : vector<1x128xf32> to vector<64x128xf32>
    %389 = arith.mulf %387, %388 : vector<64x128xf32>
    %390 = vector.extract_strided_slice %385 {offsets = [0, 0, 0], sizes = [1, 64, 1], strides = [1, 1, 1]} : vector<3x64x1xf32> to vector<1x64x1xf32>
    %391 = vector.shape_cast %390 : vector<1x64x1xf32> to vector<64x1xf32>
    %392 = vector.broadcast %391 : vector<64x1xf32> to vector<64x128xf32>
    %393 = arith.mulf %392, %389 : vector<64x128xf32>
    %394 = vector.extract_strided_slice %385 {offsets = [1, 0, 0], sizes = [1, 64, 1], strides = [1, 1, 1]} : vector<3x64x1xf32> to vector<1x64x1xf32>
    %395 = vector.shape_cast %394 : vector<1x64x1xf32> to vector<64x1xf32>
    %396 = vector.broadcast %395 : vector<64x1xf32> to vector<64x128xf32>
    %397 = arith.mulf %396, %384 : vector<64x128xf32>
    %398 = arith.addf %393, %397 : vector<64x128xf32>
    %c127_i32_106 = arith.constant 127 : i32
    %399 = tpu.dynamic_rotate %384 by %c127_i32_106 dim 1 : vector<64x128xf32>, i32 -> vector<64x128xf32>
    %400 = vector.broadcast %8 : vector<1x128xf32> to vector<64x128xf32>
    %401 = arith.mulf %399, %400 : vector<64x128xf32>
    %402 = vector.extract_strided_slice %385 {offsets = [2, 0, 0], sizes = [1, 64, 1], strides = [1, 1, 1]} : vector<3x64x1xf32> to vector<1x64x1xf32>
    %403 = vector.shape_cast %402 : vector<1x64x1xf32> to vector<64x1xf32>
    %404 = vector.broadcast %403 : vector<64x1xf32> to vector<64x128xf32>
    %405 = arith.mulf %404, %401 : vector<64x128xf32>
    %406 = arith.addf %398, %405 : vector<64x128xf32>
    %407 = arith.truncf %406 : vector<64x128xf32> to vector<64x128xbf16>
    %cst_107 = arith.constant dense<0.000000e+00> : vector<64x128xf32>
    %408 = tpu.matmul %386, %407, %cst_107 {dimension_numbers = #tpu.dot_dimension_numbers<[1], [0], [0], [1], [0, 0, 1, 1], [], []>} : vector<64x64xbf16>, vector<64x128xbf16>, vector<64x128xf32> -> vector<64x128xf32>
    %409 = vector.extract_strided_slice %0 {offsets = [800, 0], sizes = [64, 1], strides = [1, 1]} : vector<928x1xf32> to vector<64x1xf32>
    %410 = vector.extract_strided_slice %0 {offsets = [864, 0], sizes = [64, 1], strides = [1, 1]} : vector<928x1xf32> to vector<64x1xf32>
    %cst_108 = arith.constant dense<0.000000e+00> : vector<64xf32>
    %411 = vector.multi_reduction <add>, %408, %cst_108 [1] : vector<64x128xf32> to vector<64xf32>
    %412 = vector.shape_cast %411 : vector<64xf32> to vector<64x1xf32>
    %413 = arith.mulf %408, %408 : vector<64x128xf32>
    %cst_109 = arith.constant dense<0.000000e+00> : vector<64xf32>
    %414 = vector.multi_reduction <add>, %413, %cst_109 [1] : vector<64x128xf32> to vector<64xf32>
    %415 = vector.shape_cast %414 : vector<64xf32> to vector<64x1xf32>
    %cst_110 = arith.constant 7.812500e-03 : f32
    %416 = vector.broadcast %cst_110 : f32 to vector<64x1xf32>
    %417 = arith.mulf %412, %416 : vector<64x1xf32>
    %cst_111 = arith.constant 7.812500e-03 : f32
    %418 = vector.broadcast %cst_111 : f32 to vector<64x1xf32>
    %419 = arith.mulf %415, %418 : vector<64x1xf32>
    %420 = arith.mulf %417, %417 : vector<64x1xf32>
    %421 = arith.subf %419, %420 : vector<64x1xf32>
    %cst_112 = arith.constant 0.000000e+00 : f32
    %422 = vector.broadcast %cst_112 : f32 to vector<64x1xf32>
    %423 = arith.maximumf %421, %422 : vector<64x1xf32>
    %424 = vector.broadcast %417 : vector<64x1xf32> to vector<64x128xf32>
    %425 = arith.subf %408, %424 : vector<64x128xf32>
    %cst_113 = arith.constant 9.99999974E-6 : f32
    %426 = vector.broadcast %cst_113 : f32 to vector<64x1xf32>
    %427 = arith.addf %423, %426 : vector<64x1xf32>
    %428 = math.rsqrt %427 : vector<64x1xf32>
    %429 = vector.broadcast %428 : vector<64x1xf32> to vector<64x128xf32>
    %430 = arith.mulf %425, %429 : vector<64x128xf32>
    %431 = vector.broadcast %409 : vector<64x1xf32> to vector<64x128xf32>
    %432 = arith.mulf %430, %431 : vector<64x128xf32>
    %433 = vector.broadcast %410 : vector<64x1xf32> to vector<64x128xf32>
    %434 = arith.addf %432, %433 : vector<64x128xf32>
    %435 = arith.addf %434, %324 : vector<64x128xf32>
    %c0_114 = arith.constant 0 : index
    %c0_115 = arith.constant 0 : index
    %436 = vector.load %arg10[%c0_114, %c0_115] : memref<64x128xf32, #tpu.memory_space<vmem>>, vector<64x128xf32>
    tpu.vector_store %arg10[%c0_114, %c0_115], %435 {strides = array<i32>} : memref<64x128xf32, #tpu.memory_space<vmem>>, vector<64x128xf32>,
    return
  }
}

</mosaic_0001>

<llo_original>
// kernel: xception_forward.1
$region0: #{xception_forward.1}
  #allocation0 [shape = 'u32[]', space=smem, size = 0x4, offset = 0x4, fixed_abs, tag = 'smem constant byte address 0x4 - core index']
  #allocation1 [shape = 'u32[144,128]{1,0:T(1,128)}', space=vmem, size = 0x12000, scoped, tag = 'internal scratch']
  #allocation2 [shape = 'f32[256,16]{1,0:T(8,128)}', space=vmem, size = 0x20000, scoped, tag = 'scratch operand']
  %s0 = inlined_call_operand.vmem [shape: f32[1,256], index: 0, kind: input, shape index: {}]
  %s1 = inlined_call_operand.vmem [shape: f32[2,256], index: 1, kind: input, shape index: {}]
  %s2 = inlined_call_operand.vmem [shape: f32[2,128], index: 2, kind: input, shape index: {}]
  %s3 = inlined_call_operand.vmem [shape: bf16[16,3], index: 3, kind: input, shape index: {}]
  %s4 = inlined_call_operand.vmem [shape: bf16[16,48], index: 4, kind: input, shape index: {}]
  %s5 = inlined_call_operand.vmem [shape: bf16[32,48], index: 5, kind: input, shape index: {}]
  %s6 = inlined_call_operand.vmem [shape: bf16[32,96], index: 6, kind: input, shape index: {}]
  %s7 = inlined_call_operand.vmem [shape: f32[3,224,1], index: 7, kind: input, shape index: {}]
  %s8 = inlined_call_operand.vmem [shape: bf16[64,640], index: 8, kind: input, shape index: {}]
  %s9 = inlined_call_operand.vmem [shape: f32[928,1], index: 9, kind: input, shape index: {}]
  %s10 = inlined_call_operand.vmem [shape: f32[64,128], index: 10, kind: output, shape index: {}]
  %s11 = sld [smem:[#allocation0]]
  $region50: #{xception_forward.1} parent=0
    _
  %s13 = ssub.s32 1, %s11
  %s14 = scalar_select 0, %s13, %s11
  // Predicated region
  $region2: #{xception_forward.1} parent=0 // pred_check
    _
  $region3: #{xception_forward.1} parent=0 // pred_check_branch
    %16 = sbr.rel (0) target = $region5
  $region4: #{xception_forward.1} parent=0 // pred_region
    _
  $region5: #{xception_forward.1} parent=0 // pred_fallthru
    _
  // Predicated region
  $region6: #{xception_forward.1} parent=0 // pred_check
    _
  $region7: #{xception_forward.1} parent=0 // pred_check_branch
    %18 = sbr.rel (0) target = $region9
  $region8: #{xception_forward.1} parent=0 // pred_region
    _
  $region9: #{xception_forward.1} parent=0 // pred_fallthru
    _
  // Predicated region
  $region10: #{xception_forward.1} parent=0 // pred_check
    _
  $region11: #{xception_forward.1} parent=0 // pred_check_branch
    %20 = sbr.rel (0) target = $region13
  $region12: #{xception_forward.1} parent=0 // pred_region
    _
  $region13: #{xception_forward.1} parent=0 // pred_fallthru
    _
  // Predicated region
  $region14: #{xception_forward.1} parent=0 // pred_check
    _
  $region15: #{xception_forward.1} parent=0 // pred_check_branch
    %22 = sbr.rel (0) target = $region17
  $region16: #{xception_forward.1} parent=0 // pred_region
    _
  $region17: #{xception_forward.1} parent=0 // pred_fallthru
    _
  // Predicated region
  $region18: #{xception_forward.1} parent=0 // pred_check
    _
  $region19: #{xception_forward.1} parent=0 // pred_check_branch
    %24 = sbr.rel (0) target = $region21
  $region20: #{xception_forward.1} parent=0 // pred_region
    _
  $region21: #{xception_forward.1} parent=0 // pred_fallthru
    _
  // Predicated region
  $region22: #{xception_forward.1} parent=0 // pred_check
    _
  $region23: #{xception_forward.1} parent=0 // pred_check_branch
    %26 = sbr.rel (0) target = $region25
  $region24: #{xception_forward.1} parent=0 // pred_region
    _
  $region25: #{xception_forward.1} parent=0 // pred_fallthru
    _
  // Predicated region
  $region26: #{xception_forward.1} parent=0 // pred_check
    _
  $region27: #{xception_forward.1} parent=0 // pred_check_branch
    %28 = sbr.rel (0) target = $region29
  $region28: #{xception_forward.1} parent=0 // pred_region
    _
  $region29: #{xception_forward.1} parent=0 // pred_fallthru
    _
  // Predicated region
  $region30: #{xception_forward.1} parent=0 // pred_check
    _
  $region31: #{xception_forward.1} parent=0 // pred_check_branch
    %30 = sbr.rel (0) target = $region33
  $region32: #{xception_forward.1} parent=0 // pred_region
    _
  $region33: #{xception_forward.1} parent=0 // pred_fallthru
    _
  // Predicated region
  $region34: #{xception_forward.1} parent=0 // pred_check
    _
  $region35: #{xception_forward.1} parent=0 // pred_check_branch
    %32 = sbr.rel (0) target = $region37
  $region36: #{xception_forward.1} parent=0 // pred_region
    _
  $region37: #{xception_forward.1} parent=0 // pred_fallthru
    _
  // Predicated region
  $region38: #{xception_forward.1} parent=0 // pred_check
    _
  $region39: #{xception_forward.1} parent=0 // pred_check_branch
    %34 = sbr.rel (0) target = $region41
  $region40: #{xception_forward.1} parent=0 // pred_region
    _
  $region41: #{xception_forward.1} parent=0 // pred_fallthru
    _
  %v36 = vld [vmem:[%s9] sm:$0xff]
  %v37 = vld [vmem:[%s9 + $0x8] sm:$0xff]
  %v38 = vld [vmem:[%s9 + $0x10] sm:$0xff]
  %v39 = vld [vmem:[%s9 + $0x18] sm:$0xff]
  %v40 = vld [vmem:[%s9 + $0x20] sm:$0xff]
  %v41 = vld [vmem:[%s9 + $0x28] sm:$0xff]
  %v42 = vld [vmem:[%s9 + $0x30] sm:$0xff]
  %v43 = vld [vmem:[%s9 + $0x38] sm:$0xff]
  %v44 = vld [vmem:[%s9 + $0x40] sm:$0xff]
  %v45 = vld [vmem:[%s9 + $0x48] sm:$0xff]
  %v46 = vld [vmem:[%s9 + $0x50] sm:$0xff]
  %v47 = vld [vmem:[%s9 + $0x58] sm:$0xff]
  %v48 = vld [vmem:[%s9 + $0x60] sm:$0xff]
  %v49 = vld [vmem:[%s9 + $0x68] sm:$0xff]
  %v50 = vld [vmem:[%s9 + $0x70] sm:$0xff]
  %v51 = vld [vmem:[%s9 + $0x78] sm:$0xff]
  %v52 = vld [vmem:[%s9 + $0x80] sm:$0xff]
  %v53 = vld [vmem:[%s9 + $0x88] sm:$0xff]
  %v54 = vld [vmem:[%s9 + $0x90] sm:$0xff]
  %v55 = vld [vmem:[%s9 + $0x98] sm:$0xff]
  %v56 = vld [vmem:[%s9 + $0xa0] sm:$0xff]
  %v57 = vld [vmem:[%s9 + $0xa8] sm:$0xff]
  %v58 = vld [vmem:[%s9 + $0xb0] sm:$0xff]
  %v59 = vld [vmem:[%s9 + $0xb8] sm:$0xff]
  %v60 = vld [vmem:[%s9 + $0xc0] sm:$0xff]
  %v61 = vld [vmem:[%s9 + $0xc8] sm:$0xff]
  %v62 = vld [vmem:[%s9 + $0xd0] sm:$0xff]
  %v63 = vld [vmem:[%s9 + $0xd8] sm:$0xff]
  %v64 = vld [vmem:[%s9 + $0xe0] sm:$0xff]
  %v65 = vld [vmem:[%s9 + $0xe8] sm:$0xff]
  %v66 = vld [vmem:[%s9 + $0xf0] sm:$0xff]
  %v67 = vld [vmem:[%s9 + $0xf8] sm:$0xff]
  %v68 = vld [vmem:[%s9 + $0x100] sm:$0xff]
  %v69 = vld [vmem:[%s9 + $0x108] sm:$0xff]
  %v70 = vld [vmem:[%s9 + $0x110] sm:$0xff]
  %v71 = vld [vmem:[%s9 + $0x118] sm:$0xff]
  %v72 = vld [vmem:[%s9 + $0x120] sm:$0xff]
  %v73 = vld [vmem:[%s9 + $0x128] sm:$0xff]
  %v74 = vld [vmem:[%s9 + $0x130] sm:$0xff]
  %v75 = vld [vmem:[%s9 + $0x138] sm:$0xff]
  %v76 = vld [vmem:[%s9 + $0x140] sm:$0xff]
  %v77 = vld [vmem:[%s9 + $0x148] sm:$0xff]
  %v78 = vld [vmem:[%s9 + $0x150] sm:$0xff]
  %v79 = vld [vmem:[%s9 + $0x158] sm:$0xff]
  %v80 = vld [vmem:[%s9 + $0x160] sm:$0xff]
  %v81 = vld [vmem:[%s9 + $0x168] sm:$0xff]
  %v82 = vld [vmem:[%s9 + $0x170] sm:$0xff]
  %v83 = vld [vmem:[%s9 + $0x178] sm:$0xff]
  %v84 = vld [vmem:[%s9 + $0x180] sm:$0xff]
  %v85 = vld [vmem:[%s9 + $0x188] sm:$0xff]
  %v86 = vld [vmem:[%s9 + $0x190] sm:$0xff]
  %v87 = vld [vmem:[%s9 + $0x198] sm:$0xff]
  %v88 = vld [vmem:[%s9 + $0x1a0] sm:$0xff]
  %v89 = vld [vmem:[%s9 + $0x1a8] sm:$0xff]
  %v90 = vld [vmem:[%s9 + $0x1b0] sm:$0xff]
  %v91 = vld [vmem:[%s9 + $0x1b8] sm:$0xff]
  %v92 = vld [vmem:[%s9 + $0x1c0] sm:$0xff]
  %v93 = vld [vmem:[%s9 + $0x1c8] sm:$0xff]
  %v94 = vld [vmem:[%s9 + $0x1d0] sm:$0xff]
  %v95 = vld [vmem:[%s9 + $0x1d8] sm:$0xff]
  %v96 = vld [vmem:[%s9 + $0x1e0] sm:$0xff]
  %v97 = vld [vmem:[%s9 + $0x1e8] sm:$0xff]
  %v98 = vld [vmem:[%s9 + $0x1f0] sm:$0xff]
  %v99 = vld [vmem:[%s9 + $0x1f8] sm:$0xff]
  %v100 = vld [vmem:[%s9 + $0x200] sm:$0xff]
  %v101 = vld [vmem:[%s9 + $0x208] sm:$0xff]
  %v102 = vld [vmem:[%s9 + $0x210] sm:$0xff]
  %v103 = vld [vmem:[%s9 + $0x218] sm:$0xff]
  %v104 = vld [vmem:[%s9 + $0x220] sm:$0xff]
  %v105 = vld [vmem:[%s9 + $0x228] sm:$0xff]
  %v106 = vld [vmem:[%s9 + $0x230] sm:$0xff]
  %v107 = vld [vmem:[%s9 + $0x238] sm:$0xff]
  %v108 = vld [vmem:[%s9 + $0x240] sm:$0xff]
  %v109 = vld [vmem:[%s9 + $0x248] sm:$0xff]
  %v110 = vld [vmem:[%s9 + $0x250] sm:$0xff]
  %v111 = vld [vmem:[%s9 + $0x258] sm:$0xff]
  %v112 = vld [vmem:[%s9 + $0x260] sm:$0xff]
  %v113 = vld [vmem:[%s9 + $0x268] sm:$0xff]
  %v114 = vld [vmem:[%s9 + $0x270] sm:$0xff]
  %v115 = vld [vmem:[%s9 + $0x278] sm:$0xff]
  %v116 = vld [vmem:[%s9 + $0x280] sm:$0xff]
  %v117 = vld [vmem:[%s9 + $0x288] sm:$0xff]
  %v118 = vld [vmem:[%s9 + $0x290] sm:$0xff]
  %v119 = vld [vmem:[%s9 + $0x298] sm:$0xff]
  %v120 = vld [vmem:[%s9 + $0x2a0] sm:$0xff]
  %v121 = vld [vmem:[%s9 + $0x2a8] sm:$0xff]
  %v122 = vld [vmem:[%s9 + $0x2b0] sm:$0xff]
  %v123 = vld [vmem:[%s9 + $0x2b8] sm:$0xff]
  %v124 = vld [vmem:[%s9 + $0x2c0] sm:$0xff]
  %v125 = vld [vmem:[%s9 + $0x2c8] sm:$0xff]
  %v126 = vld [vmem:[%s9 + $0x2d0] sm:$0xff]
  %v127 = vld [vmem:[%s9 + $0x2d8] sm:$0xff]
  %v128 = vld [vmem:[%s9 + $0x2e0] sm:$0xff]
  %v129 = vld [vmem:[%s9 + $0x2e8] sm:$0xff]
  %v130 = vld [vmem:[%s9 + $0x2f0] sm:$0xff]
  %v131 = vld [vmem:[%s9 + $0x2f8] sm:$0xff]
  %v132 = vld [vmem:[%s9 + $0x300] sm:$0xff]
  %v133 = vld [vmem:[%s9 + $0x308] sm:$0xff]
  %v134 = vld [vmem:[%s9 + $0x310] sm:$0xff]
  %v135 = vld [vmem:[%s9 + $0x318] sm:$0xff]
  %v136 = vld [vmem:[%s9 + $0x320] sm:$0xff]
  %v137 = vld [vmem:[%s9 + $0x328] sm:$0xff]
  %v138 = vld [vmem:[%s9 + $0x330] sm:$0xff]
  %v139 = vld [vmem:[%s9 + $0x338] sm:$0xff]
  %v140 = vld [vmem:[%s9 + $0x340] sm:$0xff]
  %v141 = vld [vmem:[%s9 + $0x348] sm:$0xff]
  %v142 = vld [vmem:[%s9 + $0x350] sm:$0xff]
  %v143 = vld [vmem:[%s9 + $0x358] sm:$0xff]
  %v144 = vld [vmem:[%s9 + $0x360] sm:$0xff]
  %v145 = vld [vmem:[%s9 + $0x368] sm:$0xff]
  %v146 = vld [vmem:[%s9 + $0x370] sm:$0xff]
  %v147 = vld [vmem:[%s9 + $0x378] sm:$0xff]
  %v148 = vld [vmem:[%s9 + $0x380] sm:$0xff]
  %v149 = vld [vmem:[%s9 + $0x388] sm:$0xff]
  %v150 = vld [vmem:[%s9 + $0x390] sm:$0xff]
  %v151 = vld [vmem:[%s9 + $0x398] sm:$0xff]
  %v152 = vld [vmem:[%s7] sm:$0xff]
  %v153 = vld [vmem:[%s7 + $0x8] sm:$0xff]
  %v154 = vld [vmem:[%s7 + $0x10] sm:$0xff]
  %v155 = vld [vmem:[%s7 + $0x18] sm:$0xff]
  %v156 = vld [vmem:[%s7 + $0x20] sm:$0xff]
  %v157 = vld [vmem:[%s7 + $0x28] sm:$0xff]
  %v158 = vld [vmem:[%s7 + $0x30] sm:$0xff]
  %v159 = vld [vmem:[%s7 + $0x38] sm:$0xff]
  %v160 = vld [vmem:[%s7 + $0x40] sm:$0xff]
  %v161 = vld [vmem:[%s7 + $0x48] sm:$0xff]
  %v162 = vld [vmem:[%s7 + $0x50] sm:$0xff]
  %v163 = vld [vmem:[%s7 + $0x58] sm:$0xff]
  %v164 = vld [vmem:[%s7 + $0x60] sm:$0xff]
  %v165 = vld [vmem:[%s7 + $0x68] sm:$0xff]
  %v166 = vld [vmem:[%s7 + $0x70] sm:$0xff]
  %v167 = vld [vmem:[%s7 + $0x78] sm:$0xff]
  %v168 = vld [vmem:[%s7 + $0x80] sm:$0xff]
  %v169 = vld [vmem:[%s7 + $0x88] sm:$0xff]
  %v170 = vld [vmem:[%s7 + $0x90] sm:$0xff]
  %v171 = vld [vmem:[%s7 + $0x98] sm:$0xff]
  %v172 = vld [vmem:[%s7 + $0xa0] sm:$0xff]
  %v173 = vld [vmem:[%s7 + $0xa8] sm:$0xff]
  %v174 = vld [vmem:[%s7 + $0xb0] sm:$0xff]
  %v175 = vld [vmem:[%s7 + $0xb8] sm:$0xff]
  %v176 = vld [vmem:[%s7 + $0xc0] sm:$0xff]
  %v177 = vld [vmem:[%s7 + $0xc8] sm:$0xff]
  %v178 = vld [vmem:[%s7 + $0xd0] sm:$0xff]
  %v179 = vld [vmem:[%s7 + $0xd8] sm:$0xff]
  %v180 = vld [vmem:[%s7 + $0xe0] sm:$0xff]
  %v181 = vld [vmem:[%s7 + $0xe8] sm:$0xff]
  %v182 = vld [vmem:[%s7 + $0xf0] sm:$0xff]
  %v183 = vld [vmem:[%s7 + $0xf8] sm:$0xff]
  %v184 = vld [vmem:[%s7 + $0x100] sm:$0xff]
  %v185 = vld [vmem:[%s7 + $0x108] sm:$0xff]
  %v186 = vld [vmem:[%s7 + $0x110] sm:$0xff]
  %v187 = vld [vmem:[%s7 + $0x118] sm:$0xff]
  %v188 = vld [vmem:[%s7 + $0x120] sm:$0xff]
  %v189 = vld [vmem:[%s7 + $0x128] sm:$0xff]
  %v190 = vld [vmem:[%s7 + $0x130] sm:$0xff]
  %v191 = vld [vmem:[%s7 + $0x138] sm:$0xff]
  %v192 = vld [vmem:[%s7 + $0x140] sm:$0xff]
  %v193 = vld [vmem:[%s7 + $0x148] sm:$0xff]
  %v194 = vld [vmem:[%s7 + $0x150] sm:$0xff]
  %v195 = vld [vmem:[%s7 + $0x158] sm:$0xff]
  %v196 = vld [vmem:[%s7 + $0x160] sm:$0xff]
  %v197 = vld [vmem:[%s7 + $0x168] sm:$0xff]
  %v198 = vld [vmem:[%s7 + $0x170] sm:$0xff]
  %v199 = vld [vmem:[%s7 + $0x178] sm:$0xff]
  %v200 = vld [vmem:[%s7 + $0x180] sm:$0xff]
  %v201 = vld [vmem:[%s7 + $0x188] sm:$0xff]
  %v202 = vld [vmem:[%s7 + $0x190] sm:$0xff]
  %v203 = vld [vmem:[%s7 + $0x198] sm:$0xff]
  %v204 = vld [vmem:[%s7 + $0x1a0] sm:$0xff]
  %v205 = vld [vmem:[%s7 + $0x1a8] sm:$0xff]
  %v206 = vld [vmem:[%s7 + $0x1b0] sm:$0xff]
  %v207 = vld [vmem:[%s7 + $0x1b8] sm:$0xff]
  %v208 = vld [vmem:[%s7 + $0x1c0] sm:$0xff]
  %v209 = vld [vmem:[%s7 + $0x1c8] sm:$0xff]
  %v210 = vld [vmem:[%s7 + $0x1d0] sm:$0xff]
  %v211 = vld [vmem:[%s7 + $0x1d8] sm:$0xff]
  %v212 = vld [vmem:[%s7 + $0x1e0] sm:$0xff]
  %v213 = vld [vmem:[%s7 + $0x1e8] sm:$0xff]
  %v214 = vld [vmem:[%s7 + $0x1f0] sm:$0xff]
  %v215 = vld [vmem:[%s7 + $0x1f8] sm:$0xff]
  %v216 = vld [vmem:[%s7 + $0x200] sm:$0xff]
  %v217 = vld [vmem:[%s7 + $0x208] sm:$0xff]
  %v218 = vld [vmem:[%s7 + $0x210] sm:$0xff]
  %v219 = vld [vmem:[%s7 + $0x218] sm:$0xff]
  %v220 = vld [vmem:[%s7 + $0x220] sm:$0xff]
  %v221 = vld [vmem:[%s7 + $0x228] sm:$0xff]
  %v222 = vld [vmem:[%s7 + $0x230] sm:$0xff]
  %v223 = vld [vmem:[%s7 + $0x238] sm:$0xff]
  %v224 = vld [vmem:[%s7 + $0x240] sm:$0xff]
  %v225 = vld [vmem:[%s7 + $0x248] sm:$0xff]
  %v226 = vld [vmem:[%s7 + $0x250] sm:$0xff]
  %v227 = vld [vmem:[%s7 + $0x258] sm:$0xff]
  %v228 = vld [vmem:[%s7 + $0x260] sm:$0xff]
  %v229 = vld [vmem:[%s7 + $0x268] sm:$0xff]
  %v230 = vld [vmem:[%s7 + $0x270] sm:$0xff]
  %v231 = vld [vmem:[%s7 + $0x278] sm:$0xff]
  %v232 = vld [vmem:[%s7 + $0x280] sm:$0xff]
  %v233 = vld [vmem:[%s7 + $0x288] sm:$0xff]
  %v234 = vld [vmem:[%s7 + $0x290] sm:$0xff]
  %v235 = vld [vmem:[%s7 + $0x298] sm:$0xff]
  %v236 = vld [vmem:[%s8] sm:$0xff]
  %v237 = vld [vmem:[%s8 + $0x8] sm:$0xff]
  %v238 = vld [vmem:[%s8 + $0x10] sm:$0xf]
  %v239 = vld [vmem:[%s8 + $0x14] sm:$0xff]
  %v240 = vld [vmem:[%s8 + $0x1c] sm:$0xff]
  %v241 = vld [vmem:[%s8 + $0x24] sm:$0xf]
  %v242 = vld [vmem:[%s8 + $0x28] sm:$0xff]
  %v243 = vld [vmem:[%s8 + $0x30] sm:$0xff]
  %v244 = vld [vmem:[%s8 + $0x38] sm:$0xf]
  %v245 = vld [vmem:[%s8 + $0x3c] sm:$0xff]
  %v246 = vld [vmem:[%s8 + $0x44] sm:$0xff]
  %v247 = vld [vmem:[%s8 + $0x4c] sm:$0xf]
  %v248 = vld [vmem:[%s8 + $0x50] sm:$0xff]
  %v249 = vld [vmem:[%s8 + $0x58] sm:$0xff]
  %v250 = vld [vmem:[%s8 + $0x60] sm:$0xf]
  %v251 = vld [vmem:[%s8 + $0x64] sm:$0xff]
  %v252 = vld [vmem:[%s8 + $0x6c] sm:$0xff]
  %v253 = vld [vmem:[%s8 + $0x74] sm:$0xf]
  %v254 = vld [vmem:[%s8 + $0x78] sm:$0xff]
  %v255 = vld [vmem:[%s8 + $0x80] sm:$0xff]
  %v256 = vld [vmem:[%s8 + $0x88] sm:$0xf]
  %v257 = vld [vmem:[%s8 + $0x8c] sm:$0xff]
  %v258 = vld [vmem:[%s8 + $0x94] sm:$0xff]
  %v259 = vld [vmem:[%s8 + $0x9c] sm:$0xf]
  %v260 = vld [vmem:[%s1] sm:$0xf]
  %v261 = vld [vmem:[%s2] sm:$0x3]
  %v262 = vld [vmem:[%s0] sm:$0x3]
  %v263 = vld [vmem:[%s3] sm:$0xf]
  %v264 = vld [vmem:[%s3 + $0x4] sm:$0xf]
  %v266 = vlaneseq
  %v267 = vshrl.u32 %v266, 7
  %v268 = vsub.s32 0, %v267
  %v269 = vrot.slane %v262, %v268
  %v270 = vlaneseq
  %v271 = vshrl.u32 %v270, 7
  %v272 = vsub.s32 1, %v271
  %v273 = vrot.slane %v262, %v272
  %276 = vrot.lane.b32.xlu0 %v269, 1
  %v277 = vpop.permute.xlu0 %276
  %278 = vrot.lane.b32.xlu0 %v273, 1
  %v279 = vpop.permute.xlu0 %278
  %v280 = vlaneseq
  %v281 = vand.u32 %v280, 127
  %vm282 = vcmp.lt.s32.totalorder %v281, 1
  %v283 = vsel %vm282, %v277, %v279
  %v284 = vsel %vm282, %v279, %v277
  %v286 = vlaneseq
  %v287 = vshrl.u32 %v286, 7
  %v288 = vsub.s32 0, %v287
  %v289 = vrot.slane %v260, %v288
  %v290 = vlaneseq
  %v291 = vshrl.u32 %v290, 7
  %v292 = vsub.s32 2, %v291
  %v293 = vrot.slane %v260, %v292
  %v296 = vmul.f32 %v284, %v289
  %v297 = vmul.f32 %v283, %v293
  %298 = vrot.lane.b32.xlu0 %v269, 127
  %v299 = vpop.permute.xlu0 %298
  %300 = vrot.lane.b32.xlu0 %v273, 127
  %v301 = vpop.permute.xlu0 %300
  %vm302 = vcmp.lt.s32.totalorder %v281, 127
  %v303 = vsel %vm302, %v299, %v301
  %v304 = vsel %vm302, %v301, %v299
  %v305 = vlaneseq
  %v306 = vshrl.u32 %v305, 7
  %v307 = vsub.s32 1, %v306
  %v308 = vrot.slane %v260, %v307
  %v309 = vlaneseq
  %v310 = vshrl.u32 %v309, 7
  %v311 = vsub.s32 3, %v310
  %v312 = vrot.slane %v260, %v311
  %v315 = vmul.f32 %v303, %v308
  %v316 = vmul.f32 %v304, %v312
  %v319 = vrot.slane %v315, 6
  %v320 = vrot.slane %v316, 6
  %vm323 = vcmask 1040384
  %v324 = vsel %vm323, %v296, %v269
  %v325 = vsel %vm323, %v297, %v273
  %vm326 = vcmask 1041408
  %v327 = vsel %vm326, %v324, %v319
  %v328 = vsel %vm326, %v325, %v320
  %v329 = vpack.c.bf16 %v327, %v327
  %v330 = vpack.c.bf16 %v328, %v328
  %332 = vset.pattern.permute.xlu0 0
  %333 = vperm.xlu0 %332, %v36
  %v334 = vpop.permute.xlu0 %333
  %337 = vset.pattern.permute.xlu0 0
  %338 = vperm.xlu0 %337, %v37
  %v339 = vpop.permute.xlu0 %338
  %v343 = vunpack.c.l.b16 %v263
  %v344 = vunpack.c.l.b16 %v264
  %v345 = vpack.c.b16 %v344, %v343
  %vm346 = vcmask 23552
  %v348 = vsel %vm346, %v345, 0
  %v350 = vsel %vm323, 4294967295, 65535
  %v351 = vsel %vm326, %v350, 0
  %v353 = vand.u32 %v329, %v351
  %v356 = vand.u32 %v330, %v351
  %358 = vmatprep.subr.bf16.mxu0 %v356
  %359 = vmatpush1.bf16.msra.mxu0 %v353
  %360 = vmatprep.subr.bf16.mxu0 0
  %361 = vmatpush1.bf16.msra.mxu0 0
  %362 = vmatprep.subr.bf16.mxu0 0
  %363 = vmatpush1.bf16.msra.mxu0 0
  %364 = vmatprep.subr.bf16.mxu0 0
  %365 = vmatpush1.bf16.msra.mxu0 0
  %366 = vmatprep.subr.bf16.mxu0 0
  %367 = vmatpush1.bf16.msra.mxu0 0
  %368 = vmatprep.subr.bf16.mxu0 0
  %369 = vmatpush1.bf16.msra.mxu0 0
  %370 = vmatprep.subr.bf16.mxu0 0
  %371 = vmatpush1.bf16.msra.mxu0 0
  %372 = vmatprep.subr.bf16.mxu0 0
  %373 = vmatpush1.bf16.msra.mxu0 0
  %374 = vmatprep.subr.bf16.mxu0 0
  %375 = vmatpush1.bf16.msra.mxu0 0
  %376 = vmatprep.subr.bf16.mxu0 0
  %377 = vmatpush1.bf16.msra.mxu0 0
  %378 = vmatprep.subr.bf16.mxu0 0
  %379 = vmatpush1.bf16.msra.mxu0 0
  %380 = vmatprep.subr.bf16.mxu0 0
  %381 = vmatpush1.bf16.msra.mxu0 0
  %382 = vmatprep.subr.bf16.mxu0 0
  %383 = vmatpush1.bf16.msra.mxu0 0
  %384 = vmatprep.subr.bf16.mxu0 0
  %385 = vmatpush1.bf16.msra.mxu0 0
  %386 = vmatprep.subr.bf16.mxu0 0
  %387 = vmatpush1.bf16.msra.mxu0 0
  %388 = vmatprep.subr.bf16.mxu0 0
  %389 = vmatpush1.bf16.msra.mxu0 0
  %390 = vmatprep.mubr.bf16.mxu0 0
  %391 = vmatmul.mubr.bf16.gmra.mrb[0].mxu0 %v348
  %v392 = vpop.f32.mrb[0].mxu0
  %v393 = vadd.f32 %v334, %v392
  %v394 = vpop.f32.mrb[0].mxu0
  %v395 = vadd.f32 %v334, %v394
  %v396 = vpop.f32.mrb[0].mxu0
  %v397 = vadd.f32 %v339, %v396
  %v398 = vpop.f32.mrb[0].mxu0
  %v399 = vadd.f32 %v339, %v398
  %400 = vdwg.mxu0
  %v401 = vadd.f32 %v393, %v395
  %402 = vadd.xlane.f32.xlu0 %v401
  %v403 = vpop.xlane.xlu0 %402
  %v404 = vadd.f32 %v397, %v399
  %405 = vadd.xlane.f32.xlu0 %v404
  %v406 = vpop.xlane.xlu0 %405
  %v407 = vmul.f32 %v393, %v393
  %v408 = vmul.f32 %v395, %v395
  %v409 = vmul.f32 %v397, %v397
  %v410 = vmul.f32 %v399, %v399
  %v411 = vadd.f32 %v407, %v408
  %412 = vadd.xlane.f32.xlu0 %v411
  %v413 = vpop.xlane.xlu0 %412
  %v414 = vadd.f32 %v409, %v410
  %415 = vadd.xlane.f32.xlu0 %v414
  %v416 = vpop.xlane.xlu0 %415
  %v417 = vmul.f32 %v403, 0.00390625
  %v418 = vmul.f32 %v406, 0.00390625
  %v419 = vmul.f32 %v413, 0.00390625
  %v420 = vmul.f32 %v416, 0.00390625
  %v421 = vmul.f32 %v417, %v417
  %v422 = vmul.f32 %v418, %v418
  %v423 = vsub.f32 %v419, %v421
  %v424 = vsub.f32 %v420, %v422
  %v425 = vmax.f32 %v423, 0.0
  %v426 = vmax.f32 %v424, 0.0
  %v427 = vsub.f32 %v393, %v417
  %v428 = vsub.f32 %v395, %v417
  %v429 = vsub.f32 %v397, %v418
  %v430 = vsub.f32 %v399, %v418
  %v431 = vadd.f32 %v425, 1e-05
  %v432 = vadd.f32 %v426, 1e-05
  %v433 = vrsqrt.pop %v431
  %v434 = vrsqrt.pop %v432
  %v435 = vmul.f32 %v427, %v433
  %v436 = vmul.f32 %v428, %v433
  %v437 = vmul.f32 %v429, %v434
  %v438 = vmul.f32 %v430, %v434
  %440 = vset.pattern.permute.xlu0 0
  %441 = vperm.xlu0 %440, %v38
  %v442 = vpop.permute.xlu0 %441
  %445 = vset.pattern.permute.xlu0 0
  %446 = vperm.xlu0 %445, %v39
  %v447 = vpop.permute.xlu0 %446
  %v449 = vmul.f32 %v435, %v442
  %v450 = vmul.f32 %v436, %v442
  %v451 = vmul.f32 %v437, %v447
  %v452 = vmul.f32 %v438, %v447
  %454 = vset.pattern.permute.xlu0 0
  %455 = vperm.xlu0 %454, %v40
  %v456 = vpop.permute.xlu0 %455
  %459 = vset.pattern.permute.xlu0 0
  %460 = vperm.xlu0 %459, %v41
  %v461 = vpop.permute.xlu0 %460
  %v463 = vadd.f32 %v449, %v456
  %v464 = vadd.f32 %v450, %v456
  %v465 = vadd.f32 %v451, %v461
  %v466 = vadd.f32 %v452, %v461
  %vm467 = vcmp.ge.f32.partialorder %v463, 0.0
  %vm468 = vcmp.ge.f32.partialorder %v464, 0.0
  %vm469 = vcmp.ge.f32.partialorder %v465, 0.0
  %vm470 = vcmp.ge.f32.partialorder %v466, 0.0
  %v471 = vmul.f32 %v463, 0.3
  %v472 = vmul.f32 %v464, 0.3
  %v473 = vmul.f32 %v465, 0.3
  %v474 = vmul.f32 %v466, 0.3
  %v475 = vsel %vm467, %v463, %v471
  %v476 = vsel %vm468, %v464, %v472
  %v477 = vsel %vm469, %v465, %v473
  %v478 = vsel %vm470, %v466, %v474
  %v479 = vld [vmem:[%s4] sm:$0xf]
  %v480 = vld [vmem:[%s4 + $0x4] sm:$0xf]
  %481 = vrot.lane.b32.xlu0 %v475, 1
  %v482 = vpop.permute.xlu0 %481
  %483 = vrot.lane.b32.xlu0 %v477, 1
  %v484 = vpop.permute.xlu0 %483
  %485 = vrot.lane.b32.xlu0 %v476, 1
  %v486 = vpop.permute.xlu0 %485
  %487 = vrot.lane.b32.xlu0 %v478, 1
  %v488 = vpop.permute.xlu0 %487
  %v489 = vsel %vm282, %v482, %v486
  %v490 = vsel %vm282, %v484, %v488
  %v491 = vsel %vm282, %v486, %v482
  %v492 = vsel %vm282, %v488, %v484
  %v493 = vlaneseq
  %v494 = vshrl.u32 %v493, 7
  %v495 = vsub.s32 0, %v494
  %v496 = vrot.slane %v289, %v495
  %v497 = vlaneseq
  %v498 = vshrl.u32 %v497, 7
  %v499 = vsub.s32 0, %v498
  %v500 = vrot.slane %v293, %v499
  %v501 = vmul.f32 %v491, %v496
  %v502 = vmul.f32 %v489, %v500
  %v503 = vmul.f32 %v492, %v496
  %v504 = vmul.f32 %v490, %v500
  %505 = vrot.lane.b32.xlu0 %v475, 127
  %v506 = vpop.permute.xlu0 %505
  %507 = vrot.lane.b32.xlu0 %v477, 127
  %v508 = vpop.permute.xlu0 %507
  %509 = vrot.lane.b32.xlu0 %v476, 127
  %v510 = vpop.permute.xlu0 %509
  %511 = vrot.lane.b32.xlu0 %v478, 127
  %v512 = vpop.permute.xlu0 %511
  %v513 = vsel %vm302, %v506, %v510
  %v514 = vsel %vm302, %v508, %v512
  %v515 = vsel %vm302, %v510, %v506
  %v516 = vsel %vm302, %v512, %v508
  %v517 = vlaneseq
  %v518 = vshrl.u32 %v517, 7
  %v519 = vsub.s32 1, %v518
  %v520 = vrot.slane %v308, %v519
  %v521 = vlaneseq
  %v522 = vshrl.u32 %v521, 7
  %v523 = vsub.s32 1, %v522
  %v524 = vrot.slane %v312, %v523
  %v525 = vmul.f32 %v513, %v520
  %v526 = vmul.f32 %v515, %v524
  %v527 = vmul.f32 %v514, %v520
  %v528 = vmul.f32 %v516, %v524
  %v529 = vpack.c.bf16 %v503, %v501
  %v530 = vpack.c.bf16 %v504, %v502
  %v531 = vpack.c.bf16 %v477, %v475
  %v532 = vpack.c.bf16 %v478, %v476
  %v533 = vpack.c.bf16 %v527, %v525
  %v534 = vpack.c.bf16 %v528, %v526
  %536 = vset.pattern.permute.xlu0 0
  %537 = vperm.xlu0 %536, %v42
  %v538 = vpop.permute.xlu0 %537
  %541 = vset.pattern.permute.xlu0 0
  %542 = vperm.xlu0 %541, %v43
  %v543 = vpop.permute.xlu0 %542
  %v547 = vunpack.c.l.b16 %v479
  %v548 = vunpack.c.l.b16 %v480
  %v549 = vpack.c.b16 %v548, %v547
  %vm550 = vcmask 392192
  %v552 = vsel %vm550, %v549, 0
  %554 = vmatprep.subr.bf16.mxu0 %v530
  %555 = vmatpush1.bf16.msra.mxu0 %v529
  %556 = vmatprep.subr.bf16.mxu0 %v532
  %557 = vmatpush1.bf16.msra.mxu0 %v531
  %558 = vmatprep.subr.bf16.mxu0 %v534
  %559 = vmatpush1.bf16.msra.mxu0 %v533
  %560 = vmatprep.subr.bf16.mxu0 0
  %561 = vmatpush1.bf16.msra.mxu0 0
  %562 = vmatprep.subr.bf16.mxu0 0
  %563 = vmatpush1.bf16.msra.mxu0 0
  %564 = vmatprep.subr.bf16.mxu0 0
  %565 = vmatpush1.bf16.msra.mxu0 0
  %566 = vmatprep.subr.bf16.mxu0 0
  %567 = vmatpush1.bf16.msra.mxu0 0
  %568 = vmatprep.subr.bf16.mxu0 0
  %569 = vmatpush1.bf16.msra.mxu0 0
  %570 = vmatprep.subr.bf16.mxu0 0
  %571 = vmatpush1.bf16.msra.mxu0 0
  %572 = vmatprep.subr.bf16.mxu0 0
  %573 = vmatpush1.bf16.msra.mxu0 0
  %574 = vmatprep.subr.bf16.mxu0 0
  %575 = vmatpush1.bf16.msra.mxu0 0
  %576 = vmatprep.subr.bf16.mxu0 0
  %577 = vmatpush1.bf16.msra.mxu0 0
  %578 = vmatprep.subr.bf16.mxu0 0
  %579 = vmatpush1.bf16.msra.mxu0 0
  %580 = vmatprep.subr.bf16.mxu0 0
  %581 = vmatpush1.bf16.msra.mxu0 0
  %582 = vmatprep.subr.bf16.mxu0 0
  %583 = vmatpush1.bf16.msra.mxu0 0
  %584 = vmatprep.subr.bf16.mxu0 0
  %585 = vmatpush1.bf16.msra.mxu0 0
  %586 = vmatprep.mubr.bf16.mxu0 0
  %587 = vmatmul.mubr.bf16.gmra.mrb[0].mxu0 %v552
  %v588 = vpop.f32.mrb[0].mxu0
  %v589 = vadd.f32 %v538, %v588
  %v590 = vpop.f32.mrb[0].mxu0
  %v591 = vadd.f32 %v538, %v590
  %v592 = vpop.f32.mrb[0].mxu0
  %v593 = vadd.f32 %v543, %v592
  %v594 = vpop.f32.mrb[0].mxu0
  %v595 = vadd.f32 %v543, %v594
  %596 = vdwg.mxu0
  %v597 = vadd.f32 %v589, %v591
  %598 = vadd.xlane.f32.xlu0 %v597
  %v599 = vpop.xlane.xlu0 %598
  %v600 = vadd.f32 %v593, %v595
  %601 = vadd.xlane.f32.xlu0 %v600
  %v602 = vpop.xlane.xlu0 %601
  %v603 = vmul.f32 %v589, %v589
  %v604 = vmul.f32 %v591, %v591
  %v605 = vmul.f32 %v593, %v593
  %v606 = vmul.f32 %v595, %v595
  %v607 = vadd.f32 %v603, %v604
  %608 = vadd.xlane.f32.xlu0 %v607
  %v609 = vpop.xlane.xlu0 %608
  %v610 = vadd.f32 %v605, %v606
  %611 = vadd.xlane.f32.xlu0 %v610
  %v612 = vpop.xlane.xlu0 %611
  %v613 = vmul.f32 %v599, 0.00390625
  %v614 = vmul.f32 %v602, 0.00390625
  %v615 = vmul.f32 %v609, 0.00390625
  %v616 = vmul.f32 %v612, 0.00390625
  %v617 = vmul.f32 %v613, %v613
  %v618 = vmul.f32 %v614, %v614
  %v619 = vsub.f32 %v615, %v617
  %v620 = vsub.f32 %v616, %v618
  %v621 = vmax.f32 %v619, 0.0
  %v622 = vmax.f32 %v620, 0.0
  %v623 = vsub.f32 %v589, %v613
  %v624 = vsub.f32 %v591, %v613
  %v625 = vsub.f32 %v593, %v614
  %v626 = vsub.f32 %v595, %v614
  %v627 = vadd.f32 %v621, 1e-05
  %v628 = vadd.f32 %v622, 1e-05
  %v629 = vrsqrt.pop %v627
  %v630 = vrsqrt.pop %v628
  %v631 = vmul.f32 %v623, %v629
  %v632 = vmul.f32 %v624, %v629
  %v633 = vmul.f32 %v625, %v630
  %v634 = vmul.f32 %v626, %v630
  %636 = vset.pattern.permute.xlu0 0
  %637 = vperm.xlu0 %636, %v44
  %v638 = vpop.permute.xlu0 %637
  %641 = vset.pattern.permute.xlu0 0
  %642 = vperm.xlu0 %641, %v45
  %v643 = vpop.permute.xlu0 %642
  %v645 = vmul.f32 %v631, %v638
  %v646 = vmul.f32 %v632, %v638
  %v647 = vmul.f32 %v633, %v643
  %v648 = vmul.f32 %v634, %v643
  %650 = vset.pattern.permute.xlu0 0
  %651 = vperm.xlu0 %650, %v46
  %v652 = vpop.permute.xlu0 %651
  %655 = vset.pattern.permute.xlu0 0
  %656 = vperm.xlu0 %655, %v47
  %v657 = vpop.permute.xlu0 %656
  %v659 = vadd.f32 %v645, %v652
  %v660 = vadd.f32 %v646, %v652
  %v661 = vadd.f32 %v647, %v657
  %v662 = vadd.f32 %v648, %v657
  %vm663 = vcmp.ge.f32.partialorder %v659, 0.0
  %vm664 = vcmp.ge.f32.partialorder %v660, 0.0
  %vm665 = vcmp.ge.f32.partialorder %v661, 0.0
  %vm666 = vcmp.ge.f32.partialorder %v662, 0.0
  %v667 = vmul.f32 %v659, 0.3
  %v668 = vmul.f32 %v660, 0.3
  %v669 = vmul.f32 %v661, 0.3
  %v670 = vmul.f32 %v662, 0.3
  %v671 = vsel %vm663, %v659, %v667
  %v672 = vsel %vm664, %v660, %v668
  %v673 = vsel %vm665, %v661, %v669
  %v674 = vsel %vm666, %v662, %v670
  %675 = vrot.lane.b32.xlu0 %v671, 127
  %v676 = vpop.permute.xlu0 %675
  %677 = vrot.lane.b32.xlu0 %v673, 127
  %v678 = vpop.permute.xlu0 %677
  %679 = vrot.lane.b32.xlu0 %v672, 127
  %v680 = vpop.permute.xlu0 %679
  %681 = vrot.lane.b32.xlu0 %v674, 127
  %v682 = vpop.permute.xlu0 %681
  %v683 = vsel %vm302, %v676, %v680
  %v684 = vsel %vm302, %v678, %v682
  %v685 = vsel %vm302, %v680, %v676
  %v686 = vsel %vm302, %v682, %v678
  %v687 = vmax.f32 %v671, %v683
  %v688 = vmax.f32 %v672, %v685
  %v689 = vmax.f32 %v673, %v684
  %v690 = vmax.f32 %v674, %v686
  %691 = vxpose.xlu0.b32.start [1/16] %v687, 128
  %692 = vxpose.xlu0.b32.cont [2/16] %v689, 128
  %693 = vxpose.xlu0.b32.cont [3/16] 0.0, 128
  %694 = vxpose.xlu0.b32.cont [4/16] 0.0, 128
  %695 = vxpose.xlu0.b32.cont [5/16] 0.0, 128
  %696 = vxpose.xlu0.b32.cont [6/16] 0.0, 128
  %697 = vxpose.xlu0.b32.cont [7/16] 0.0, 128
  %698 = vxpose.xlu0.b32.cont [8/16] 0.0, 128
  %699 = vxpose.xlu0.b32.cont [9/16] 0.0, 128
  %700 = vxpose.xlu0.b32.cont [10/16] 0.0, 128
  %701 = vxpose.xlu0.b32.cont [11/16] 0.0, 128
  %702 = vxpose.xlu0.b32.cont [12/16] 0.0, 128
  %703 = vxpose.xlu0.b32.cont [13/16] 0.0, 128
  %704 = vxpose.xlu0.b32.cont [14/16] 0.0, 128
  %705 = vxpose.xlu0.b32.cont [15/16] 0.0, 128
  %706 = vxpose.xlu0.b32.end [16/16] 0.0, 128
  %v707 = vpop.trf.xlu0
  %v708 = vpop.trf.xlu0
  %v709 = vpop.trf.xlu0
  %v710 = vpop.trf.xlu0
  %v711 = vpop.trf.xlu0
  %v712 = vpop.trf.xlu0
  %v713 = vpop.trf.xlu0
  %v714 = vpop.trf.xlu0
  %v715 = vpop.trf.xlu0
  %v716 = vpop.trf.xlu0
  %v717 = vpop.trf.xlu0
  %v718 = vpop.trf.xlu0
  %v719 = vpop.trf.xlu0
  %v720 = vpop.trf.xlu0
  %v721 = vpop.trf.xlu0
  %v722 = vpop.trf.xlu0
  %723 = vxpose.xlu0.b32.start [1/16] %v688, 128
  %724 = vxpose.xlu0.b32.cont [2/16] %v690, 128
  %725 = vxpose.xlu0.b32.cont [3/16] 0.0, 128
  %726 = vxpose.xlu0.b32.cont [4/16] 0.0, 128
  %727 = vxpose.xlu0.b32.cont [5/16] 0.0, 128
  %728 = vxpose.xlu0.b32.cont [6/16] 0.0, 128
  %729 = vxpose.xlu0.b32.cont [7/16] 0.0, 128
  %730 = vxpose.xlu0.b32.cont [8/16] 0.0, 128
  %731 = vxpose.xlu0.b32.cont [9/16] 0.0, 128
  %732 = vxpose.xlu0.b32.cont [10/16] 0.0, 128
  %733 = vxpose.xlu0.b32.cont [11/16] 0.0, 128
  %734 = vxpose.xlu0.b32.cont [12/16] 0.0, 128
  %735 = vxpose.xlu0.b32.cont [13/16] 0.0, 128
  %736 = vxpose.xlu0.b32.cont [14/16] 0.0, 128
  %737 = vxpose.xlu0.b32.cont [15/16] 0.0, 128
  %738 = vxpose.xlu0.b32.end [16/16] 0.0, 128
  %v739 = vpop.trf.xlu0
  %v740 = vpop.trf.xlu0
  %v741 = vpop.trf.xlu0
  %v742 = vpop.trf.xlu0
  %v743 = vpop.trf.xlu0
  %v744 = vpop.trf.xlu0
  %v745 = vpop.trf.xlu0
  %v746 = vpop.trf.xlu0
  %v747 = vpop.trf.xlu0
  %v748 = vpop.trf.xlu0
  %v749 = vpop.trf.xlu0
  %v750 = vpop.trf.xlu0
  %v751 = vpop.trf.xlu0
  %v752 = vpop.trf.xlu0
  %v753 = vpop.trf.xlu0
  %v754 = vpop.trf.xlu0
  %vm755 = vcmask 130048
  %756 = vst.msk [vmem:[#allocation2] sm:$0xff] %vm755, %v707
  %757 = vst.msk [vmem:[#allocation2 + $0x8] sm:$0xff] %vm755, %v708
  %758 = vst.msk [vmem:[#allocation2 + $0x10] sm:$0xff] %vm755, %v709
  %759 = vst.msk [vmem:[#allocation2 + $0x18] sm:$0xff] %vm755, %v710
  %760 = vst.msk [vmem:[#allocation2 + $0x20] sm:$0xff] %vm755, %v711
  %761 = vst.msk [vmem:[#allocation2 + $0x28] sm:$0xff] %vm755, %v712
  %762 = vst.msk [vmem:[#allocation2 + $0x30] sm:$0xff] %vm755, %v713
  %763 = vst.msk [vmem:[#allocation2 + $0x38] sm:$0xff] %vm755, %v714
  %764 = vst.msk [vmem:[#allocation2 + $0x40] sm:$0xff] %vm755, %v715
  %765 = vst.msk [vmem:[#allocation2 + $0x48] sm:$0xff] %vm755, %v716
  %766 = vst.msk [vmem:[#allocation2 + $0x50] sm:$0xff] %vm755, %v717
  %767 = vst.msk [vmem:[#allocation2 + $0x58] sm:$0xff] %vm755, %v718
  %768 = vst.msk [vmem:[#allocation2 + $0x60] sm:$0xff] %vm755, %v719
  %769 = vst.msk [vmem:[#allocation2 + $0x68] sm:$0xff] %vm755, %v720
  %770 = vst.msk [vmem:[#allocation2 + $0x70] sm:$0xff] %vm755, %v721
  %771 = vst.msk [vmem:[#allocation2 + $0x78] sm:$0xff] %vm755, %v722
  %772 = vst.msk [vmem:[#allocation2 + $0x80] sm:$0xff] %vm755, %v739
  %773 = vst.msk [vmem:[#allocation2 + $0x88] sm:$0xff] %vm755, %v740
  %774 = vst.msk [vmem:[#allocation2 + $0x90] sm:$0xff] %vm755, %v741
  %775 = vst.msk [vmem:[#allocation2 + $0x98] sm:$0xff] %vm755, %v742
  %776 = vst.msk [vmem:[#allocation2 + $0xa0] sm:$0xff] %vm755, %v743
  %777 = vst.msk [vmem:[#allocation2 + $0xa8] sm:$0xff] %vm755, %v744
  %778 = vst.msk [vmem:[#allocation2 + $0xb0] sm:$0xff] %vm755, %v745
  %779 = vst.msk [vmem:[#allocation2 + $0xb8] sm:$0xff] %vm755, %v746
  %780 = vst.msk [vmem:[#allocation2 + $0xc0] sm:$0xff] %vm755, %v747
  %781 = vst.msk [vmem:[#allocation2 + $0xc8] sm:$0xff] %vm755, %v748
  %782 = vst.msk [vmem:[#allocation2 + $0xd0] sm:$0xff] %vm755, %v749
  %783 = vst.msk [vmem:[#allocation2 + $0xd8] sm:$0xff] %vm755, %v750
  %784 = vst.msk [vmem:[#allocation2 + $0xe0] sm:$0xff] %vm755, %v751
  %785 = vst.msk [vmem:[#allocation2 + $0xe8] sm:$0xff] %vm755, %v752
  %786 = vst.msk [vmem:[#allocation2 + $0xf0] sm:$0xff] %vm755, %v753
  %787 = vst.msk [vmem:[#allocation2 + $0xf8] sm:$0xff] %vm755, %v754
  %v788 = vld [vmem:[#allocation2] ss:$2 sm:$0xff]
  %s789 = scalar_lea.vmem [#allocation2], 16
  %v790 = vld [vmem:[%s789] ss:$2 sm:$0xff]
  %s791 = scalar_lea.vmem [#allocation2], 32
  %v792 = vld [vmem:[%s791] ss:$2 sm:$0xff]
  %s793 = scalar_lea.vmem [#allocation2], 48
  %v794 = vld [vmem:[%s793] ss:$2 sm:$0xff]
  %s795 = scalar_lea.vmem [#allocation2], 64
  %v796 = vld [vmem:[%s795] ss:$2 sm:$0xff]
  %s797 = scalar_lea.vmem [#allocation2], 80
  %v798 = vld [vmem:[%s797] ss:$2 sm:$0xff]
  %s799 = scalar_lea.vmem [#allocation2], 96
  %v800 = vld [vmem:[%s799] ss:$2 sm:$0xff]
  %s801 = scalar_lea.vmem [#allocation2], 112
  %v802 = vld [vmem:[%s801] ss:$2 sm:$0xff]
  %s803 = scalar_lea.vmem [#allocation2], 128
  %v804 = vld [vmem:[%s803] ss:$2 sm:$0xff]
  %s805 = scalar_lea.vmem [#allocation2], 144
  %v806 = vld [vmem:[%s805] ss:$2 sm:$0xff]
  %s807 = scalar_lea.vmem [#allocation2], 160
  %v808 = vld [vmem:[%s807] ss:$2 sm:$0xff]
  %s809 = scalar_lea.vmem [#allocation2], 176
  %v810 = vld [vmem:[%s809] ss:$2 sm:$0xff]
  %s811 = scalar_lea.vmem [#allocation2], 192
  %v812 = vld [vmem:[%s811] ss:$2 sm:$0xff]
  %s813 = scalar_lea.vmem [#allocation2], 208
  %v814 = vld [vmem:[%s813] ss:$2 sm:$0xff]
  %s815 = scalar_lea.vmem [#allocation2], 224
  %v816 = vld [vmem:[%s815] ss:$2 sm:$0xff]
  %s817 = scalar_lea.vmem [#allocation2], 240
  %v818 = vld [vmem:[%s817] ss:$2 sm:$0xff]
  %819 = vxpose.xlu0.b32.start [1/16] %v788, 128
  %820 = vxpose.xlu0.b32.cont [2/16] %v790, 128
  %821 = vxpose.xlu0.b32.cont [3/16] %v792, 128
  %822 = vxpose.xlu0.b32.cont [4/16] %v794, 128
  %823 = vxpose.xlu0.b32.cont [5/16] %v796, 128
  %824 = vxpose.xlu0.b32.cont [6/16] %v798, 128
  %825 = vxpose.xlu0.b32.cont [7/16] %v800, 128
  %826 = vxpose.xlu0.b32.cont [8/16] %v802, 128
  %827 = vxpose.xlu0.b32.cont [9/16] %v804, 128
  %828 = vxpose.xlu0.b32.cont [10/16] %v806, 128
  %829 = vxpose.xlu0.b32.cont [11/16] %v808, 128
  %830 = vxpose.xlu0.b32.cont [12/16] %v810, 128
  %831 = vxpose.xlu0.b32.cont [13/16] %v812, 128
  %832 = vxpose.xlu0.b32.cont [14/16] %v814, 128
  %833 = vxpose.xlu0.b32.cont [15/16] %v816, 128
  %834 = vxpose.xlu0.b32.end [16/16] %v818, 128
  %v835 = vpop.trf.xlu0
  %v836 = vpop.trf.xlu0
  %v837 = vpop.trf.xlu0
  %v838 = vpop.trf.xlu0
  %v839 = vpop.trf.xlu0
  %v840 = vpop.trf.xlu0
  %v841 = vpop.trf.xlu0
  %v842 = vpop.trf.xlu0
  %v843 = vpop.trf.xlu0
  %v844 = vpop.trf.xlu0
  %v845 = vpop.trf.xlu0
  %v846 = vpop.trf.xlu0
  %v847 = vpop.trf.xlu0
  %v848 = vpop.trf.xlu0
  %v849 = vpop.trf.xlu0
  %v850 = vpop.trf.xlu0
  %v851 = vld [vmem:[%s5] sm:$0xf]
  %v852 = vld [vmem:[%s5 + $0x4] sm:$0xf]
  %v853 = vld [vmem:[%s5 + $0x8] sm:$0xf]
  %v854 = vld [vmem:[%s5 + $0xc] sm:$0xf]
  %855 = vrot.lane.b32.xlu0 %v835, 1
  %v856 = vpop.permute.xlu0 %855
  %857 = vrot.lane.b32.xlu0 %v836, 1
  %v858 = vpop.permute.xlu0 %857
  %v859 = vlaneseq
  %v860 = vshrl.u32 %v859, 7
  %v861 = vsub.s32 0, %v860
  %v862 = vrot.slane %v261, %v861
  %v863 = vmul.f32 %v856, %v862
  %v864 = vmul.f32 %v858, %v862
  %865 = vrot.lane.b32.xlu0 %v835, 127
  %v866 = vpop.permute.xlu0 %865
  %867 = vrot.lane.b32.xlu0 %v836, 127
  %v868 = vpop.permute.xlu0 %867
  %v869 = vlaneseq
  %v870 = vshrl.u32 %v869, 7
  %v871 = vsub.s32 1, %v870
  %v872 = vrot.slane %v261, %v871
  %v873 = vmul.f32 %v866, %v872
  %v874 = vmul.f32 %v868, %v872
  %v875 = vpack.c.bf16 %v864, %v863
  %v876 = vpack.c.bf16 %v836, %v835
  %v877 = vpack.c.bf16 %v874, %v873
  %879 = vset.pattern.permute.xlu0 0
  %880 = vperm.xlu0 %879, %v48
  %v881 = vpop.permute.xlu0 %880
  %884 = vset.pattern.permute.xlu0 0
  %885 = vperm.xlu0 %884, %v49
  %v886 = vpop.permute.xlu0 %885
  %889 = vset.pattern.permute.xlu0 0
  %890 = vperm.xlu0 %889, %v50
  %v891 = vpop.permute.xlu0 %890
  %894 = vset.pattern.permute.xlu0 0
  %895 = vperm.xlu0 %894, %v51
  %v896 = vpop.permute.xlu0 %895
  %v902 = vunpack.c.l.b16 %v851
  %v903 = vunpack.c.l.b16 %v852
  %v904 = vunpack.c.l.b16 %v853
  %v905 = vunpack.c.l.b16 %v854
  %v906 = vpack.c.b16 %v903, %v902
  %v907 = vpack.c.b16 %v905, %v904
  %v909 = vsel %vm550, %v906, 0
  %v912 = vsel %vm550, %v907, 0
  %914 = vmatprep.subr.bf16.mxu0 0
  %915 = vmatpush1.bf16.msra.mxu0 %v875
  %916 = vmatprep.subr.bf16.mxu0 0
  %917 = vmatpush1.bf16.msra.mxu0 %v876
  %918 = vmatprep.subr.bf16.mxu0 0
  %919 = vmatpush1.bf16.msra.mxu0 %v877
  %920 = vmatprep.subr.bf16.mxu0 0
  %921 = vmatpush1.bf16.msra.mxu0 0
  %922 = vmatprep.subr.bf16.mxu0 0
  %923 = vmatpush1.bf16.msra.mxu0 0
  %924 = vmatprep.subr.bf16.mxu0 0
  %925 = vmatpush1.bf16.msra.mxu0 0
  %926 = vmatprep.subr.bf16.mxu0 0
  %927 = vmatpush1.bf16.msra.mxu0 0
  %928 = vmatprep.subr.bf16.mxu0 0
  %929 = vmatpush1.bf16.msra.mxu0 0
  %930 = vmatprep.subr.bf16.mxu0 0
  %931 = vmatpush1.bf16.msra.mxu0 0
  %932 = vmatprep.subr.bf16.mxu0 0
  %933 = vmatpush1.bf16.msra.mxu0 0
  %934 = vmatprep.subr.bf16.mxu0 0
  %935 = vmatpush1.bf16.msra.mxu0 0
  %936 = vmatprep.subr.bf16.mxu0 0
  %937 = vmatpush1.bf16.msra.mxu0 0
  %938 = vmatprep.subr.bf16.mxu0 0
  %939 = vmatpush1.bf16.msra.mxu0 0
  %940 = vmatprep.subr.bf16.mxu0 0
  %941 = vmatpush1.bf16.msra.mxu0 0
  %942 = vmatprep.subr.bf16.mxu0 0
  %943 = vmatpush1.bf16.msra.mxu0 0
  %944 = vmatprep.subr.bf16.mxu0 0
  %945 = vmatpush1.bf16.msra.mxu0 0
  %946 = vmatprep.mubr.bf16.mxu0 0
  %947 = vmatmul.mubr.bf16.gmra.mrb[0].mxu0 %v909
  %v948 = vpop.f32.mrb[0].mxu0
  %v949 = vadd.f32 %v881, %v948
  %v950 = vpop.f32.mrb[0].mxu0
  %v951 = vpop.f32.mrb[0].mxu0
  %v952 = vadd.f32 %v886, %v951
  %v953 = vpop.f32.mrb[0].mxu0
  %954 = vmatprep.mubr.bf16.mxu0 0
  %955 = vmatmul.mubr.bf16.gmra.mrb[0].mxu0 %v912
  %v956 = vpop.f32.mrb[0].mxu0
  %v957 = vadd.f32 %v891, %v956
  %v958 = vpop.f32.mrb[0].mxu0
  %v959 = vpop.f32.mrb[0].mxu0
  %v960 = vadd.f32 %v896, %v959
  %v961 = vpop.f32.mrb[0].mxu0
  %962 = vdwg.mxu0
  %963 = vadd.xlane.f32.xlu0 %v949
  %v964 = vpop.xlane.xlu0 %963
  %965 = vadd.xlane.f32.xlu0 %v952
  %v966 = vpop.xlane.xlu0 %965
  %967 = vadd.xlane.f32.xlu0 %v957
  %v968 = vpop.xlane.xlu0 %967
  %969 = vadd.xlane.f32.xlu0 %v960
  %v970 = vpop.xlane.xlu0 %969
  %v971 = vmul.f32 %v949, %v949
  %v972 = vmul.f32 %v952, %v952
  %v973 = vmul.f32 %v957, %v957
  %v974 = vmul.f32 %v960, %v960
  %975 = vadd.xlane.f32.xlu0 %v971
  %v976 = vpop.xlane.xlu0 %975
  %977 = vadd.xlane.f32.xlu0 %v972
  %v978 = vpop.xlane.xlu0 %977
  %979 = vadd.xlane.f32.xlu0 %v973
  %v980 = vpop.xlane.xlu0 %979
  %981 = vadd.xlane.f32.xlu0 %v974
  %v982 = vpop.xlane.xlu0 %981
  %v983 = vmul.f32 %v964, 0.0078125
  %v984 = vmul.f32 %v966, 0.0078125
  %v985 = vmul.f32 %v968, 0.0078125
  %v986 = vmul.f32 %v970, 0.0078125
  %v987 = vmul.f32 %v976, 0.0078125
  %v988 = vmul.f32 %v978, 0.0078125
  %v989 = vmul.f32 %v980, 0.0078125
  %v990 = vmul.f32 %v982, 0.0078125
  %v991 = vmul.f32 %v983, %v983
  %v992 = vmul.f32 %v984, %v984
  %v993 = vmul.f32 %v985, %v985
  %v994 = vmul.f32 %v986, %v986
  %v995 = vsub.f32 %v987, %v991
  %v996 = vsub.f32 %v988, %v992
  %v997 = vsub.f32 %v989, %v993
  %v998 = vsub.f32 %v990, %v994
  %v999 = vmax.f32 %v995, 0.0
  %v1000 = vmax.f32 %v996, 0.0
  %v1001 = vmax.f32 %v997, 0.0
  %v1002 = vmax.f32 %v998, 0.0
  %v1003 = vsub.f32 %v949, %v983
  %v1004 = vsub.f32 %v952, %v984
  %v1005 = vsub.f32 %v957, %v985
  %v1006 = vsub.f32 %v960, %v986
  %v1007 = vadd.f32 %v999, 1e-05
  %v1008 = vadd.f32 %v1000, 1e-05
  %v1009 = vadd.f32 %v1001, 1e-05
  %v1010 = vadd.f32 %v1002, 1e-05
  %v1011 = vrsqrt.pop %v1007
  %v1012 = vrsqrt.pop %v1008
  %v1013 = vrsqrt.pop %v1009
  %v1014 = vrsqrt.pop %v1010
  %v1015 = vmul.f32 %v1003, %v1011
  %v1016 = vmul.f32 %v1004, %v1012
  %v1017 = vmul.f32 %v1005, %v1013
  %v1018 = vmul.f32 %v1006, %v1014
  %1020 = vset.pattern.permute.xlu0 0
  %1021 = vperm.xlu0 %1020, %v52
  %v1022 = vpop.permute.xlu0 %1021
  %1025 = vset.pattern.permute.xlu0 0
  %1026 = vperm.xlu0 %1025, %v53
  %v1027 = vpop.permute.xlu0 %1026
  %1030 = vset.pattern.permute.xlu0 0
  %1031 = vperm.xlu0 %1030, %v54
  %v1032 = vpop.permute.xlu0 %1031
  %1035 = vset.pattern.permute.xlu0 0
  %1036 = vperm.xlu0 %1035, %v55
  %v1037 = vpop.permute.xlu0 %1036
  %v1039 = vmul.f32 %v1015, %v1022
  %v1040 = vmul.f32 %v1016, %v1027
  %v1041 = vmul.f32 %v1017, %v1032
  %v1042 = vmul.f32 %v1018, %v1037
  %1044 = vset.pattern.permute.xlu0 0
  %1045 = vperm.xlu0 %1044, %v56
  %v1046 = vpop.permute.xlu0 %1045
  %1049 = vset.pattern.permute.xlu0 0
  %1050 = vperm.xlu0 %1049, %v57
  %v1051 = vpop.permute.xlu0 %1050
  %1054 = vset.pattern.permute.xlu0 0
  %1055 = vperm.xlu0 %1054, %v58
  %v1056 = vpop.permute.xlu0 %1055
  %1059 = vset.pattern.permute.xlu0 0
  %1060 = vperm.xlu0 %1059, %v59
  %v1061 = vpop.permute.xlu0 %1060
  %v1063 = vadd.f32 %v1039, %v1046
  %v1064 = vadd.f32 %v1040, %v1051
  %v1065 = vadd.f32 %v1041, %v1056
  %v1066 = vadd.f32 %v1042, %v1061
  %vm1067 = vcmp.ge.f32.partialorder %v1063, 0.0
  %vm1068 = vcmp.ge.f32.partialorder %v1064, 0.0
  %vm1069 = vcmp.ge.f32.partialorder %v1065, 0.0
  %vm1070 = vcmp.ge.f32.partialorder %v1066, 0.0
  %v1071 = vmul.f32 %v1063, 0.3
  %v1072 = vmul.f32 %v1064, 0.3
  %v1073 = vmul.f32 %v1065, 0.3
  %v1074 = vmul.f32 %v1066, 0.3
  %v1075 = vsel %vm1067, %v1063, %v1071
  %v1076 = vsel %vm1068, %v1064, %v1072
  %v1077 = vsel %vm1069, %v1065, %v1073
  %v1078 = vsel %vm1070, %v1066, %v1074
  %v1079 = vld [vmem:[%s6] sm:$0xf]
  %v1080 = vld [vmem:[%s6 + $0x4] sm:$0xf]
  %v1081 = vld [vmem:[%s6 + $0x8] sm:$0xf]
  %v1082 = vld [vmem:[%s6 + $0xc] sm:$0xf]
  %1083 = vrot.lane.b32.xlu0 %v1075, 1
  %v1084 = vpop.permute.xlu0 %1083
  %1085 = vrot.lane.b32.xlu0 %v1076, 1
  %v1086 = vpop.permute.xlu0 %1085
  %1087 = vrot.lane.b32.xlu0 %v1077, 1
  %v1088 = vpop.permute.xlu0 %1087
  %1089 = vrot.lane.b32.xlu0 %v1078, 1
  %v1090 = vpop.permute.xlu0 %1089
  %v1091 = vmul.f32 %v1084, %v862
  %v1092 = vmul.f32 %v1086, %v862
  %v1093 = vmul.f32 %v1088, %v862
  %v1094 = vmul.f32 %v1090, %v862
  %1095 = vrot.lane.b32.xlu0 %v1075, 127
  %v1096 = vpop.permute.xlu0 %1095
  %1097 = vrot.lane.b32.xlu0 %v1076, 127
  %v1098 = vpop.permute.xlu0 %1097
  %1099 = vrot.lane.b32.xlu0 %v1077, 127
  %v1100 = vpop.permute.xlu0 %1099
  %1101 = vrot.lane.b32.xlu0 %v1078, 127
  %v1102 = vpop.permute.xlu0 %1101
  %v1103 = vmul.f32 %v1096, %v872
  %v1104 = vmul.f32 %v1098, %v872
  %v1105 = vmul.f32 %v1100, %v872
  %v1106 = vmul.f32 %v1102, %v872
  %v1107 = vpack.c.bf16 %v1092, %v1091
  %v1108 = vpack.c.bf16 %v1094, %v1093
  %v1109 = vpack.c.bf16 %v1076, %v1075
  %v1110 = vpack.c.bf16 %v1078, %v1077
  %v1111 = vpack.c.bf16 %v1104, %v1103
  %v1112 = vpack.c.bf16 %v1106, %v1105
  %1114 = vset.pattern.permute.xlu0 0
  %1115 = vperm.xlu0 %1114, %v60
  %v1116 = vpop.permute.xlu0 %1115
  %1119 = vset.pattern.permute.xlu0 0
  %1120 = vperm.xlu0 %1119, %v61
  %v1121 = vpop.permute.xlu0 %1120
  %1124 = vset.pattern.permute.xlu0 0
  %1125 = vperm.xlu0 %1124, %v62
  %v1126 = vpop.permute.xlu0 %1125
  %1129 = vset.pattern.permute.xlu0 0
  %1130 = vperm.xlu0 %1129, %v63
  %v1131 = vpop.permute.xlu0 %1130
  %v1137 = vunpack.c.l.b16 %v1079
  %v1138 = vunpack.c.l.b16 %v1080
  %v1139 = vunpack.c.l.b16 %v1081
  %v1140 = vunpack.c.l.b16 %v1082
  %v1141 = vpack.c.b16 %v1138, %v1137
  %v1142 = vpack.c.b16 %v1140, %v1139
  %vm1143 = vcmask 785408
  %v1145 = vsel %vm1143, %v1141, 0
  %v1148 = vsel %vm1143, %v1142, 0
  %1150 = vmatprep.subr.bf16.mxu0 0
  %1151 = vmatpush1.bf16.msra.mxu0 %v1107
  %1152 = vmatprep.subr.bf16.mxu0 0
  %1153 = vmatpush1.bf16.msra.mxu0 %v1108
  %1154 = vmatprep.subr.bf16.mxu0 0
  %1155 = vmatpush1.bf16.msra.mxu0 %v1109
  %1156 = vmatprep.subr.bf16.mxu0 0
  %1157 = vmatpush1.bf16.msra.mxu0 %v1110
  %1158 = vmatprep.subr.bf16.mxu0 0
  %1159 = vmatpush1.bf16.msra.mxu0 %v1111
  %1160 = vmatprep.subr.bf16.mxu0 0
  %1161 = vmatpush1.bf16.msra.mxu0 %v1112
  %1162 = vmatprep.subr.bf16.mxu0 0
  %1163 = vmatpush1.bf16.msra.mxu0 0
  %1164 = vmatprep.subr.bf16.mxu0 0
  %1165 = vmatpush1.bf16.msra.mxu0 0
  %1166 = vmatprep.subr.bf16.mxu0 0
  %1167 = vmatpush1.bf16.msra.mxu0 0
  %1168 = vmatprep.subr.bf16.mxu0 0
  %1169 = vmatpush1.bf16.msra.mxu0 0
  %1170 = vmatprep.subr.bf16.mxu0 0
  %1171 = vmatpush1.bf16.msra.mxu0 0
  %1172 = vmatprep.subr.bf16.mxu0 0
  %1173 = vmatpush1.bf16.msra.mxu0 0
  %1174 = vmatprep.subr.bf16.mxu0 0
  %1175 = vmatpush1.bf16.msra.mxu0 0
  %1176 = vmatprep.subr.bf16.mxu0 0
  %1177 = vmatpush1.bf16.msra.mxu0 0
  %1178 = vmatprep.subr.bf16.mxu0 0
  %1179 = vmatpush1.bf16.msra.mxu0 0
  %1180 = vmatprep.subr.bf16.mxu0 0
  %1181 = vmatpush1.bf16.msra.mxu0 0
  %1182 = vmatprep.mubr.bf16.mxu0 0
  %1183 = vmatmul.mubr.bf16.gmra.mrb[0].mxu0 %v1145
  %v1184 = vpop.f32.mrb[0].mxu0
  %v1185 = vadd.f32 %v1116, %v1184
  %v1186 = vpop.f32.mrb[0].mxu0
  %v1187 = vpop.f32.mrb[0].mxu0
  %v1188 = vadd.f32 %v1121, %v1187
  %v1189 = vpop.f32.mrb[0].mxu0
  %1190 = vmatprep.mubr.bf16.mxu0 0
  %1191 = vmatmul.mubr.bf16.gmra.mrb[0].mxu0 %v1148
  %v1192 = vpop.f32.mrb[0].mxu0
  %v1193 = vadd.f32 %v1126, %v1192
  %v1194 = vpop.f32.mrb[0].mxu0
  %v1195 = vpop.f32.mrb[0].mxu0
  %v1196 = vadd.f32 %v1131, %v1195
  %v1197 = vpop.f32.mrb[0].mxu0
  %1198 = vdwg.mxu0
  %1199 = vadd.xlane.f32.xlu0 %v1185
  %v1200 = vpop.xlane.xlu0 %1199
  %1201 = vadd.xlane.f32.xlu0 %v1188
  %v1202 = vpop.xlane.xlu0 %1201
  %1203 = vadd.xlane.f32.xlu0 %v1193
  %v1204 = vpop.xlane.xlu0 %1203
  %1205 = vadd.xlane.f32.xlu0 %v1196
  %v1206 = vpop.xlane.xlu0 %1205
  %v1207 = vmul.f32 %v1185, %v1185
  %v1208 = vmul.f32 %v1188, %v1188
  %v1209 = vmul.f32 %v1193, %v1193
  %v1210 = vmul.f32 %v1196, %v1196
  %1211 = vadd.xlane.f32.xlu0 %v1207
  %v1212 = vpop.xlane.xlu0 %1211
  %1213 = vadd.xlane.f32.xlu0 %v1208
  %v1214 = vpop.xlane.xlu0 %1213
  %1215 = vadd.xlane.f32.xlu0 %v1209
  %v1216 = vpop.xlane.xlu0 %1215
  %1217 = vadd.xlane.f32.xlu0 %v1210
  %v1218 = vpop.xlane.xlu0 %1217
  %v1219 = vmul.f32 %v1200, 0.0078125
  %v1220 = vmul.f32 %v1202, 0.0078125
  %v1221 = vmul.f32 %v1204, 0.0078125
  %v1222 = vmul.f32 %v1206, 0.0078125
  %v1223 = vmul.f32 %v1212, 0.0078125
  %v1224 = vmul.f32 %v1214, 0.0078125
  %v1225 = vmul.f32 %v1216, 0.0078125
  %v1226 = vmul.f32 %v1218, 0.0078125
  %v1227 = vmul.f32 %v1219, %v1219
  %v1228 = vmul.f32 %v1220, %v1220
  %v1229 = vmul.f32 %v1221, %v1221
  %v1230 = vmul.f32 %v1222, %v1222
  %v1231 = vsub.f32 %v1223, %v1227
  %v1232 = vsub.f32 %v1224, %v1228
  %v1233 = vsub.f32 %v1225, %v1229
  %v1234 = vsub.f32 %v1226, %v1230
  %v1235 = vmax.f32 %v1231, 0.0
  %v1236 = vmax.f32 %v1232, 0.0
  %v1237 = vmax.f32 %v1233, 0.0
  %v1238 = vmax.f32 %v1234, 0.0
  %v1239 = vsub.f32 %v1185, %v1219
  %v1240 = vsub.f32 %v1188, %v1220
  %v1241 = vsub.f32 %v1193, %v1221
  %v1242 = vsub.f32 %v1196, %v1222
  %v1243 = vadd.f32 %v1235, 1e-05
  %v1244 = vadd.f32 %v1236, 1e-05
  %v1245 = vadd.f32 %v1237, 1e-05
  %v1246 = vadd.f32 %v1238, 1e-05
  %v1247 = vrsqrt.pop %v1243
  %v1248 = vrsqrt.pop %v1244
  %v1249 = vrsqrt.pop %v1245
  %v1250 = vrsqrt.pop %v1246
  %v1251 = vmul.f32 %v1239, %v1247
  %v1252 = vmul.f32 %v1240, %v1248
  %v1253 = vmul.f32 %v1241, %v1249
  %v1254 = vmul.f32 %v1242, %v1250
  %1256 = vset.pattern.permute.xlu0 0
  %1257 = vperm.xlu0 %1256, %v64
  %v1258 = vpop.permute.xlu0 %1257
  %1261 = vset.pattern.permute.xlu0 0
  %1262 = vperm.xlu0 %1261, %v65
  %v1263 = vpop.permute.xlu0 %1262
  %1266 = vset.pattern.permute.xlu0 0
  %1267 = vperm.xlu0 %1266, %v66
  %v1268 = vpop.permute.xlu0 %1267
  %1271 = vset.pattern.permute.xlu0 0
  %1272 = vperm.xlu0 %1271, %v67
  %v1273 = vpop.permute.xlu0 %1272
  %v1275 = vmul.f32 %v1251, %v1258
  %v1276 = vmul.f32 %v1252, %v1263
  %v1277 = vmul.f32 %v1253, %v1268
  %v1278 = vmul.f32 %v1254, %v1273
  %1280 = vset.pattern.permute.xlu0 0
  %1281 = vperm.xlu0 %1280, %v68
  %v1282 = vpop.permute.xlu0 %1281
  %1285 = vset.pattern.permute.xlu0 0
  %1286 = vperm.xlu0 %1285, %v69
  %v1287 = vpop.permute.xlu0 %1286
  %1290 = vset.pattern.permute.xlu0 0
  %1291 = vperm.xlu0 %1290, %v70
  %v1292 = vpop.permute.xlu0 %1291
  %1295 = vset.pattern.permute.xlu0 0
  %1296 = vperm.xlu0 %1295, %v71
  %v1297 = vpop.permute.xlu0 %1296
  %v1299 = vadd.f32 %v1275, %v1282
  %v1300 = vadd.f32 %v1276, %v1287
  %v1301 = vadd.f32 %v1277, %v1292
  %v1302 = vadd.f32 %v1278, %v1297
  %vm1303 = vcmp.ge.f32.partialorder %v1299, 0.0
  %vm1304 = vcmp.ge.f32.partialorder %v1300, 0.0
  %vm1305 = vcmp.ge.f32.partialorder %v1301, 0.0
  %vm1306 = vcmp.ge.f32.partialorder %v1302, 0.0
  %v1307 = vmul.f32 %v1299, 0.3
  %v1308 = vmul.f32 %v1300, 0.3
  %v1309 = vmul.f32 %v1301, 0.3
  %v1310 = vmul.f32 %v1302, 0.3
  %v1311 = vsel %vm1303, %v1299, %v1307
  %v1312 = vsel %vm1304, %v1300, %v1308
  %v1313 = vsel %vm1305, %v1301, %v1309
  %v1314 = vsel %vm1306, %v1302, %v1310
  %v1315 = vpack.c.bf16 %v1312, %v1311
  %v1316 = vpack.c.bf16 %v1314, %v1313
  %v1325 = vunpack.c.l.b16 %v236
  %v1326 = vunpack.c.l.b16 %v239
  %v1327 = vunpack.c.l.b16 %v242
  %v1328 = vunpack.c.l.b16 %v245
  %v1329 = vunpack.c.l.b16 %v248
  %v1330 = vunpack.c.l.b16 %v251
  %v1331 = vunpack.c.l.b16 %v254
  %v1332 = vunpack.c.l.b16 %v257
  %v1333 = vpack.c.b16 %v1326, %v1325
  %v1334 = vpack.c.b16 %v1328, %v1327
  %v1335 = vpack.c.b16 %v1330, %v1329
  %v1336 = vpack.c.b16 %v1332, %v1331
  %vm1337 = vcmask 261120
  %v1339 = vsel %vm1337, %v1333, 0
  %v1342 = vsel %vm1337, %v1334, 0
  %v1345 = vsel %vm1337, %v1335, 0
  %v1348 = vsel %vm1337, %v1336, 0
  %1350 = vmatprep.subr.bf16.mxu0 0
  %1351 = vmatpush1.bf16.msra.mxu0 %v1315
  %1352 = vmatprep.subr.bf16.mxu0 0
  %1353 = vmatpush1.bf16.msra.mxu0 %v1316
  %1354 = vmatprep.subr.bf16.mxu0 0
  %1355 = vmatpush1.bf16.msra.mxu0 0
  %1356 = vmatprep.subr.bf16.mxu0 0
  %1357 = vmatpush1.bf16.msra.mxu0 0
  %1358 = vmatprep.subr.bf16.mxu0 0
  %1359 = vmatpush1.bf16.msra.mxu0 0
  %1360 = vmatprep.subr.bf16.mxu0 0
  %1361 = vmatpush1.bf16.msra.mxu0 0
  %1362 = vmatprep.subr.bf16.mxu0 0
  %1363 = vmatpush1.bf16.msra.mxu0 0
  %1364 = vmatprep.subr.bf16.mxu0 0
  %1365 = vmatpush1.bf16.msra.mxu0 0
  %1366 = vmatprep.subr.bf16.mxu0 0
  %1367 = vmatpush1.bf16.msra.mxu0 0
  %1368 = vmatprep.subr.bf16.mxu0 0
  %1369 = vmatpush1.bf16.msra.mxu0 0
  %1370 = vmatprep.subr.bf16.mxu0 0
  %1371 = vmatpush1.bf16.msra.mxu0 0
  %1372 = vmatprep.subr.bf16.mxu0 0
  %1373 = vmatpush1.bf16.msra.mxu0 0
  %1374 = vmatprep.subr.bf16.mxu0 0
  %1375 = vmatpush1.bf16.msra.mxu0 0
  %1376 = vmatprep.subr.bf16.mxu0 0
  %1377 = vmatpush1.bf16.msra.mxu0 0
  %1378 = vmatprep.subr.bf16.mxu0 0
  %1379 = vmatpush1.bf16.msra.mxu0 0
  %1380 = vmatprep.subr.bf16.mxu0 0
  %1381 = vmatpush1.bf16.msra.mxu0 0
  %1382 = vmatprep.mubr.bf16.mxu0 0
  %1383 = vmatmul.mubr.bf16.gmra.mrb[0].mxu0 %v1339
  %v1384 = vpop.f32.mrb[0].mxu0
  %v1385 = vadd.f32 0.0, %v1384
  %v1386 = vpop.f32.mrb[0].mxu0
  %v1387 = vpop.f32.mrb[0].mxu0
  %v1388 = vadd.f32 0.0, %v1387
  %v1389 = vpop.f32.mrb[0].mxu0
  %1390 = vmatprep.mubr.bf16.mxu0 0
  %1391 = vmatmul.mubr.bf16.gmra.mrb[0].mxu0 %v1342
  %v1392 = vpop.f32.mrb[0].mxu0
  %v1393 = vadd.f32 0.0, %v1392
  %v1394 = vpop.f32.mrb[0].mxu0
  %v1395 = vpop.f32.mrb[0].mxu0
  %v1396 = vadd.f32 0.0, %v1395
  %v1397 = vpop.f32.mrb[0].mxu0
  %1398 = vmatprep.mubr.bf16.mxu0 0
  %1399 = vmatmul.mubr.bf16.gmra.mrb[0].mxu0 %v1345
  %v1400 = vpop.f32.mrb[0].mxu0
  %v1401 = vadd.f32 0.0, %v1400
  %v1402 = vpop.f32.mrb[0].mxu0
  %v1403 = vpop.f32.mrb[0].mxu0
  %v1404 = vadd.f32 0.0, %v1403
  %v1405 = vpop.f32.mrb[0].mxu0
  %1406 = vmatprep.mubr.bf16.mxu0 0
  %1407 = vmatmul.mubr.bf16.gmra.mrb[0].mxu0 %v1348
  %v1408 = vpop.f32.mrb[0].mxu0
  %v1409 = vadd.f32 0.0, %v1408
  %v1410 = vpop.f32.mrb[0].mxu0
  %v1411 = vpop.f32.mrb[0].mxu0
  %v1412 = vadd.f32 0.0, %v1411
  %v1413 = vpop.f32.mrb[0].mxu0
  %1414 = vdwg.mxu0
  %1415 = vadd.xlane.f32.xlu0 %v1385
  %v1416 = vpop.xlane.xlu0 %1415
  %1417 = vadd.xlane.f32.xlu0 %v1388
  %v1418 = vpop.xlane.xlu0 %1417
  %1419 = vadd.xlane.f32.xlu0 %v1393
  %v1420 = vpop.xlane.xlu0 %1419
  %1421 = vadd.xlane.f32.xlu0 %v1396
  %v1422 = vpop.xlane.xlu0 %1421
  %1423 = vadd.xlane.f32.xlu0 %v1401
  %v1424 = vpop.xlane.xlu0 %1423
  %1425 = vadd.xlane.f32.xlu0 %v1404
  %v1426 = vpop.xlane.xlu0 %1425
  %1427 = vadd.xlane.f32.xlu0 %v1409
  %v1428 = vpop.xlane.xlu0 %1427
  %1429 = vadd.xlane.f32.xlu0 %v1412
  %v1430 = vpop.xlane.xlu0 %1429
  %v1431 = vmul.f32 %v1385, %v1385
  %v1432 = vmul.f32 %v1388, %v1388
  %v1433 = vmul.f32 %v1393, %v1393
  %v1434 = vmul.f32 %v1396, %v1396
  %v1435 = vmul.f32 %v1401, %v1401
  %v1436 = vmul.f32 %v1404, %v1404
  %v1437 = vmul.f32 %v1409, %v1409
  %v1438 = vmul.f32 %v1412, %v1412
  %1439 = vadd.xlane.f32.xlu0 %v1431
  %v1440 = vpop.xlane.xlu0 %1439
  %1441 = vadd.xlane.f32.xlu0 %v1432
  %v1442 = vpop.xlane.xlu0 %1441
  %1443 = vadd.xlane.f32.xlu0 %v1433
  %v1444 = vpop.xlane.xlu0 %1443
  %1445 = vadd.xlane.f32.xlu0 %v1434
  %v1446 = vpop.xlane.xlu0 %1445
  %1447 = vadd.xlane.f32.xlu0 %v1435
  %v1448 = vpop.xlane.xlu0 %1447
  %1449 = vadd.xlane.f32.xlu0 %v1436
  %v1450 = vpop.xlane.xlu0 %1449
  %1451 = vadd.xlane.f32.xlu0 %v1437
  %v1452 = vpop.xlane.xlu0 %1451
  %1453 = vadd.xlane.f32.xlu0 %v1438
  %v1454 = vpop.xlane.xlu0 %1453
  %v1455 = vmul.f32 %v1416, 0.0078125
  %v1456 = vmul.f32 %v1418, 0.0078125
  %v1457 = vmul.f32 %v1420, 0.0078125
  %v1458 = vmul.f32 %v1422, 0.0078125
  %v1459 = vmul.f32 %v1424, 0.0078125
  %v1460 = vmul.f32 %v1426, 0.0078125
  %v1461 = vmul.f32 %v1428, 0.0078125
  %v1462 = vmul.f32 %v1430, 0.0078125
  %v1463 = vmul.f32 %v1440, 0.0078125
  %v1464 = vmul.f32 %v1442, 0.0078125
  %v1465 = vmul.f32 %v1444, 0.0078125
  %v1466 = vmul.f32 %v1446, 0.0078125
  %v1467 = vmul.f32 %v1448, 0.0078125
  %v1468 = vmul.f32 %v1450, 0.0078125
  %v1469 = vmul.f32 %v1452, 0.0078125
  %v1470 = vmul.f32 %v1454, 0.0078125
  %v1471 = vmul.f32 %v1455, %v1455
  %v1472 = vmul.f32 %v1456, %v1456
  %v1473 = vmul.f32 %v1457, %v1457
  %v1474 = vmul.f32 %v1458, %v1458
  %v1475 = vmul.f32 %v1459, %v1459
  %v1476 = vmul.f32 %v1460, %v1460
  %v1477 = vmul.f32 %v1461, %v1461
  %v1478 = vmul.f32 %v1462, %v1462
  %v1479 = vsub.f32 %v1463, %v1471
  %v1480 = vsub.f32 %v1464, %v1472
  %v1481 = vsub.f32 %v1465, %v1473
  %v1482 = vsub.f32 %v1466, %v1474
  %v1483 = vsub.f32 %v1467, %v1475
  %v1484 = vsub.f32 %v1468, %v1476
  %v1485 = vsub.f32 %v1469, %v1477
  %v1486 = vsub.f32 %v1470, %v1478
  %v1487 = vmax.f32 %v1479, 0.0
  %v1488 = vmax.f32 %v1480, 0.0
  %v1489 = vmax.f32 %v1481, 0.0
  %v1490 = vmax.f32 %v1482, 0.0
  %v1491 = vmax.f32 %v1483, 0.0
  %v1492 = vmax.f32 %v1484, 0.0
  %v1493 = vmax.f32 %v1485, 0.0
  %v1494 = vmax.f32 %v1486, 0.0
  %v1495 = vsub.f32 %v1385, %v1455
  %v1496 = vsub.f32 %v1388, %v1456
  %v1497 = vsub.f32 %v1393, %v1457
  %v1498 = vsub.f32 %v1396, %v1458
  %v1499 = vsub.f32 %v1401, %v1459
  %v1500 = vsub.f32 %v1404, %v1460
  %v1501 = vsub.f32 %v1409, %v1461
  %v1502 = vsub.f32 %v1412, %v1462
  %v1503 = vadd.f32 %v1487, 1e-05
  %v1504 = vadd.f32 %v1488, 1e-05
  %v1505 = vadd.f32 %v1489, 1e-05
  %v1506 = vadd.f32 %v1490, 1e-05
  %v1507 = vadd.f32 %v1491, 1e-05
  %v1508 = vadd.f32 %v1492, 1e-05
  %v1509 = vadd.f32 %v1493, 1e-05
  %v1510 = vadd.f32 %v1494, 1e-05
  %v1511 = vrsqrt.pop %v1503
  %v1512 = vrsqrt.pop %v1504
  %v1513 = vrsqrt.pop %v1505
  %v1514 = vrsqrt.pop %v1506
  %v1515 = vrsqrt.pop %v1507
  %v1516 = vrsqrt.pop %v1508
  %v1517 = vrsqrt.pop %v1509
  %v1518 = vrsqrt.pop %v1510
  %v1519 = vmul.f32 %v1495, %v1511
  %v1520 = vmul.f32 %v1496, %v1512
  %v1521 = vmul.f32 %v1497, %v1513
  %v1522 = vmul.f32 %v1498, %v1514
  %v1523 = vmul.f32 %v1499, %v1515
  %v1524 = vmul.f32 %v1500, %v1516
  %v1525 = vmul.f32 %v1501, %v1517
  %v1526 = vmul.f32 %v1502, %v1518
  %1528 = vset.pattern.permute.xlu0 0
  %1529 = vperm.xlu0 %1528, %v72
  %v1530 = vpop.permute.xlu0 %1529
  %1533 = vset.pattern.permute.xlu0 0
  %1534 = vperm.xlu0 %1533, %v73
  %v1535 = vpop.permute.xlu0 %1534
  %1538 = vset.pattern.permute.xlu0 0
  %1539 = vperm.xlu0 %1538, %v74
  %v1540 = vpop.permute.xlu0 %1539
  %1543 = vset.pattern.permute.xlu0 0
  %1544 = vperm.xlu0 %1543, %v75
  %v1545 = vpop.permute.xlu0 %1544
  %1548 = vset.pattern.permute.xlu0 0
  %1549 = vperm.xlu0 %1548, %v76
  %v1550 = vpop.permute.xlu0 %1549
  %1553 = vset.pattern.permute.xlu0 0
  %1554 = vperm.xlu0 %1553, %v77
  %v1555 = vpop.permute.xlu0 %1554
  %1558 = vset.pattern.permute.xlu0 0
  %1559 = vperm.xlu0 %1558, %v78
  %v1560 = vpop.permute.xlu0 %1559
  %1563 = vset.pattern.permute.xlu0 0
  %1564 = vperm.xlu0 %1563, %v79
  %v1565 = vpop.permute.xlu0 %1564
  %v1567 = vmul.f32 %v1519, %v1530
  %v1568 = vmul.f32 %v1520, %v1535
  %v1569 = vmul.f32 %v1521, %v1540
  %v1570 = vmul.f32 %v1522, %v1545
  %v1571 = vmul.f32 %v1523, %v1550
  %v1572 = vmul.f32 %v1524, %v1555
  %v1573 = vmul.f32 %v1525, %v1560
  %v1574 = vmul.f32 %v1526, %v1565
  %1576 = vset.pattern.permute.xlu0 0
  %1577 = vperm.xlu0 %1576, %v80
  %v1578 = vpop.permute.xlu0 %1577
  %1581 = vset.pattern.permute.xlu0 0
  %1582 = vperm.xlu0 %1581, %v81
  %v1583 = vpop.permute.xlu0 %1582
  %1586 = vset.pattern.permute.xlu0 0
  %1587 = vperm.xlu0 %1586, %v82
  %v1588 = vpop.permute.xlu0 %1587
  %1591 = vset.pattern.permute.xlu0 0
  %1592 = vperm.xlu0 %1591, %v83
  %v1593 = vpop.permute.xlu0 %1592
  %1596 = vset.pattern.permute.xlu0 0
  %1597 = vperm.xlu0 %1596, %v84
  %v1598 = vpop.permute.xlu0 %1597
  %1601 = vset.pattern.permute.xlu0 0
  %1602 = vperm.xlu0 %1601, %v85
  %v1603 = vpop.permute.xlu0 %1602
  %1606 = vset.pattern.permute.xlu0 0
  %1607 = vperm.xlu0 %1606, %v86
  %v1608 = vpop.permute.xlu0 %1607
  %1611 = vset.pattern.permute.xlu0 0
  %1612 = vperm.xlu0 %1611, %v87
  %v1613 = vpop.permute.xlu0 %1612
  %v1615 = vadd.f32 %v1567, %v1578
  %v1616 = vadd.f32 %v1568, %v1583
  %v1617 = vadd.f32 %v1569, %v1588
  %v1618 = vadd.f32 %v1570, %v1593
  %v1619 = vadd.f32 %v1571, %v1598
  %v1620 = vadd.f32 %v1572, %v1603
  %v1621 = vadd.f32 %v1573, %v1608
  %v1622 = vadd.f32 %v1574, %v1613
  %1623 = vrot.lane.b32.xlu0 %v1311, 1
  %v1624 = vpop.permute.xlu0 %1623
  %1625 = vrot.lane.b32.xlu0 %v1312, 1
  %v1626 = vpop.permute.xlu0 %1625
  %1627 = vrot.lane.b32.xlu0 %v1313, 1
  %v1628 = vpop.permute.xlu0 %1627
  %1629 = vrot.lane.b32.xlu0 %v1314, 1
  %v1630 = vpop.permute.xlu0 %1629
  %v1631 = vmul.f32 %v1624, %v862
  %v1632 = vmul.f32 %v1626, %v862
  %v1633 = vmul.f32 %v1628, %v862
  %v1634 = vmul.f32 %v1630, %v862
  %1636 = vset.pattern.permute.xlu0 0
  %1637 = vperm.xlu0 %1636, %v152
  %v1638 = vpop.permute.xlu0 %1637
  %1641 = vset.pattern.permute.xlu0 0
  %1642 = vperm.xlu0 %1641, %v153
  %v1643 = vpop.permute.xlu0 %1642
  %1646 = vset.pattern.permute.xlu0 0
  %1647 = vperm.xlu0 %1646, %v154
  %v1648 = vpop.permute.xlu0 %1647
  %1651 = vset.pattern.permute.xlu0 0
  %1652 = vperm.xlu0 %1651, %v155
  %v1653 = vpop.permute.xlu0 %1652
  %v1655 = vmul.f32 %v1638, %v1631
  %v1656 = vmul.f32 %v1643, %v1632
  %v1657 = vmul.f32 %v1648, %v1633
  %v1658 = vmul.f32 %v1653, %v1634
  %1660 = vset.pattern.permute.xlu0 0
  %1661 = vperm.xlu0 %1660, %v180
  %v1662 = vpop.permute.xlu0 %1661
  %1665 = vset.pattern.permute.xlu0 0
  %1666 = vperm.xlu0 %1665, %v181
  %v1667 = vpop.permute.xlu0 %1666
  %1670 = vset.pattern.permute.xlu0 0
  %1671 = vperm.xlu0 %1670, %v182
  %v1672 = vpop.permute.xlu0 %1671
  %1675 = vset.pattern.permute.xlu0 0
  %1676 = vperm.xlu0 %1675, %v183
  %v1677 = vpop.permute.xlu0 %1676
  %v1679 = vmul.f32 %v1662, %v1311
  %v1680 = vmul.f32 %v1667, %v1312
  %v1681 = vmul.f32 %v1672, %v1313
  %v1682 = vmul.f32 %v1677, %v1314
  %v1683 = vadd.f32 %v1655, %v1679
  %v1684 = vadd.f32 %v1656, %v1680
  %v1685 = vadd.f32 %v1657, %v1681
  %v1686 = vadd.f32 %v1658, %v1682
  %1687 = vrot.lane.b32.xlu0 %v1311, 127
  %v1688 = vpop.permute.xlu0 %1687
  %1689 = vrot.lane.b32.xlu0 %v1312, 127
  %v1690 = vpop.permute.xlu0 %1689
  %1691 = vrot.lane.b32.xlu0 %v1313, 127
  %v1692 = vpop.permute.xlu0 %1691
  %1693 = vrot.lane.b32.xlu0 %v1314, 127
  %v1694 = vpop.permute.xlu0 %1693
  %v1695 = vmul.f32 %v1688, %v872
  %v1696 = vmul.f32 %v1690, %v872
  %v1697 = vmul.f32 %v1692, %v872
  %v1698 = vmul.f32 %v1694, %v872
  %1700 = vset.pattern.permute.xlu0 0
  %1701 = vperm.xlu0 %1700, %v208
  %v1702 = vpop.permute.xlu0 %1701
  %1705 = vset.pattern.permute.xlu0 0
  %1706 = vperm.xlu0 %1705, %v209
  %v1707 = vpop.permute.xlu0 %1706
  %1710 = vset.pattern.permute.xlu0 0
  %1711 = vperm.xlu0 %1710, %v210
  %v1712 = vpop.permute.xlu0 %1711
  %1715 = vset.pattern.permute.xlu0 0
  %1716 = vperm.xlu0 %1715, %v211
  %v1717 = vpop.permute.xlu0 %1716
  %v1719 = vmul.f32 %v1702, %v1695
  %v1720 = vmul.f32 %v1707, %v1696
  %v1721 = vmul.f32 %v1712, %v1697
  %v1722 = vmul.f32 %v1717, %v1698
  %v1723 = vadd.f32 %v1683, %v1719
  %v1724 = vadd.f32 %v1684, %v1720
  %v1725 = vadd.f32 %v1685, %v1721
  %v1726 = vadd.f32 %v1686, %v1722
  %v1727 = vpack.c.bf16 %v1724, %v1723
  %v1728 = vpack.c.bf16 %v1726, %v1725
  %v1729 = vunpack.c.h.b16 %v236
  %v1730 = vunpack.c.h.b16 %v239
  %v1731 = vunpack.c.h.b16 %v242
  %v1732 = vunpack.c.h.b16 %v245
  %v1733 = vunpack.c.h.b16 %v248
  %v1734 = vunpack.c.h.b16 %v251
  %v1735 = vunpack.c.h.b16 %v254
  %v1736 = vunpack.c.h.b16 %v257
  %v1737 = vpack.c.b16 %v1730, %v1729
  %v1738 = vpack.c.b16 %v1732, %v1731
  %v1739 = vpack.c.b16 %v1734, %v1733
  %v1740 = vpack.c.b16 %v1736, %v1735
  %v1742 = vsel %vm1337, %v1737, 0
  %v1745 = vsel %vm1337, %v1738, 0
  %v1748 = vsel %vm1337, %v1739, 0
  %v1751 = vsel %vm1337, %v1740, 0
  %1753 = vmatprep.subr.bf16.mxu0 0
  %1754 = vmatpush1.bf16.msra.mxu0 %v1727
  %1755 = vmatprep.subr.bf16.mxu0 0
  %1756 = vmatpush1.bf16.msra.mxu0 %v1728
  %1757 = vmatprep.subr.bf16.mxu0 0
  %1758 = vmatpush1.bf16.msra.mxu0 0
  %1759 = vmatprep.subr.bf16.mxu0 0
  %1760 = vmatpush1.bf16.msra.mxu0 0
  %1761 = vmatprep.subr.bf16.mxu0 0
  %1762 = vmatpush1.bf16.msra.mxu0 0
  %1763 = vmatprep.subr.bf16.mxu0 0
  %1764 = vmatpush1.bf16.msra.mxu0 0
  %1765 = vmatprep.subr.bf16.mxu0 0
  %1766 = vmatpush1.bf16.msra.mxu0 0
  %1767 = vmatprep.subr.bf16.mxu0 0
  %1768 = vmatpush1.bf16.msra.mxu0 0
  %1769 = vmatprep.subr.bf16.mxu0 0
  %1770 = vmatpush1.bf16.msra.mxu0 0
  %1771 = vmatprep.subr.bf16.mxu0 0
  %1772 = vmatpush1.bf16.msra.mxu0 0
  %1773 = vmatprep.subr.bf16.mxu0 0
  %1774 = vmatpush1.bf16.msra.mxu0 0
  %1775 = vmatprep.subr.bf16.mxu0 0
  %1776 = vmatpush1.bf16.msra.mxu0 0
  %1777 = vmatprep.subr.bf16.mxu0 0
  %1778 = vmatpush1.bf16.msra.mxu0 0
  %1779 = vmatprep.subr.bf16.mxu0 0
  %1780 = vmatpush1.bf16.msra.mxu0 0
  %1781 = vmatprep.subr.bf16.mxu0 0
  %1782 = vmatpush1.bf16.msra.mxu0 0
  %1783 = vmatprep.subr.bf16.mxu0 0
  %1784 = vmatpush1.bf16.msra.mxu0 0
  %1785 = vmatprep.mubr.bf16.mxu0 0
  %1786 = vmatmul.mubr.bf16.gmra.mrb[0].mxu0 %v1742
  %v1787 = vpop.f32.mrb[0].mxu0
  %v1788 = vadd.f32 0.0, %v1787
  %v1789 = vpop.f32.mrb[0].mxu0
  %v1790 = vpop.f32.mrb[0].mxu0
  %v1791 = vadd.f32 0.0, %v1790
  %v1792 = vpop.f32.mrb[0].mxu0
  %1793 = vmatprep.mubr.bf16.mxu0 0
  %1794 = vmatmul.mubr.bf16.gmra.mrb[0].mxu0 %v1745
  %v1795 = vpop.f32.mrb[0].mxu0
  %v1796 = vadd.f32 0.0, %v1795
  %v1797 = vpop.f32.mrb[0].mxu0
  %v1798 = vpop.f32.mrb[0].mxu0
  %v1799 = vadd.f32 0.0, %v1798
  %v1800 = vpop.f32.mrb[0].mxu0
  %1801 = vmatprep.mubr.bf16.mxu0 0
  %1802 = vmatmul.mubr.bf16.gmra.mrb[0].mxu0 %v1748
  %v1803 = vpop.f32.mrb[0].mxu0
  %v1804 = vadd.f32 0.0, %v1803
  %v1805 = vpop.f32.mrb[0].mxu0
  %v1806 = vpop.f32.mrb[0].mxu0
  %v1807 = vadd.f32 0.0, %v1806
  %v1808 = vpop.f32.mrb[0].mxu0
  %1809 = vmatprep.mubr.bf16.mxu0 0
  %1810 = vmatmul.mubr.bf16.gmra.mrb[0].mxu0 %v1751
  %v1811 = vpop.f32.mrb[0].mxu0
  %v1812 = vadd.f32 0.0, %v1811
  %v1813 = vpop.f32.mrb[0].mxu0
  %v1814 = vpop.f32.mrb[0].mxu0
  %v1815 = vadd.f32 0.0, %v1814
  %v1816 = vpop.f32.mrb[0].mxu0
  %1817 = vdwg.mxu0
  %1818 = vadd.xlane.f32.xlu0 %v1788
  %v1819 = vpop.xlane.xlu0 %1818
  %1820 = vadd.xlane.f32.xlu0 %v1791
  %v1821 = vpop.xlane.xlu0 %1820
  %1822 = vadd.xlane.f32.xlu0 %v1796
  %v1823 = vpop.xlane.xlu0 %1822
  %1824 = vadd.xlane.f32.xlu0 %v1799
  %v1825 = vpop.xlane.xlu0 %1824
  %1826 = vadd.xlane.f32.xlu0 %v1804
  %v1827 = vpop.xlane.xlu0 %1826
  %1828 = vadd.xlane.f32.xlu0 %v1807
  %v1829 = vpop.xlane.xlu0 %1828
  %1830 = vadd.xlane.f32.xlu0 %v1812
  %v1831 = vpop.xlane.xlu0 %1830
  %1832 = vadd.xlane.f32.xlu0 %v1815
  %v1833 = vpop.xlane.xlu0 %1832
  %v1834 = vmul.f32 %v1788, %v1788
  %v1835 = vmul.f32 %v1791, %v1791
  %v1836 = vmul.f32 %v1796, %v1796
  %v1837 = vmul.f32 %v1799, %v1799
  %v1838 = vmul.f32 %v1804, %v1804
  %v1839 = vmul.f32 %v1807, %v1807
  %v1840 = vmul.f32 %v1812, %v1812
  %v1841 = vmul.f32 %v1815, %v1815
  %1842 = vadd.xlane.f32.xlu0 %v1834
  %v1843 = vpop.xlane.xlu0 %1842
  %1844 = vadd.xlane.f32.xlu0 %v1835
  %v1845 = vpop.xlane.xlu0 %1844
  %1846 = vadd.xlane.f32.xlu0 %v1836
  %v1847 = vpop.xlane.xlu0 %1846
  %1848 = vadd.xlane.f32.xlu0 %v1837
  %v1849 = vpop.xlane.xlu0 %1848
  %1850 = vadd.xlane.f32.xlu0 %v1838
  %v1851 = vpop.xlane.xlu0 %1850
  %1852 = vadd.xlane.f32.xlu0 %v1839
  %v1853 = vpop.xlane.xlu0 %1852
  %1854 = vadd.xlane.f32.xlu0 %v1840
  %v1855 = vpop.xlane.xlu0 %1854
  %1856 = vadd.xlane.f32.xlu0 %v1841
  %v1857 = vpop.xlane.xlu0 %1856
  %v1858 = vmul.f32 %v1819, 0.0078125
  %v1859 = vmul.f32 %v1821, 0.0078125
  %v1860 = vmul.f32 %v1823, 0.0078125
  %v1861 = vmul.f32 %v1825, 0.0078125
  %v1862 = vmul.f32 %v1827, 0.0078125
  %v1863 = vmul.f32 %v1829, 0.0078125
  %v1864 = vmul.f32 %v1831, 0.0078125
  %v1865 = vmul.f32 %v1833, 0.0078125
  %v1866 = vmul.f32 %v1843, 0.0078125
  %v1867 = vmul.f32 %v1845, 0.0078125
  %v1868 = vmul.f32 %v1847, 0.0078125
  %v1869 = vmul.f32 %v1849, 0.0078125
  %v1870 = vmul.f32 %v1851, 0.0078125
  %v1871 = vmul.f32 %v1853, 0.0078125
  %v1872 = vmul.f32 %v1855, 0.0078125
  %v1873 = vmul.f32 %v1857, 0.0078125
  %v1874 = vmul.f32 %v1858, %v1858
  %v1875 = vmul.f32 %v1859, %v1859
  %v1876 = vmul.f32 %v1860, %v1860
  %v1877 = vmul.f32 %v1861, %v1861
  %v1878 = vmul.f32 %v1862, %v1862
  %v1879 = vmul.f32 %v1863, %v1863
  %v1880 = vmul.f32 %v1864, %v1864
  %v1881 = vmul.f32 %v1865, %v1865
  %v1882 = vsub.f32 %v1866, %v1874
  %v1883 = vsub.f32 %v1867, %v1875
  %v1884 = vsub.f32 %v1868, %v1876
  %v1885 = vsub.f32 %v1869, %v1877
  %v1886 = vsub.f32 %v1870, %v1878
  %v1887 = vsub.f32 %v1871, %v1879
  %v1888 = vsub.f32 %v1872, %v1880
  %v1889 = vsub.f32 %v1873, %v1881
  %v1890 = vmax.f32 %v1882, 0.0
  %v1891 = vmax.f32 %v1883, 0.0
  %v1892 = vmax.f32 %v1884, 0.0
  %v1893 = vmax.f32 %v1885, 0.0
  %v1894 = vmax.f32 %v1886, 0.0
  %v1895 = vmax.f32 %v1887, 0.0
  %v1896 = vmax.f32 %v1888, 0.0
  %v1897 = vmax.f32 %v1889, 0.0
  %v1898 = vsub.f32 %v1788, %v1858
  %v1899 = vsub.f32 %v1791, %v1859
  %v1900 = vsub.f32 %v1796, %v1860
  %v1901 = vsub.f32 %v1799, %v1861
  %v1902 = vsub.f32 %v1804, %v1862
  %v1903 = vsub.f32 %v1807, %v1863
  %v1904 = vsub.f32 %v1812, %v1864
  %v1905 = vsub.f32 %v1815, %v1865
  %v1906 = vadd.f32 %v1890, 1e-05
  %v1907 = vadd.f32 %v1891, 1e-05
  %v1908 = vadd.f32 %v1892, 1e-05
  %v1909 = vadd.f32 %v1893, 1e-05
  %v1910 = vadd.f32 %v1894, 1e-05
  %v1911 = vadd.f32 %v1895, 1e-05
  %v1912 = vadd.f32 %v1896, 1e-05
  %v1913 = vadd.f32 %v1897, 1e-05
  %v1914 = vrsqrt.pop %v1906
  %v1915 = vrsqrt.pop %v1907
  %v1916 = vrsqrt.pop %v1908
  %v1917 = vrsqrt.pop %v1909
  %v1918 = vrsqrt.pop %v1910
  %v1919 = vrsqrt.pop %v1911
  %v1920 = vrsqrt.pop %v1912
  %v1921 = vrsqrt.pop %v1913
  %v1922 = vmul.f32 %v1898, %v1914
  %v1923 = vmul.f32 %v1899, %v1915
  %v1924 = vmul.f32 %v1900, %v1916
  %v1925 = vmul.f32 %v1901, %v1917
  %v1926 = vmul.f32 %v1902, %v1918
  %v1927 = vmul.f32 %v1903, %v1919
  %v1928 = vmul.f32 %v1904, %v1920
  %v1929 = vmul.f32 %v1905, %v1921
  %1931 = vset.pattern.permute.xlu0 0
  %1932 = vperm.xlu0 %1931, %v88
  %v1933 = vpop.permute.xlu0 %1932
  %1936 = vset.pattern.permute.xlu0 0
  %1937 = vperm.xlu0 %1936, %v89
  %v1938 = vpop.permute.xlu0 %1937
  %1941 = vset.pattern.permute.xlu0 0
  %1942 = vperm.xlu0 %1941, %v90
  %v1943 = vpop.permute.xlu0 %1942
  %1946 = vset.pattern.permute.xlu0 0
  %1947 = vperm.xlu0 %1946, %v91
  %v1948 = vpop.permute.xlu0 %1947
  %1951 = vset.pattern.permute.xlu0 0
  %1952 = vperm.xlu0 %1951, %v92
  %v1953 = vpop.permute.xlu0 %1952
  %1956 = vset.pattern.permute.xlu0 0
  %1957 = vperm.xlu0 %1956, %v93
  %v1958 = vpop.permute.xlu0 %1957
  %1961 = vset.pattern.permute.xlu0 0
  %1962 = vperm.xlu0 %1961, %v94
  %v1963 = vpop.permute.xlu0 %1962
  %1966 = vset.pattern.permute.xlu0 0
  %1967 = vperm.xlu0 %1966, %v95
  %v1968 = vpop.permute.xlu0 %1967
  %v1970 = vmul.f32 %v1922, %v1933
  %v1971 = vmul.f32 %v1923, %v1938
  %v1972 = vmul.f32 %v1924, %v1943
  %v1973 = vmul.f32 %v1925, %v1948
  %v1974 = vmul.f32 %v1926, %v1953
  %v1975 = vmul.f32 %v1927, %v1958
  %v1976 = vmul.f32 %v1928, %v1963
  %v1977 = vmul.f32 %v1929, %v1968
  %1979 = vset.pattern.permute.xlu0 0
  %1980 = vperm.xlu0 %1979, %v96
  %v1981 = vpop.permute.xlu0 %1980
  %1984 = vset.pattern.permute.xlu0 0
  %1985 = vperm.xlu0 %1984, %v97
  %v1986 = vpop.permute.xlu0 %1985
  %1989 = vset.pattern.permute.xlu0 0
  %1990 = vperm.xlu0 %1989, %v98
  %v1991 = vpop.permute.xlu0 %1990
  %1994 = vset.pattern.permute.xlu0 0
  %1995 = vperm.xlu0 %1994, %v99
  %v1996 = vpop.permute.xlu0 %1995
  %1999 = vset.pattern.permute.xlu0 0
  %2000 = vperm.xlu0 %1999, %v100
  %v2001 = vpop.permute.xlu0 %2000
  %2004 = vset.pattern.permute.xlu0 0
  %2005 = vperm.xlu0 %2004, %v101
  %v2006 = vpop.permute.xlu0 %2005
  %2009 = vset.pattern.permute.xlu0 0
  %2010 = vperm.xlu0 %2009, %v102
  %v2011 = vpop.permute.xlu0 %2010
  %2014 = vset.pattern.permute.xlu0 0
  %2015 = vperm.xlu0 %2014, %v103
  %v2016 = vpop.permute.xlu0 %2015
  %v2018 = vadd.f32 %v1970, %v1981
  %v2019 = vadd.f32 %v1971, %v1986
  %v2020 = vadd.f32 %v1972, %v1991
  %v2021 = vadd.f32 %v1973, %v1996
  %v2022 = vadd.f32 %v1974, %v2001
  %v2023 = vadd.f32 %v1975, %v2006
  %v2024 = vadd.f32 %v1976, %v2011
  %v2025 = vadd.f32 %v1977, %v2016
  %vm2026 = vcmp.ge.f32.partialorder %v2018, 0.0
  %vm2027 = vcmp.ge.f32.partialorder %v2019, 0.0
  %vm2028 = vcmp.ge.f32.partialorder %v2020, 0.0
  %vm2029 = vcmp.ge.f32.partialorder %v2021, 0.0
  %vm2030 = vcmp.ge.f32.partialorder %v2022, 0.0
  %vm2031 = vcmp.ge.f32.partialorder %v2023, 0.0
  %vm2032 = vcmp.ge.f32.partialorder %v2024, 0.0
  %vm2033 = vcmp.ge.f32.partialorder %v2025, 0.0
  %v2034 = vmul.f32 %v2018, 0.3
  %v2035 = vmul.f32 %v2019, 0.3
  %v2036 = vmul.f32 %v2020, 0.3
  %v2037 = vmul.f32 %v2021, 0.3
  %v2038 = vmul.f32 %v2022, 0.3
  %v2039 = vmul.f32 %v2023, 0.3
  %v2040 = vmul.f32 %v2024, 0.3
  %v2041 = vmul.f32 %v2025, 0.3
  %v2042 = vsel %vm2026, %v2018, %v2034
  %v2043 = vsel %vm2027, %v2019, %v2035
  %v2044 = vsel %vm2028, %v2020, %v2036
  %v2045 = vsel %vm2029, %v2021, %v2037
  %v2046 = vsel %vm2030, %v2022, %v2038
  %v2047 = vsel %vm2031, %v2023, %v2039
  %v2048 = vsel %vm2032, %v2024, %v2040
  %v2049 = vsel %vm2033, %v2025, %v2041
  %2050 = vrot.lane.b32.xlu0 %v2042, 1
  %v2051 = vpop.permute.xlu0 %2050
  %2052 = vrot.lane.b32.xlu0 %v2043, 1
  %v2053 = vpop.permute.xlu0 %2052
  %2054 = vrot.lane.b32.xlu0 %v2044, 1
  %v2055 = vpop.permute.xlu0 %2054
  %2056 = vrot.lane.b32.xlu0 %v2045, 1
  %v2057 = vpop.permute.xlu0 %2056
  %2058 = vrot.lane.b32.xlu0 %v2046, 1
  %v2059 = vpop.permute.xlu0 %2058
  %2060 = vrot.lane.b32.xlu0 %v2047, 1
  %v2061 = vpop.permute.xlu0 %2060
  %2062 = vrot.lane.b32.xlu0 %v2048, 1
  %v2063 = vpop.permute.xlu0 %2062
  %2064 = vrot.lane.b32.xlu0 %v2049, 1
  %v2065 = vpop.permute.xlu0 %2064
  %v2066 = vmul.f32 %v2051, %v862
  %v2067 = vmul.f32 %v2053, %v862
  %v2068 = vmul.f32 %v2055, %v862
  %v2069 = vmul.f32 %v2057, %v862
  %v2070 = vmul.f32 %v2059, %v862
  %v2071 = vmul.f32 %v2061, %v862
  %v2072 = vmul.f32 %v2063, %v862
  %v2073 = vmul.f32 %v2065, %v862
  %2075 = vset.pattern.permute.xlu0 0
  %2076 = vperm.xlu0 %2075, %v156
  %v2077 = vpop.permute.xlu0 %2076
  %2080 = vset.pattern.permute.xlu0 0
  %2081 = vperm.xlu0 %2080, %v157
  %v2082 = vpop.permute.xlu0 %2081
  %2085 = vset.pattern.permute.xlu0 0
  %2086 = vperm.xlu0 %2085, %v158
  %v2087 = vpop.permute.xlu0 %2086
  %2090 = vset.pattern.permute.xlu0 0
  %2091 = vperm.xlu0 %2090, %v159
  %v2092 = vpop.permute.xlu0 %2091
  %2095 = vset.pattern.permute.xlu0 0
  %2096 = vperm.xlu0 %2095, %v160
  %v2097 = vpop.permute.xlu0 %2096
  %2100 = vset.pattern.permute.xlu0 0
  %2101 = vperm.xlu0 %2100, %v161
  %v2102 = vpop.permute.xlu0 %2101
  %2105 = vset.pattern.permute.xlu0 0
  %2106 = vperm.xlu0 %2105, %v162
  %v2107 = vpop.permute.xlu0 %2106
  %2110 = vset.pattern.permute.xlu0 0
  %2111 = vperm.xlu0 %2110, %v163
  %v2112 = vpop.permute.xlu0 %2111
  %v2114 = vmul.f32 %v2077, %v2066
  %v2115 = vmul.f32 %v2082, %v2067
  %v2116 = vmul.f32 %v2087, %v2068
  %v2117 = vmul.f32 %v2092, %v2069
  %v2118 = vmul.f32 %v2097, %v2070
  %v2119 = vmul.f32 %v2102, %v2071
  %v2120 = vmul.f32 %v2107, %v2072
  %v2121 = vmul.f32 %v2112, %v2073
  %2123 = vset.pattern.permute.xlu0 0
  %2124 = vperm.xlu0 %2123, %v184
  %v2125 = vpop.permute.xlu0 %2124
  %2128 = vset.pattern.permute.xlu0 0
  %2129 = vperm.xlu0 %2128, %v185
  %v2130 = vpop.permute.xlu0 %2129
  %2133 = vset.pattern.permute.xlu0 0
  %2134 = vperm.xlu0 %2133, %v186
  %v2135 = vpop.permute.xlu0 %2134
  %2138 = vset.pattern.permute.xlu0 0
  %2139 = vperm.xlu0 %2138, %v187
  %v2140 = vpop.permute.xlu0 %2139
  %2143 = vset.pattern.permute.xlu0 0
  %2144 = vperm.xlu0 %2143, %v188
  %v2145 = vpop.permute.xlu0 %2144
  %2148 = vset.pattern.permute.xlu0 0
  %2149 = vperm.xlu0 %2148, %v189
  %v2150 = vpop.permute.xlu0 %2149
  %2153 = vset.pattern.permute.xlu0 0
  %2154 = vperm.xlu0 %2153, %v190
  %v2155 = vpop.permute.xlu0 %2154
  %2158 = vset.pattern.permute.xlu0 0
  %2159 = vperm.xlu0 %2158, %v191
  %v2160 = vpop.permute.xlu0 %2159
  %v2162 = vmul.f32 %v2125, %v2042
  %v2163 = vmul.f32 %v2130, %v2043
  %v2164 = vmul.f32 %v2135, %v2044
  %v2165 = vmul.f32 %v2140, %v2045
  %v2166 = vmul.f32 %v2145, %v2046
  %v2167 = vmul.f32 %v2150, %v2047
  %v2168 = vmul.f32 %v2155, %v2048
  %v2169 = vmul.f32 %v2160, %v2049
  %v2170 = vadd.f32 %v2114, %v2162
  %v2171 = vadd.f32 %v2115, %v2163
  %v2172 = vadd.f32 %v2116, %v2164
  %v2173 = vadd.f32 %v2117, %v2165
  %v2174 = vadd.f32 %v2118, %v2166
  %v2175 = vadd.f32 %v2119, %v2167
  %v2176 = vadd.f32 %v2120, %v2168
  %v2177 = vadd.f32 %v2121, %v2169
  %2178 = vrot.lane.b32.xlu0 %v2042, 127
  %v2179 = vpop.permute.xlu0 %2178
  %2180 = vrot.lane.b32.xlu0 %v2043, 127
  %v2181 = vpop.permute.xlu0 %2180
  %2182 = vrot.lane.b32.xlu0 %v2044, 127
  %v2183 = vpop.permute.xlu0 %2182
  %2184 = vrot.lane.b32.xlu0 %v2045, 127
  %v2185 = vpop.permute.xlu0 %2184
  %2186 = vrot.lane.b32.xlu0 %v2046, 127
  %v2187 = vpop.permute.xlu0 %2186
  %2188 = vrot.lane.b32.xlu0 %v2047, 127
  %v2189 = vpop.permute.xlu0 %2188
  %2190 = vrot.lane.b32.xlu0 %v2048, 127
  %v2191 = vpop.permute.xlu0 %2190
  %2192 = vrot.lane.b32.xlu0 %v2049, 127
  %v2193 = vpop.permute.xlu0 %2192
  %v2194 = vmul.f32 %v2179, %v872
  %v2195 = vmul.f32 %v2181, %v872
  %v2196 = vmul.f32 %v2183, %v872
  %v2197 = vmul.f32 %v2185, %v872
  %v2198 = vmul.f32 %v2187, %v872
  %v2199 = vmul.f32 %v2189, %v872
  %v2200 = vmul.f32 %v2191, %v872
  %v2201 = vmul.f32 %v2193, %v872
  %2203 = vset.pattern.permute.xlu0 0
  %2204 = vperm.xlu0 %2203, %v212
  %v2205 = vpop.permute.xlu0 %2204
  %2208 = vset.pattern.permute.xlu0 0
  %2209 = vperm.xlu0 %2208, %v213
  %v2210 = vpop.permute.xlu0 %2209
  %2213 = vset.pattern.permute.xlu0 0
  %2214 = vperm.xlu0 %2213, %v214
  %v2215 = vpop.permute.xlu0 %2214
  %2218 = vset.pattern.permute.xlu0 0
  %2219 = vperm.xlu0 %2218, %v215
  %v2220 = vpop.permute.xlu0 %2219
  %2223 = vset.pattern.permute.xlu0 0
  %2224 = vperm.xlu0 %2223, %v216
  %v2225 = vpop.permute.xlu0 %2224
  %2228 = vset.pattern.permute.xlu0 0
  %2229 = vperm.xlu0 %2228, %v217
  %v2230 = vpop.permute.xlu0 %2229
  %2233 = vset.pattern.permute.xlu0 0
  %2234 = vperm.xlu0 %2233, %v218
  %v2235 = vpop.permute.xlu0 %2234
  %2238 = vset.pattern.permute.xlu0 0
  %2239 = vperm.xlu0 %2238, %v219
  %v2240 = vpop.permute.xlu0 %2239
  %v2242 = vmul.f32 %v2205, %v2194
  %v2243 = vmul.f32 %v2210, %v2195
  %v2244 = vmul.f32 %v2215, %v2196
  %v2245 = vmul.f32 %v2220, %v2197
  %v2246 = vmul.f32 %v2225, %v2198
  %v2247 = vmul.f32 %v2230, %v2199
  %v2248 = vmul.f32 %v2235, %v2200
  %v2249 = vmul.f32 %v2240, %v2201
  %v2250 = vadd.f32 %v2170, %v2242
  %v2251 = vadd.f32 %v2171, %v2243
  %v2252 = vadd.f32 %v2172, %v2244
  %v2253 = vadd.f32 %v2173, %v2245
  %v2254 = vadd.f32 %v2174, %v2246
  %v2255 = vadd.f32 %v2175, %v2247
  %v2256 = vadd.f32 %v2176, %v2248
  %v2257 = vadd.f32 %v2177, %v2249
  %v2258 = vpack.c.bf16 %v2251, %v2250
  %v2259 = vpack.c.bf16 %v2253, %v2252
  %v2260 = vpack.c.bf16 %v2255, %v2254
  %v2261 = vpack.c.bf16 %v2257, %v2256
  %v2270 = vunpack.c.l.b16 %v237
  %v2271 = vunpack.c.l.b16 %v240
  %v2272 = vunpack.c.l.b16 %v243
  %v2273 = vunpack.c.l.b16 %v246
  %v2274 = vunpack.c.l.b16 %v249
  %v2275 = vunpack.c.l.b16 %v252
  %v2276 = vunpack.c.l.b16 %v255
  %v2277 = vunpack.c.l.b16 %v258
  %v2278 = vpack.c.b16 %v2271, %v2270
  %v2279 = vpack.c.b16 %v2273, %v2272
  %v2280 = vpack.c.b16 %v2275, %v2274
  %v2281 = vpack.c.b16 %v2277, %v2276
  %vm2282 = vcmask 523264
  %v2284 = vsel %vm2282, %v2278, 0
  %v2287 = vsel %vm2282, %v2279, 0
  %v2290 = vsel %vm2282, %v2280, 0
  %v2293 = vsel %vm2282, %v2281, 0
  %2295 = vmatprep.subr.bf16.mxu0 0
  %2296 = vmatpush1.bf16.msra.mxu0 %v2258
  %2297 = vmatprep.subr.bf16.mxu0 0
  %2298 = vmatpush1.bf16.msra.mxu0 %v2259
  %2299 = vmatprep.subr.bf16.mxu0 0
  %2300 = vmatpush1.bf16.msra.mxu0 %v2260
  %2301 = vmatprep.subr.bf16.mxu0 0
  %2302 = vmatpush1.bf16.msra.mxu0 %v2261
  %2303 = vmatprep.subr.bf16.mxu0 0
  %2304 = vmatpush1.bf16.msra.mxu0 0
  %2305 = vmatprep.subr.bf16.mxu0 0
  %2306 = vmatpush1.bf16.msra.mxu0 0
  %2307 = vmatprep.subr.bf16.mxu0 0
  %2308 = vmatpush1.bf16.msra.mxu0 0
  %2309 = vmatprep.subr.bf16.mxu0 0
  %2310 = vmatpush1.bf16.msra.mxu0 0
  %2311 = vmatprep.subr.bf16.mxu0 0
  %2312 = vmatpush1.bf16.msra.mxu0 0
  %2313 = vmatprep.subr.bf16.mxu0 0
  %2314 = vmatpush1.bf16.msra.mxu0 0
  %2315 = vmatprep.subr.bf16.mxu0 0
  %2316 = vmatpush1.bf16.msra.mxu0 0
  %2317 = vmatprep.subr.bf16.mxu0 0
  %2318 = vmatpush1.bf16.msra.mxu0 0
  %2319 = vmatprep.subr.bf16.mxu0 0
  %2320 = vmatpush1.bf16.msra.mxu0 0
  %2321 = vmatprep.subr.bf16.mxu0 0
  %2322 = vmatpush1.bf16.msra.mxu0 0
  %2323 = vmatprep.subr.bf16.mxu0 0
  %2324 = vmatpush1.bf16.msra.mxu0 0
  %2325 = vmatprep.subr.bf16.mxu0 0
  %2326 = vmatpush1.bf16.msra.mxu0 0
  %2327 = vmatprep.mubr.bf16.mxu0 0
  %2328 = vmatmul.mubr.bf16.gmra.mrb[0].mxu0 %v2284
  %v2329 = vpop.f32.mrb[0].mxu0
  %v2330 = vadd.f32 0.0, %v2329
  %v2331 = vpop.f32.mrb[0].mxu0
  %v2332 = vpop.f32.mrb[0].mxu0
  %v2333 = vadd.f32 0.0, %v2332
  %v2334 = vpop.f32.mrb[0].mxu0
  %2335 = vmatprep.mubr.bf16.mxu0 0
  %2336 = vmatmul.mubr.bf16.gmra.mrb[0].mxu0 %v2287
  %v2337 = vpop.f32.mrb[0].mxu0
  %v2338 = vadd.f32 0.0, %v2337
  %v2339 = vpop.f32.mrb[0].mxu0
  %v2340 = vpop.f32.mrb[0].mxu0
  %v2341 = vadd.f32 0.0, %v2340
  %v2342 = vpop.f32.mrb[0].mxu0
  %2343 = vmatprep.mubr.bf16.mxu0 0
  %2344 = vmatmul.mubr.bf16.gmra.mrb[0].mxu0 %v2290
  %v2345 = vpop.f32.mrb[0].mxu0
  %v2346 = vadd.f32 0.0, %v2345
  %v2347 = vpop.f32.mrb[0].mxu0
  %v2348 = vpop.f32.mrb[0].mxu0
  %v2349 = vadd.f32 0.0, %v2348
  %v2350 = vpop.f32.mrb[0].mxu0
  %2351 = vmatprep.mubr.bf16.mxu0 0
  %2352 = vmatmul.mubr.bf16.gmra.mrb[0].mxu0 %v2293
  %v2353 = vpop.f32.mrb[0].mxu0
  %v2354 = vadd.f32 0.0, %v2353
  %v2355 = vpop.f32.mrb[0].mxu0
  %v2356 = vpop.f32.mrb[0].mxu0
  %v2357 = vadd.f32 0.0, %v2356
  %v2358 = vpop.f32.mrb[0].mxu0
  %2359 = vdwg.mxu0
  %2360 = vadd.xlane.f32.xlu0 %v2330
  %v2361 = vpop.xlane.xlu0 %2360
  %2362 = vadd.xlane.f32.xlu0 %v2333
  %v2363 = vpop.xlane.xlu0 %2362
  %2364 = vadd.xlane.f32.xlu0 %v2338
  %v2365 = vpop.xlane.xlu0 %2364
  %2366 = vadd.xlane.f32.xlu0 %v2341
  %v2367 = vpop.xlane.xlu0 %2366
  %2368 = vadd.xlane.f32.xlu0 %v2346
  %v2369 = vpop.xlane.xlu0 %2368
  %2370 = vadd.xlane.f32.xlu0 %v2349
  %v2371 = vpop.xlane.xlu0 %2370
  %2372 = vadd.xlane.f32.xlu0 %v2354
  %v2373 = vpop.xlane.xlu0 %2372
  %2374 = vadd.xlane.f32.xlu0 %v2357
  %v2375 = vpop.xlane.xlu0 %2374
  %v2376 = vmul.f32 %v2330, %v2330
  %v2377 = vmul.f32 %v2333, %v2333
  %v2378 = vmul.f32 %v2338, %v2338
  %v2379 = vmul.f32 %v2341, %v2341
  %v2380 = vmul.f32 %v2346, %v2346
  %v2381 = vmul.f32 %v2349, %v2349
  %v2382 = vmul.f32 %v2354, %v2354
  %v2383 = vmul.f32 %v2357, %v2357
  %2384 = vadd.xlane.f32.xlu0 %v2376
  %v2385 = vpop.xlane.xlu0 %2384
  %2386 = vadd.xlane.f32.xlu0 %v2377
  %v2387 = vpop.xlane.xlu0 %2386
  %2388 = vadd.xlane.f32.xlu0 %v2378
  %v2389 = vpop.xlane.xlu0 %2388
  %2390 = vadd.xlane.f32.xlu0 %v2379
  %v2391 = vpop.xlane.xlu0 %2390
  %2392 = vadd.xlane.f32.xlu0 %v2380
  %v2393 = vpop.xlane.xlu0 %2392
  %2394 = vadd.xlane.f32.xlu0 %v2381
  %v2395 = vpop.xlane.xlu0 %2394
  %2396 = vadd.xlane.f32.xlu0 %v2382
  %v2397 = vpop.xlane.xlu0 %2396
  %2398 = vadd.xlane.f32.xlu0 %v2383
  %v2399 = vpop.xlane.xlu0 %2398
  %v2400 = vmul.f32 %v2361, 0.0078125
  %v2401 = vmul.f32 %v2363, 0.0078125
  %v2402 = vmul.f32 %v2365, 0.0078125
  %v2403 = vmul.f32 %v2367, 0.0078125
  %v2404 = vmul.f32 %v2369, 0.0078125
  %v2405 = vmul.f32 %v2371, 0.0078125
  %v2406 = vmul.f32 %v2373, 0.0078125
  %v2407 = vmul.f32 %v2375, 0.0078125
  %v2408 = vmul.f32 %v2385, 0.0078125
  %v2409 = vmul.f32 %v2387, 0.0078125
  %v2410 = vmul.f32 %v2389, 0.0078125
  %v2411 = vmul.f32 %v2391, 0.0078125
  %v2412 = vmul.f32 %v2393, 0.0078125
  %v2413 = vmul.f32 %v2395, 0.0078125
  %v2414 = vmul.f32 %v2397, 0.0078125
  %v2415 = vmul.f32 %v2399, 0.0078125
  %v2416 = vmul.f32 %v2400, %v2400
  %v2417 = vmul.f32 %v2401, %v2401
  %v2418 = vmul.f32 %v2402, %v2402
  %v2419 = vmul.f32 %v2403, %v2403
  %v2420 = vmul.f32 %v2404, %v2404
  %v2421 = vmul.f32 %v2405, %v2405
  %v2422 = vmul.f32 %v2406, %v2406
  %v2423 = vmul.f32 %v2407, %v2407
  %v2424 = vsub.f32 %v2408, %v2416
  %v2425 = vsub.f32 %v2409, %v2417
  %v2426 = vsub.f32 %v2410, %v2418
  %v2427 = vsub.f32 %v2411, %v2419
  %v2428 = vsub.f32 %v2412, %v2420
  %v2429 = vsub.f32 %v2413, %v2421
  %v2430 = vsub.f32 %v2414, %v2422
  %v2431 = vsub.f32 %v2415, %v2423
  %v2432 = vmax.f32 %v2424, 0.0
  %v2433 = vmax.f32 %v2425, 0.0
  %v2434 = vmax.f32 %v2426, 0.0
  %v2435 = vmax.f32 %v2427, 0.0
  %v2436 = vmax.f32 %v2428, 0.0
  %v2437 = vmax.f32 %v2429, 0.0
  %v2438 = vmax.f32 %v2430, 0.0
  %v2439 = vmax.f32 %v2431, 0.0
  %v2440 = vsub.f32 %v2330, %v2400
  %v2441 = vsub.f32 %v2333, %v2401
  %v2442 = vsub.f32 %v2338, %v2402
  %v2443 = vsub.f32 %v2341, %v2403
  %v2444 = vsub.f32 %v2346, %v2404
  %v2445 = vsub.f32 %v2349, %v2405
  %v2446 = vsub.f32 %v2354, %v2406
  %v2447 = vsub.f32 %v2357, %v2407
  %v2448 = vadd.f32 %v2432, 1e-05
  %v2449 = vadd.f32 %v2433, 1e-05
  %v2450 = vadd.f32 %v2434, 1e-05
  %v2451 = vadd.f32 %v2435, 1e-05
  %v2452 = vadd.f32 %v2436, 1e-05
  %v2453 = vadd.f32 %v2437, 1e-05
  %v2454 = vadd.f32 %v2438, 1e-05
  %v2455 = vadd.f32 %v2439, 1e-05
  %v2456 = vrsqrt.pop %v2448
  %v2457 = vrsqrt.pop %v2449
  %v2458 = vrsqrt.pop %v2450
  %v2459 = vrsqrt.pop %v2451
  %v2460 = vrsqrt.pop %v2452
  %v2461 = vrsqrt.pop %v2453
  %v2462 = vrsqrt.pop %v2454
  %v2463 = vrsqrt.pop %v2455
  %v2464 = vmul.f32 %v2440, %v2456
  %v2465 = vmul.f32 %v2441, %v2457
  %v2466 = vmul.f32 %v2442, %v2458
  %v2467 = vmul.f32 %v2443, %v2459
  %v2468 = vmul.f32 %v2444, %v2460
  %v2469 = vmul.f32 %v2445, %v2461
  %v2470 = vmul.f32 %v2446, %v2462
  %v2471 = vmul.f32 %v2447, %v2463
  %2473 = vset.pattern.permute.xlu0 0
  %2474 = vperm.xlu0 %2473, %v104
  %v2475 = vpop.permute.xlu0 %2474
  %2478 = vset.pattern.permute.xlu0 0
  %2479 = vperm.xlu0 %2478, %v105
  %v2480 = vpop.permute.xlu0 %2479
  %2483 = vset.pattern.permute.xlu0 0
  %2484 = vperm.xlu0 %2483, %v106
  %v2485 = vpop.permute.xlu0 %2484
  %2488 = vset.pattern.permute.xlu0 0
  %2489 = vperm.xlu0 %2488, %v107
  %v2490 = vpop.permute.xlu0 %2489
  %2493 = vset.pattern.permute.xlu0 0
  %2494 = vperm.xlu0 %2493, %v108
  %v2495 = vpop.permute.xlu0 %2494
  %2498 = vset.pattern.permute.xlu0 0
  %2499 = vperm.xlu0 %2498, %v109
  %v2500 = vpop.permute.xlu0 %2499
  %2503 = vset.pattern.permute.xlu0 0
  %2504 = vperm.xlu0 %2503, %v110
  %v2505 = vpop.permute.xlu0 %2504
  %2508 = vset.pattern.permute.xlu0 0
  %2509 = vperm.xlu0 %2508, %v111
  %v2510 = vpop.permute.xlu0 %2509
  %v2512 = vmul.f32 %v2464, %v2475
  %v2513 = vmul.f32 %v2465, %v2480
  %v2514 = vmul.f32 %v2466, %v2485
  %v2515 = vmul.f32 %v2467, %v2490
  %v2516 = vmul.f32 %v2468, %v2495
  %v2517 = vmul.f32 %v2469, %v2500
  %v2518 = vmul.f32 %v2470, %v2505
  %v2519 = vmul.f32 %v2471, %v2510
  %2521 = vset.pattern.permute.xlu0 0
  %2522 = vperm.xlu0 %2521, %v112
  %v2523 = vpop.permute.xlu0 %2522
  %2526 = vset.pattern.permute.xlu0 0
  %2527 = vperm.xlu0 %2526, %v113
  %v2528 = vpop.permute.xlu0 %2527
  %2531 = vset.pattern.permute.xlu0 0
  %2532 = vperm.xlu0 %2531, %v114
  %v2533 = vpop.permute.xlu0 %2532
  %2536 = vset.pattern.permute.xlu0 0
  %2537 = vperm.xlu0 %2536, %v115
  %v2538 = vpop.permute.xlu0 %2537
  %2541 = vset.pattern.permute.xlu0 0
  %2542 = vperm.xlu0 %2541, %v116
  %v2543 = vpop.permute.xlu0 %2542
  %2546 = vset.pattern.permute.xlu0 0
  %2547 = vperm.xlu0 %2546, %v117
  %v2548 = vpop.permute.xlu0 %2547
  %2551 = vset.pattern.permute.xlu0 0
  %2552 = vperm.xlu0 %2551, %v118
  %v2553 = vpop.permute.xlu0 %2552
  %2556 = vset.pattern.permute.xlu0 0
  %2557 = vperm.xlu0 %2556, %v119
  %v2558 = vpop.permute.xlu0 %2557
  %v2560 = vadd.f32 %v2512, %v2523
  %v2561 = vadd.f32 %v2513, %v2528
  %v2562 = vadd.f32 %v2514, %v2533
  %v2563 = vadd.f32 %v2515, %v2538
  %v2564 = vadd.f32 %v2516, %v2543
  %v2565 = vadd.f32 %v2517, %v2548
  %v2566 = vadd.f32 %v2518, %v2553
  %v2567 = vadd.f32 %v2519, %v2558
  %v2568 = vadd.f32 %v2560, %v1615
  %v2569 = vadd.f32 %v2561, %v1616
  %v2570 = vadd.f32 %v2562, %v1617
  %v2571 = vadd.f32 %v2563, %v1618
  %v2572 = vadd.f32 %v2564, %v1619
  %v2573 = vadd.f32 %v2565, %v1620
  %v2574 = vadd.f32 %v2566, %v1621
  %v2575 = vadd.f32 %v2567, %v1622
  %vm2576 = vcmp.ge.f32.partialorder %v2568, 0.0
  %vm2577 = vcmp.ge.f32.partialorder %v2569, 0.0
  %vm2578 = vcmp.ge.f32.partialorder %v2570, 0.0
  %vm2579 = vcmp.ge.f32.partialorder %v2571, 0.0
  %vm2580 = vcmp.ge.f32.partialorder %v2572, 0.0
  %vm2581 = vcmp.ge.f32.partialorder %v2573, 0.0
  %vm2582 = vcmp.ge.f32.partialorder %v2574, 0.0
  %vm2583 = vcmp.ge.f32.partialorder %v2575, 0.0
  %v2584 = vmul.f32 %v2568, 0.3
  %v2585 = vmul.f32 %v2569, 0.3
  %v2586 = vmul.f32 %v2570, 0.3
  %v2587 = vmul.f32 %v2571, 0.3
  %v2588 = vmul.f32 %v2572, 0.3
  %v2589 = vmul.f32 %v2573, 0.3
  %v2590 = vmul.f32 %v2574, 0.3
  %v2591 = vmul.f32 %v2575, 0.3
  %v2592 = vsel %vm2576, %v2568, %v2584
  %v2593 = vsel %vm2577, %v2569, %v2585
  %v2594 = vsel %vm2578, %v2570, %v2586
  %v2595 = vsel %vm2579, %v2571, %v2587
  %v2596 = vsel %vm2580, %v2572, %v2588
  %v2597 = vsel %vm2581, %v2573, %v2589
  %v2598 = vsel %vm2582, %v2574, %v2590
  %v2599 = vsel %vm2583, %v2575, %v2591
  %2600 = vrot.lane.b32.xlu0 %v2592, 1
  %v2601 = vpop.permute.xlu0 %2600
  %2602 = vrot.lane.b32.xlu0 %v2593, 1
  %v2603 = vpop.permute.xlu0 %2602
  %2604 = vrot.lane.b32.xlu0 %v2594, 1
  %v2605 = vpop.permute.xlu0 %2604
  %2606 = vrot.lane.b32.xlu0 %v2595, 1
  %v2607 = vpop.permute.xlu0 %2606
  %2608 = vrot.lane.b32.xlu0 %v2596, 1
  %v2609 = vpop.permute.xlu0 %2608
  %2610 = vrot.lane.b32.xlu0 %v2597, 1
  %v2611 = vpop.permute.xlu0 %2610
  %2612 = vrot.lane.b32.xlu0 %v2598, 1
  %v2613 = vpop.permute.xlu0 %2612
  %2614 = vrot.lane.b32.xlu0 %v2599, 1
  %v2615 = vpop.permute.xlu0 %2614
  %v2616 = vmul.f32 %v2601, %v862
  %v2617 = vmul.f32 %v2603, %v862
  %v2618 = vmul.f32 %v2605, %v862
  %v2619 = vmul.f32 %v2607, %v862
  %v2620 = vmul.f32 %v2609, %v862
  %v2621 = vmul.f32 %v2611, %v862
  %v2622 = vmul.f32 %v2613, %v862
  %v2623 = vmul.f32 %v2615, %v862
  %2625 = vset.pattern.permute.xlu0 0
  %2626 = vperm.xlu0 %2625, %v164
  %v2627 = vpop.permute.xlu0 %2626
  %2630 = vset.pattern.permute.xlu0 0
  %2631 = vperm.xlu0 %2630, %v165
  %v2632 = vpop.permute.xlu0 %2631
  %2635 = vset.pattern.permute.xlu0 0
  %2636 = vperm.xlu0 %2635, %v166
  %v2637 = vpop.permute.xlu0 %2636
  %2640 = vset.pattern.permute.xlu0 0
  %2641 = vperm.xlu0 %2640, %v167
  %v2642 = vpop.permute.xlu0 %2641
  %2645 = vset.pattern.permute.xlu0 0
  %2646 = vperm.xlu0 %2645, %v168
  %v2647 = vpop.permute.xlu0 %2646
  %2650 = vset.pattern.permute.xlu0 0
  %2651 = vperm.xlu0 %2650, %v169
  %v2652 = vpop.permute.xlu0 %2651
  %2655 = vset.pattern.permute.xlu0 0
  %2656 = vperm.xlu0 %2655, %v170
  %v2657 = vpop.permute.xlu0 %2656
  %2660 = vset.pattern.permute.xlu0 0
  %2661 = vperm.xlu0 %2660, %v171
  %v2662 = vpop.permute.xlu0 %2661
  %v2664 = vmul.f32 %v2627, %v2616
  %v2665 = vmul.f32 %v2632, %v2617
  %v2666 = vmul.f32 %v2637, %v2618
  %v2667 = vmul.f32 %v2642, %v2619
  %v2668 = vmul.f32 %v2647, %v2620
  %v2669 = vmul.f32 %v2652, %v2621
  %v2670 = vmul.f32 %v2657, %v2622
  %v2671 = vmul.f32 %v2662, %v2623
  %2673 = vset.pattern.permute.xlu0 0
  %2674 = vperm.xlu0 %2673, %v192
  %v2675 = vpop.permute.xlu0 %2674
  %2678 = vset.pattern.permute.xlu0 0
  %2679 = vperm.xlu0 %2678, %v193
  %v2680 = vpop.permute.xlu0 %2679
  %2683 = vset.pattern.permute.xlu0 0
  %2684 = vperm.xlu0 %2683, %v194
  %v2685 = vpop.permute.xlu0 %2684
  %2688 = vset.pattern.permute.xlu0 0
  %2689 = vperm.xlu0 %2688, %v195
  %v2690 = vpop.permute.xlu0 %2689
  %2693 = vset.pattern.permute.xlu0 0
  %2694 = vperm.xlu0 %2693, %v196
  %v2695 = vpop.permute.xlu0 %2694
  %2698 = vset.pattern.permute.xlu0 0
  %2699 = vperm.xlu0 %2698, %v197
  %v2700 = vpop.permute.xlu0 %2699
  %2703 = vset.pattern.permute.xlu0 0
  %2704 = vperm.xlu0 %2703, %v198
  %v2705 = vpop.permute.xlu0 %2704
  %2708 = vset.pattern.permute.xlu0 0
  %2709 = vperm.xlu0 %2708, %v199
  %v2710 = vpop.permute.xlu0 %2709
  %v2712 = vmul.f32 %v2675, %v2592
  %v2713 = vmul.f32 %v2680, %v2593
  %v2714 = vmul.f32 %v2685, %v2594
  %v2715 = vmul.f32 %v2690, %v2595
  %v2716 = vmul.f32 %v2695, %v2596
  %v2717 = vmul.f32 %v2700, %v2597
  %v2718 = vmul.f32 %v2705, %v2598
  %v2719 = vmul.f32 %v2710, %v2599
  %v2720 = vadd.f32 %v2664, %v2712
  %v2721 = vadd.f32 %v2665, %v2713
  %v2722 = vadd.f32 %v2666, %v2714
  %v2723 = vadd.f32 %v2667, %v2715
  %v2724 = vadd.f32 %v2668, %v2716
  %v2725 = vadd.f32 %v2669, %v2717
  %v2726 = vadd.f32 %v2670, %v2718
  %v2727 = vadd.f32 %v2671, %v2719
  %2728 = vrot.lane.b32.xlu0 %v2592, 127
  %v2729 = vpop.permute.xlu0 %2728
  %2730 = vrot.lane.b32.xlu0 %v2593, 127
  %v2731 = vpop.permute.xlu0 %2730
  %2732 = vrot.lane.b32.xlu0 %v2594, 127
  %v2733 = vpop.permute.xlu0 %2732
  %2734 = vrot.lane.b32.xlu0 %v2595, 127
  %v2735 = vpop.permute.xlu0 %2734
  %2736 = vrot.lane.b32.xlu0 %v2596, 127
  %v2737 = vpop.permute.xlu0 %2736
  %2738 = vrot.lane.b32.xlu0 %v2597, 127
  %v2739 = vpop.permute.xlu0 %2738
  %2740 = vrot.lane.b32.xlu0 %v2598, 127
  %v2741 = vpop.permute.xlu0 %2740
  %2742 = vrot.lane.b32.xlu0 %v2599, 127
  %v2743 = vpop.permute.xlu0 %2742
  %v2744 = vmul.f32 %v2729, %v872
  %v2745 = vmul.f32 %v2731, %v872
  %v2746 = vmul.f32 %v2733, %v872
  %v2747 = vmul.f32 %v2735, %v872
  %v2748 = vmul.f32 %v2737, %v872
  %v2749 = vmul.f32 %v2739, %v872
  %v2750 = vmul.f32 %v2741, %v872
  %v2751 = vmul.f32 %v2743, %v872
  %2753 = vset.pattern.permute.xlu0 0
  %2754 = vperm.xlu0 %2753, %v220
  %v2755 = vpop.permute.xlu0 %2754
  %2758 = vset.pattern.permute.xlu0 0
  %2759 = vperm.xlu0 %2758, %v221
  %v2760 = vpop.permute.xlu0 %2759
  %2763 = vset.pattern.permute.xlu0 0
  %2764 = vperm.xlu0 %2763, %v222
  %v2765 = vpop.permute.xlu0 %2764
  %2768 = vset.pattern.permute.xlu0 0
  %2769 = vperm.xlu0 %2768, %v223
  %v2770 = vpop.permute.xlu0 %2769
  %2773 = vset.pattern.permute.xlu0 0
  %2774 = vperm.xlu0 %2773, %v224
  %v2775 = vpop.permute.xlu0 %2774
  %2778 = vset.pattern.permute.xlu0 0
  %2779 = vperm.xlu0 %2778, %v225
  %v2780 = vpop.permute.xlu0 %2779
  %2783 = vset.pattern.permute.xlu0 0
  %2784 = vperm.xlu0 %2783, %v226
  %v2785 = vpop.permute.xlu0 %2784
  %2788 = vset.pattern.permute.xlu0 0
  %2789 = vperm.xlu0 %2788, %v227
  %v2790 = vpop.permute.xlu0 %2789
  %v2792 = vmul.f32 %v2755, %v2744
  %v2793 = vmul.f32 %v2760, %v2745
  %v2794 = vmul.f32 %v2765, %v2746
  %v2795 = vmul.f32 %v2770, %v2747
  %v2796 = vmul.f32 %v2775, %v2748
  %v2797 = vmul.f32 %v2780, %v2749
  %v2798 = vmul.f32 %v2785, %v2750
  %v2799 = vmul.f32 %v2790, %v2751
  %v2800 = vadd.f32 %v2720, %v2792
  %v2801 = vadd.f32 %v2721, %v2793
  %v2802 = vadd.f32 %v2722, %v2794
  %v2803 = vadd.f32 %v2723, %v2795
  %v2804 = vadd.f32 %v2724, %v2796
  %v2805 = vadd.f32 %v2725, %v2797
  %v2806 = vadd.f32 %v2726, %v2798
  %v2807 = vadd.f32 %v2727, %v2799
  %v2808 = vpack.c.bf16 %v2801, %v2800
  %v2809 = vpack.c.bf16 %v2803, %v2802
  %v2810 = vpack.c.bf16 %v2805, %v2804
  %v2811 = vpack.c.bf16 %v2807, %v2806
  %v2812 = vunpack.c.h.b16 %v237
  %v2813 = vunpack.c.h.b16 %v240
  %v2814 = vunpack.c.h.b16 %v243
  %v2815 = vunpack.c.h.b16 %v246
  %v2816 = vunpack.c.h.b16 %v249
  %v2817 = vunpack.c.h.b16 %v252
  %v2818 = vunpack.c.h.b16 %v255
  %v2819 = vunpack.c.h.b16 %v258
  %v2820 = vpack.c.b16 %v2813, %v2812
  %v2821 = vpack.c.b16 %v2815, %v2814
  %v2822 = vpack.c.b16 %v2817, %v2816
  %v2823 = vpack.c.b16 %v2819, %v2818
  %v2825 = vsel %vm2282, %v2820, 0
  %v2828 = vsel %vm2282, %v2821, 0
  %v2831 = vsel %vm2282, %v2822, 0
  %v2834 = vsel %vm2282, %v2823, 0
  %2836 = vmatprep.subr.bf16.mxu0 0
  %2837 = vmatpush1.bf16.msra.mxu0 %v2808
  %2838 = vmatprep.subr.bf16.mxu0 0
  %2839 = vmatpush1.bf16.msra.mxu0 %v2809
  %2840 = vmatprep.subr.bf16.mxu0 0
  %2841 = vmatpush1.bf16.msra.mxu0 %v2810
  %2842 = vmatprep.subr.bf16.mxu0 0
  %2843 = vmatpush1.bf16.msra.mxu0 %v2811
  %2844 = vmatprep.subr.bf16.mxu0 0
  %2845 = vmatpush1.bf16.msra.mxu0 0
  %2846 = vmatprep.subr.bf16.mxu0 0
  %2847 = vmatpush1.bf16.msra.mxu0 0
  %2848 = vmatprep.subr.bf16.mxu0 0
  %2849 = vmatpush1.bf16.msra.mxu0 0
  %2850 = vmatprep.subr.bf16.mxu0 0
  %2851 = vmatpush1.bf16.msra.mxu0 0
  %2852 = vmatprep.subr.bf16.mxu0 0
  %2853 = vmatpush1.bf16.msra.mxu0 0
  %2854 = vmatprep.subr.bf16.mxu0 0
  %2855 = vmatpush1.bf16.msra.mxu0 0
  %2856 = vmatprep.subr.bf16.mxu0 0
  %2857 = vmatpush1.bf16.msra.mxu0 0
  %2858 = vmatprep.subr.bf16.mxu0 0
  %2859 = vmatpush1.bf16.msra.mxu0 0
  %2860 = vmatprep.subr.bf16.mxu0 0
  %2861 = vmatpush1.bf16.msra.mxu0 0
  %2862 = vmatprep.subr.bf16.mxu0 0
  %2863 = vmatpush1.bf16.msra.mxu0 0
  %2864 = vmatprep.subr.bf16.mxu0 0
  %2865 = vmatpush1.bf16.msra.mxu0 0
  %2866 = vmatprep.subr.bf16.mxu0 0
  %2867 = vmatpush1.bf16.msra.mxu0 0
  %2868 = vmatprep.mubr.bf16.mxu0 0
  %2869 = vmatmul.mubr.bf16.gmra.mrb[0].mxu0 %v2825
  %v2870 = vpop.f32.mrb[0].mxu0
  %v2871 = vadd.f32 0.0, %v2870
  %v2872 = vpop.f32.mrb[0].mxu0
  %v2873 = vpop.f32.mrb[0].mxu0
  %v2874 = vadd.f32 0.0, %v2873
  %v2875 = vpop.f32.mrb[0].mxu0
  %2876 = vmatprep.mubr.bf16.mxu0 0
  %2877 = vmatmul.mubr.bf16.gmra.mrb[0].mxu0 %v2828
  %v2878 = vpop.f32.mrb[0].mxu0
  %v2879 = vadd.f32 0.0, %v2878
  %v2880 = vpop.f32.mrb[0].mxu0
  %v2881 = vpop.f32.mrb[0].mxu0
  %v2882 = vadd.f32 0.0, %v2881
  %v2883 = vpop.f32.mrb[0].mxu0
  %2884 = vmatprep.mubr.bf16.mxu0 0
  %2885 = vmatmul.mubr.bf16.gmra.mrb[0].mxu0 %v2831
  %v2886 = vpop.f32.mrb[0].mxu0
  %v2887 = vadd.f32 0.0, %v2886
  %v2888 = vpop.f32.mrb[0].mxu0
  %v2889 = vpop.f32.mrb[0].mxu0
  %v2890 = vadd.f32 0.0, %v2889
  %v2891 = vpop.f32.mrb[0].mxu0
  %2892 = vmatprep.mubr.bf16.mxu0 0
  %2893 = vmatmul.mubr.bf16.gmra.mrb[0].mxu0 %v2834
  %v2894 = vpop.f32.mrb[0].mxu0
  %v2895 = vadd.f32 0.0, %v2894
  %v2896 = vpop.f32.mrb[0].mxu0
  %v2897 = vpop.f32.mrb[0].mxu0
  %v2898 = vadd.f32 0.0, %v2897
  %v2899 = vpop.f32.mrb[0].mxu0
  %2900 = vdwg.mxu0
  %2901 = vadd.xlane.f32.xlu0 %v2871
  %v2902 = vpop.xlane.xlu0 %2901
  %2903 = vadd.xlane.f32.xlu0 %v2874
  %v2904 = vpop.xlane.xlu0 %2903
  %2905 = vadd.xlane.f32.xlu0 %v2879
  %v2906 = vpop.xlane.xlu0 %2905
  %2907 = vadd.xlane.f32.xlu0 %v2882
  %v2908 = vpop.xlane.xlu0 %2907
  %2909 = vadd.xlane.f32.xlu0 %v2887
  %v2910 = vpop.xlane.xlu0 %2909
  %2911 = vadd.xlane.f32.xlu0 %v2890
  %v2912 = vpop.xlane.xlu0 %2911
  %2913 = vadd.xlane.f32.xlu0 %v2895
  %v2914 = vpop.xlane.xlu0 %2913
  %2915 = vadd.xlane.f32.xlu0 %v2898
  %v2916 = vpop.xlane.xlu0 %2915
  %v2917 = vmul.f32 %v2871, %v2871
  %v2918 = vmul.f32 %v2874, %v2874
  %v2919 = vmul.f32 %v2879, %v2879
  %v2920 = vmul.f32 %v2882, %v2882
  %v2921 = vmul.f32 %v2887, %v2887
  %v2922 = vmul.f32 %v2890, %v2890
  %v2923 = vmul.f32 %v2895, %v2895
  %v2924 = vmul.f32 %v2898, %v2898
  %2925 = vadd.xlane.f32.xlu0 %v2917
  %v2926 = vpop.xlane.xlu0 %2925
  %2927 = vadd.xlane.f32.xlu0 %v2918
  %v2928 = vpop.xlane.xlu0 %2927
  %2929 = vadd.xlane.f32.xlu0 %v2919
  %v2930 = vpop.xlane.xlu0 %2929
  %2931 = vadd.xlane.f32.xlu0 %v2920
  %v2932 = vpop.xlane.xlu0 %2931
  %2933 = vadd.xlane.f32.xlu0 %v2921
  %v2934 = vpop.xlane.xlu0 %2933
  %2935 = vadd.xlane.f32.xlu0 %v2922
  %v2936 = vpop.xlane.xlu0 %2935
  %2937 = vadd.xlane.f32.xlu0 %v2923
  %v2938 = vpop.xlane.xlu0 %2937
  %2939 = vadd.xlane.f32.xlu0 %v2924
  %v2940 = vpop.xlane.xlu0 %2939
  %v2941 = vmul.f32 %v2902, 0.0078125
  %v2942 = vmul.f32 %v2904, 0.0078125
  %v2943 = vmul.f32 %v2906, 0.0078125
  %v2944 = vmul.f32 %v2908, 0.0078125
  %v2945 = vmul.f32 %v2910, 0.0078125
  %v2946 = vmul.f32 %v2912, 0.0078125
  %v2947 = vmul.f32 %v2914, 0.0078125
  %v2948 = vmul.f32 %v2916, 0.0078125
  %v2949 = vmul.f32 %v2926, 0.0078125
  %v2950 = vmul.f32 %v2928, 0.0078125
  %v2951 = vmul.f32 %v2930, 0.0078125
  %v2952 = vmul.f32 %v2932, 0.0078125
  %v2953 = vmul.f32 %v2934, 0.0078125
  %v2954 = vmul.f32 %v2936, 0.0078125
  %v2955 = vmul.f32 %v2938, 0.0078125
  %v2956 = vmul.f32 %v2940, 0.0078125
  %v2957 = vmul.f32 %v2941, %v2941
  %v2958 = vmul.f32 %v2942, %v2942
  %v2959 = vmul.f32 %v2943, %v2943
  %v2960 = vmul.f32 %v2944, %v2944
  %v2961 = vmul.f32 %v2945, %v2945
  %v2962 = vmul.f32 %v2946, %v2946
  %v2963 = vmul.f32 %v2947, %v2947
  %v2964 = vmul.f32 %v2948, %v2948
  %v2965 = vsub.f32 %v2949, %v2957
  %v2966 = vsub.f32 %v2950, %v2958
  %v2967 = vsub.f32 %v2951, %v2959
  %v2968 = vsub.f32 %v2952, %v2960
  %v2969 = vsub.f32 %v2953, %v2961
  %v2970 = vsub.f32 %v2954, %v2962
  %v2971 = vsub.f32 %v2955, %v2963
  %v2972 = vsub.f32 %v2956, %v2964
  %v2973 = vmax.f32 %v2965, 0.0
  %v2974 = vmax.f32 %v2966, 0.0
  %v2975 = vmax.f32 %v2967, 0.0
  %v2976 = vmax.f32 %v2968, 0.0
  %v2977 = vmax.f32 %v2969, 0.0
  %v2978 = vmax.f32 %v2970, 0.0
  %v2979 = vmax.f32 %v2971, 0.0
  %v2980 = vmax.f32 %v2972, 0.0
  %v2981 = vsub.f32 %v2871, %v2941
  %v2982 = vsub.f32 %v2874, %v2942
  %v2983 = vsub.f32 %v2879, %v2943
  %v2984 = vsub.f32 %v2882, %v2944
  %v2985 = vsub.f32 %v2887, %v2945
  %v2986 = vsub.f32 %v2890, %v2946
  %v2987 = vsub.f32 %v2895, %v2947
  %v2988 = vsub.f32 %v2898, %v2948
  %v2989 = vadd.f32 %v2973, 1e-05
  %v2990 = vadd.f32 %v2974, 1e-05
  %v2991 = vadd.f32 %v2975, 1e-05
  %v2992 = vadd.f32 %v2976, 1e-05
  %v2993 = vadd.f32 %v2977, 1e-05
  %v2994 = vadd.f32 %v2978, 1e-05
  %v2995 = vadd.f32 %v2979, 1e-05
  %v2996 = vadd.f32 %v2980, 1e-05
  %v2997 = vrsqrt.pop %v2989
  %v2998 = vrsqrt.pop %v2990
  %v2999 = vrsqrt.pop %v2991
  %v3000 = vrsqrt.pop %v2992
  %v3001 = vrsqrt.pop %v2993
  %v3002 = vrsqrt.pop %v2994
  %v3003 = vrsqrt.pop %v2995
  %v3004 = vrsqrt.pop %v2996
  %v3005 = vmul.f32 %v2981, %v2997
  %v3006 = vmul.f32 %v2982, %v2998
  %v3007 = vmul.f32 %v2983, %v2999
  %v3008 = vmul.f32 %v2984, %v3000
  %v3009 = vmul.f32 %v2985, %v3001
  %v3010 = vmul.f32 %v2986, %v3002
  %v3011 = vmul.f32 %v2987, %v3003
  %v3012 = vmul.f32 %v2988, %v3004
  %3014 = vset.pattern.permute.xlu0 0
  %3015 = vperm.xlu0 %3014, %v120
  %v3016 = vpop.permute.xlu0 %3015
  %3019 = vset.pattern.permute.xlu0 0
  %3020 = vperm.xlu0 %3019, %v121
  %v3021 = vpop.permute.xlu0 %3020
  %3024 = vset.pattern.permute.xlu0 0
  %3025 = vperm.xlu0 %3024, %v122
  %v3026 = vpop.permute.xlu0 %3025
  %3029 = vset.pattern.permute.xlu0 0
  %3030 = vperm.xlu0 %3029, %v123
  %v3031 = vpop.permute.xlu0 %3030
  %3034 = vset.pattern.permute.xlu0 0
  %3035 = vperm.xlu0 %3034, %v124
  %v3036 = vpop.permute.xlu0 %3035
  %3039 = vset.pattern.permute.xlu0 0
  %3040 = vperm.xlu0 %3039, %v125
  %v3041 = vpop.permute.xlu0 %3040
  %3044 = vset.pattern.permute.xlu0 0
  %3045 = vperm.xlu0 %3044, %v126
  %v3046 = vpop.permute.xlu0 %3045
  %3049 = vset.pattern.permute.xlu0 0
  %3050 = vperm.xlu0 %3049, %v127
  %v3051 = vpop.permute.xlu0 %3050
  %v3053 = vmul.f32 %v3005, %v3016
  %v3054 = vmul.f32 %v3006, %v3021
  %v3055 = vmul.f32 %v3007, %v3026
  %v3056 = vmul.f32 %v3008, %v3031
  %v3057 = vmul.f32 %v3009, %v3036
  %v3058 = vmul.f32 %v3010, %v3041
  %v3059 = vmul.f32 %v3011, %v3046
  %v3060 = vmul.f32 %v3012, %v3051
  %3062 = vset.pattern.permute.xlu0 0
  %3063 = vperm.xlu0 %3062, %v128
  %v3064 = vpop.permute.xlu0 %3063
  %3067 = vset.pattern.permute.xlu0 0
  %3068 = vperm.xlu0 %3067, %v129
  %v3069 = vpop.permute.xlu0 %3068
  %3072 = vset.pattern.permute.xlu0 0
  %3073 = vperm.xlu0 %3072, %v130
  %v3074 = vpop.permute.xlu0 %3073
  %3077 = vset.pattern.permute.xlu0 0
  %3078 = vperm.xlu0 %3077, %v131
  %v3079 = vpop.permute.xlu0 %3078
  %3082 = vset.pattern.permute.xlu0 0
  %3083 = vperm.xlu0 %3082, %v132
  %v3084 = vpop.permute.xlu0 %3083
  %3087 = vset.pattern.permute.xlu0 0
  %3088 = vperm.xlu0 %3087, %v133
  %v3089 = vpop.permute.xlu0 %3088
  %3092 = vset.pattern.permute.xlu0 0
  %3093 = vperm.xlu0 %3092, %v134
  %v3094 = vpop.permute.xlu0 %3093
  %3097 = vset.pattern.permute.xlu0 0
  %3098 = vperm.xlu0 %3097, %v135
  %v3099 = vpop.permute.xlu0 %3098
  %v3101 = vadd.f32 %v3053, %v3064
  %v3102 = vadd.f32 %v3054, %v3069
  %v3103 = vadd.f32 %v3055, %v3074
  %v3104 = vadd.f32 %v3056, %v3079
  %v3105 = vadd.f32 %v3057, %v3084
  %v3106 = vadd.f32 %v3058, %v3089
  %v3107 = vadd.f32 %v3059, %v3094
  %v3108 = vadd.f32 %v3060, %v3099
  %vm3109 = vcmp.ge.f32.partialorder %v3101, 0.0
  %vm3110 = vcmp.ge.f32.partialorder %v3102, 0.0
  %vm3111 = vcmp.ge.f32.partialorder %v3103, 0.0
  %vm3112 = vcmp.ge.f32.partialorder %v3104, 0.0
  %vm3113 = vcmp.ge.f32.partialorder %v3105, 0.0
  %vm3114 = vcmp.ge.f32.partialorder %v3106, 0.0
  %vm3115 = vcmp.ge.f32.partialorder %v3107, 0.0
  %vm3116 = vcmp.ge.f32.partialorder %v3108, 0.0
  %v3117 = vmul.f32 %v3101, 0.3
  %v3118 = vmul.f32 %v3102, 0.3
  %v3119 = vmul.f32 %v3103, 0.3
  %v3120 = vmul.f32 %v3104, 0.3
  %v3121 = vmul.f32 %v3105, 0.3
  %v3122 = vmul.f32 %v3106, 0.3
  %v3123 = vmul.f32 %v3107, 0.3
  %v3124 = vmul.f32 %v3108, 0.3
  %v3125 = vsel %vm3109, %v3101, %v3117
  %v3126 = vsel %vm3110, %v3102, %v3118
  %v3127 = vsel %vm3111, %v3103, %v3119
  %v3128 = vsel %vm3112, %v3104, %v3120
  %v3129 = vsel %vm3113, %v3105, %v3121
  %v3130 = vsel %vm3114, %v3106, %v3122
  %v3131 = vsel %vm3115, %v3107, %v3123
  %v3132 = vsel %vm3116, %v3108, %v3124
  %3133 = vrot.lane.b32.xlu0 %v3125, 1
  %v3134 = vpop.permute.xlu0 %3133
  %3135 = vrot.lane.b32.xlu0 %v3126, 1
  %v3136 = vpop.permute.xlu0 %3135
  %3137 = vrot.lane.b32.xlu0 %v3127, 1
  %v3138 = vpop.permute.xlu0 %3137
  %3139 = vrot.lane.b32.xlu0 %v3128, 1
  %v3140 = vpop.permute.xlu0 %3139
  %3141 = vrot.lane.b32.xlu0 %v3129, 1
  %v3142 = vpop.permute.xlu0 %3141
  %3143 = vrot.lane.b32.xlu0 %v3130, 1
  %v3144 = vpop.permute.xlu0 %3143
  %3145 = vrot.lane.b32.xlu0 %v3131, 1
  %v3146 = vpop.permute.xlu0 %3145
  %3147 = vrot.lane.b32.xlu0 %v3132, 1
  %v3148 = vpop.permute.xlu0 %3147
  %v3149 = vmul.f32 %v3134, %v862
  %v3150 = vmul.f32 %v3136, %v862
  %v3151 = vmul.f32 %v3138, %v862
  %v3152 = vmul.f32 %v3140, %v862
  %v3153 = vmul.f32 %v3142, %v862
  %v3154 = vmul.f32 %v3144, %v862
  %v3155 = vmul.f32 %v3146, %v862
  %v3156 = vmul.f32 %v3148, %v862
  %3158 = vset.pattern.permute.xlu0 0
  %3159 = vperm.xlu0 %3158, %v172
  %v3160 = vpop.permute.xlu0 %3159
  %3163 = vset.pattern.permute.xlu0 0
  %3164 = vperm.xlu0 %3163, %v173
  %v3165 = vpop.permute.xlu0 %3164
  %3168 = vset.pattern.permute.xlu0 0
  %3169 = vperm.xlu0 %3168, %v174
  %v3170 = vpop.permute.xlu0 %3169
  %3173 = vset.pattern.permute.xlu0 0
  %3174 = vperm.xlu0 %3173, %v175
  %v3175 = vpop.permute.xlu0 %3174
  %3178 = vset.pattern.permute.xlu0 0
  %3179 = vperm.xlu0 %3178, %v176
  %v3180 = vpop.permute.xlu0 %3179
  %3183 = vset.pattern.permute.xlu0 0
  %3184 = vperm.xlu0 %3183, %v177
  %v3185 = vpop.permute.xlu0 %3184
  %3188 = vset.pattern.permute.xlu0 0
  %3189 = vperm.xlu0 %3188, %v178
  %v3190 = vpop.permute.xlu0 %3189
  %3193 = vset.pattern.permute.xlu0 0
  %3194 = vperm.xlu0 %3193, %v179
  %v3195 = vpop.permute.xlu0 %3194
  %v3197 = vmul.f32 %v3160, %v3149
  %v3198 = vmul.f32 %v3165, %v3150
  %v3199 = vmul.f32 %v3170, %v3151
  %v3200 = vmul.f32 %v3175, %v3152
  %v3201 = vmul.f32 %v3180, %v3153
  %v3202 = vmul.f32 %v3185, %v3154
  %v3203 = vmul.f32 %v3190, %v3155
  %v3204 = vmul.f32 %v3195, %v3156
  %3206 = vset.pattern.permute.xlu0 0
  %3207 = vperm.xlu0 %3206, %v200
  %v3208 = vpop.permute.xlu0 %3207
  %3211 = vset.pattern.permute.xlu0 0
  %3212 = vperm.xlu0 %3211, %v201
  %v3213 = vpop.permute.xlu0 %3212
  %3216 = vset.pattern.permute.xlu0 0
  %3217 = vperm.xlu0 %3216, %v202
  %v3218 = vpop.permute.xlu0 %3217
  %3221 = vset.pattern.permute.xlu0 0
  %3222 = vperm.xlu0 %3221, %v203
  %v3223 = vpop.permute.xlu0 %3222
  %3226 = vset.pattern.permute.xlu0 0
  %3227 = vperm.xlu0 %3226, %v204
  %v3228 = vpop.permute.xlu0 %3227
  %3231 = vset.pattern.permute.xlu0 0
  %3232 = vperm.xlu0 %3231, %v205
  %v3233 = vpop.permute.xlu0 %3232
  %3236 = vset.pattern.permute.xlu0 0
  %3237 = vperm.xlu0 %3236, %v206
  %v3238 = vpop.permute.xlu0 %3237
  %3241 = vset.pattern.permute.xlu0 0
  %3242 = vperm.xlu0 %3241, %v207
  %v3243 = vpop.permute.xlu0 %3242
  %v3245 = vmul.f32 %v3208, %v3125
  %v3246 = vmul.f32 %v3213, %v3126
  %v3247 = vmul.f32 %v3218, %v3127
  %v3248 = vmul.f32 %v3223, %v3128
  %v3249 = vmul.f32 %v3228, %v3129
  %v3250 = vmul.f32 %v3233, %v3130
  %v3251 = vmul.f32 %v3238, %v3131
  %v3252 = vmul.f32 %v3243, %v3132
  %v3253 = vadd.f32 %v3197, %v3245
  %v3254 = vadd.f32 %v3198, %v3246
  %v3255 = vadd.f32 %v3199, %v3247
  %v3256 = vadd.f32 %v3200, %v3248
  %v3257 = vadd.f32 %v3201, %v3249
  %v3258 = vadd.f32 %v3202, %v3250
  %v3259 = vadd.f32 %v3203, %v3251
  %v3260 = vadd.f32 %v3204, %v3252
  %3261 = vrot.lane.b32.xlu0 %v3125, 127
  %v3262 = vpop.permute.xlu0 %3261
  %3263 = vrot.lane.b32.xlu0 %v3126, 127
  %v3264 = vpop.permute.xlu0 %3263
  %3265 = vrot.lane.b32.xlu0 %v3127, 127
  %v3266 = vpop.permute.xlu0 %3265
  %3267 = vrot.lane.b32.xlu0 %v3128, 127
  %v3268 = vpop.permute.xlu0 %3267
  %3269 = vrot.lane.b32.xlu0 %v3129, 127
  %v3270 = vpop.permute.xlu0 %3269
  %3271 = vrot.lane.b32.xlu0 %v3130, 127
  %v3272 = vpop.permute.xlu0 %3271
  %3273 = vrot.lane.b32.xlu0 %v3131, 127
  %v3274 = vpop.permute.xlu0 %3273
  %3275 = vrot.lane.b32.xlu0 %v3132, 127
  %v3276 = vpop.permute.xlu0 %3275
  %v3277 = vmul.f32 %v3262, %v872
  %v3278 = vmul.f32 %v3264, %v872
  %v3279 = vmul.f32 %v3266, %v872
  %v3280 = vmul.f32 %v3268, %v872
  %v3281 = vmul.f32 %v3270, %v872
  %v3282 = vmul.f32 %v3272, %v872
  %v3283 = vmul.f32 %v3274, %v872
  %v3284 = vmul.f32 %v3276, %v872
  %3286 = vset.pattern.permute.xlu0 0
  %3287 = vperm.xlu0 %3286, %v228
  %v3288 = vpop.permute.xlu0 %3287
  %3291 = vset.pattern.permute.xlu0 0
  %3292 = vperm.xlu0 %3291, %v229
  %v3293 = vpop.permute.xlu0 %3292
  %3296 = vset.pattern.permute.xlu0 0
  %3297 = vperm.xlu0 %3296, %v230
  %v3298 = vpop.permute.xlu0 %3297
  %3301 = vset.pattern.permute.xlu0 0
  %3302 = vperm.xlu0 %3301, %v231
  %v3303 = vpop.permute.xlu0 %3302
  %3306 = vset.pattern.permute.xlu0 0
  %3307 = vperm.xlu0 %3306, %v232
  %v3308 = vpop.permute.xlu0 %3307
  %3311 = vset.pattern.permute.xlu0 0
  %3312 = vperm.xlu0 %3311, %v233
  %v3313 = vpop.permute.xlu0 %3312
  %3316 = vset.pattern.permute.xlu0 0
  %3317 = vperm.xlu0 %3316, %v234
  %v3318 = vpop.permute.xlu0 %3317
  %3321 = vset.pattern.permute.xlu0 0
  %3322 = vperm.xlu0 %3321, %v235
  %v3323 = vpop.permute.xlu0 %3322
  %v3325 = vmul.f32 %v3288, %v3277
  %v3326 = vmul.f32 %v3293, %v3278
  %v3327 = vmul.f32 %v3298, %v3279
  %v3328 = vmul.f32 %v3303, %v3280
  %v3329 = vmul.f32 %v3308, %v3281
  %v3330 = vmul.f32 %v3313, %v3282
  %v3331 = vmul.f32 %v3318, %v3283
  %v3332 = vmul.f32 %v3323, %v3284
  %v3333 = vadd.f32 %v3253, %v3325
  %v3334 = vadd.f32 %v3254, %v3326
  %v3335 = vadd.f32 %v3255, %v3327
  %v3336 = vadd.f32 %v3256, %v3328
  %v3337 = vadd.f32 %v3257, %v3329
  %v3338 = vadd.f32 %v3258, %v3330
  %v3339 = vadd.f32 %v3259, %v3331
  %v3340 = vadd.f32 %v3260, %v3332
  %v3341 = vpack.c.bf16 %v3334, %v3333
  %v3342 = vpack.c.bf16 %v3336, %v3335
  %v3343 = vpack.c.bf16 %v3338, %v3337
  %v3344 = vpack.c.bf16 %v3340, %v3339
  %v3353 = vunpack.c.l.b16 %v238
  %v3354 = vunpack.c.l.b16 %v241
  %v3355 = vunpack.c.l.b16 %v244
  %v3356 = vunpack.c.l.b16 %v247
  %v3357 = vunpack.c.l.b16 %v250
  %v3358 = vunpack.c.l.b16 %v253
  %v3359 = vunpack.c.l.b16 %v256
  %v3360 = vunpack.c.l.b16 %v259
  %v3361 = vpack.c.b16 %v3354, %v3353
  %v3362 = vpack.c.b16 %v3356, %v3355
  %v3363 = vpack.c.b16 %v3358, %v3357
  %v3364 = vpack.c.b16 %v3360, %v3359
  %v3366 = vsel %vm2282, %v3361, 0
  %v3369 = vsel %vm2282, %v3362, 0
  %v3372 = vsel %vm2282, %v3363, 0
  %v3375 = vsel %vm2282, %v3364, 0
  %3377 = vmatprep.subr.bf16.mxu0 0
  %3378 = vmatpush1.bf16.msra.mxu0 %v3341
  %3379 = vmatprep.subr.bf16.mxu0 0
  %3380 = vmatpush1.bf16.msra.mxu0 %v3342
  %3381 = vmatprep.subr.bf16.mxu0 0
  %3382 = vmatpush1.bf16.msra.mxu0 %v3343
  %3383 = vmatprep.subr.bf16.mxu0 0
  %3384 = vmatpush1.bf16.msra.mxu0 %v3344
  %3385 = vmatprep.subr.bf16.mxu0 0
  %3386 = vmatpush1.bf16.msra.mxu0 0
  %3387 = vmatprep.subr.bf16.mxu0 0
  %3388 = vmatpush1.bf16.msra.mxu0 0
  %3389 = vmatprep.subr.bf16.mxu0 0
  %3390 = vmatpush1.bf16.msra.mxu0 0
  %3391 = vmatprep.subr.bf16.mxu0 0
  %3392 = vmatpush1.bf16.msra.mxu0 0
  %3393 = vmatprep.subr.bf16.mxu0 0
  %3394 = vmatpush1.bf16.msra.mxu0 0
  %3395 = vmatprep.subr.bf16.mxu0 0
  %3396 = vmatpush1.bf16.msra.mxu0 0
  %3397 = vmatprep.subr.bf16.mxu0 0
  %3398 = vmatpush1.bf16.msra.mxu0 0
  %3399 = vmatprep.subr.bf16.mxu0 0
  %3400 = vmatpush1.bf16.msra.mxu0 0
  %3401 = vmatprep.subr.bf16.mxu0 0
  %3402 = vmatpush1.bf16.msra.mxu0 0
  %3403 = vmatprep.subr.bf16.mxu0 0
  %3404 = vmatpush1.bf16.msra.mxu0 0
  %3405 = vmatprep.subr.bf16.mxu0 0
  %3406 = vmatpush1.bf16.msra.mxu0 0
  %3407 = vmatprep.subr.bf16.mxu0 0
  %3408 = vmatpush1.bf16.msra.mxu0 0
  %3409 = vmatprep.mubr.bf16.mxu0 0
  %3410 = vmatmul.mubr.bf16.gmra.mrb[0].mxu0 %v3366
  %v3411 = vpop.f32.mrb[0].mxu0
  %v3412 = vadd.f32 0.0, %v3411
  %v3413 = vpop.f32.mrb[0].mxu0
  %v3414 = vpop.f32.mrb[0].mxu0
  %v3415 = vadd.f32 0.0, %v3414
  %v3416 = vpop.f32.mrb[0].mxu0
  %3417 = vmatprep.mubr.bf16.mxu0 0
  %3418 = vmatmul.mubr.bf16.gmra.mrb[0].mxu0 %v3369
  %v3419 = vpop.f32.mrb[0].mxu0
  %v3420 = vadd.f32 0.0, %v3419
  %v3421 = vpop.f32.mrb[0].mxu0
  %v3422 = vpop.f32.mrb[0].mxu0
  %v3423 = vadd.f32 0.0, %v3422
  %v3424 = vpop.f32.mrb[0].mxu0
  %3425 = vmatprep.mubr.bf16.mxu0 0
  %3426 = vmatmul.mubr.bf16.gmra.mrb[0].mxu0 %v3372
  %v3427 = vpop.f32.mrb[0].mxu0
  %v3428 = vadd.f32 0.0, %v3427
  %v3429 = vpop.f32.mrb[0].mxu0
  %v3430 = vpop.f32.mrb[0].mxu0
  %v3431 = vadd.f32 0.0, %v3430
  %v3432 = vpop.f32.mrb[0].mxu0
  %3433 = vmatprep.mubr.bf16.mxu0 0
  %3434 = vmatmul.mubr.bf16.gmra.mrb[0].mxu0 %v3375
  %v3435 = vpop.f32.mrb[0].mxu0
  %v3436 = vadd.f32 0.0, %v3435
  %v3437 = vpop.f32.mrb[0].mxu0
  %v3438 = vpop.f32.mrb[0].mxu0
  %v3439 = vadd.f32 0.0, %v3438
  %v3440 = vpop.f32.mrb[0].mxu0
  %3441 = vdwg.mxu0
  %3442 = vadd.xlane.f32.xlu0 %v3412
  %v3443 = vpop.xlane.xlu0 %3442
  %3444 = vadd.xlane.f32.xlu0 %v3415
  %v3445 = vpop.xlane.xlu0 %3444
  %3446 = vadd.xlane.f32.xlu0 %v3420
  %v3447 = vpop.xlane.xlu0 %3446
  %3448 = vadd.xlane.f32.xlu0 %v3423
  %v3449 = vpop.xlane.xlu0 %3448
  %3450 = vadd.xlane.f32.xlu0 %v3428
  %v3451 = vpop.xlane.xlu0 %3450
  %3452 = vadd.xlane.f32.xlu0 %v3431
  %v3453 = vpop.xlane.xlu0 %3452
  %3454 = vadd.xlane.f32.xlu0 %v3436
  %v3455 = vpop.xlane.xlu0 %3454
  %3456 = vadd.xlane.f32.xlu0 %v3439
  %v3457 = vpop.xlane.xlu0 %3456
  %v3458 = vmul.f32 %v3412, %v3412
  %v3459 = vmul.f32 %v3415, %v3415
  %v3460 = vmul.f32 %v3420, %v3420
  %v3461 = vmul.f32 %v3423, %v3423
  %v3462 = vmul.f32 %v3428, %v3428
  %v3463 = vmul.f32 %v3431, %v3431
  %v3464 = vmul.f32 %v3436, %v3436
  %v3465 = vmul.f32 %v3439, %v3439
  %3466 = vadd.xlane.f32.xlu0 %v3458
  %v3467 = vpop.xlane.xlu0 %3466
  %3468 = vadd.xlane.f32.xlu0 %v3459
  %v3469 = vpop.xlane.xlu0 %3468
  %3470 = vadd.xlane.f32.xlu0 %v3460
  %v3471 = vpop.xlane.xlu0 %3470
  %3472 = vadd.xlane.f32.xlu0 %v3461
  %v3473 = vpop.xlane.xlu0 %3472
  %3474 = vadd.xlane.f32.xlu0 %v3462
  %v3475 = vpop.xlane.xlu0 %3474
  %3476 = vadd.xlane.f32.xlu0 %v3463
  %v3477 = vpop.xlane.xlu0 %3476
  %3478 = vadd.xlane.f32.xlu0 %v3464
  %v3479 = vpop.xlane.xlu0 %3478
  %3480 = vadd.xlane.f32.xlu0 %v3465
  %v3481 = vpop.xlane.xlu0 %3480
  %v3482 = vmul.f32 %v3443, 0.0078125
  %v3483 = vmul.f32 %v3445, 0.0078125
  %v3484 = vmul.f32 %v3447, 0.0078125
  %v3485 = vmul.f32 %v3449, 0.0078125
  %v3486 = vmul.f32 %v3451, 0.0078125
  %v3487 = vmul.f32 %v3453, 0.0078125
  %v3488 = vmul.f32 %v3455, 0.0078125
  %v3489 = vmul.f32 %v3457, 0.0078125
  %v3490 = vmul.f32 %v3467, 0.0078125
  %v3491 = vmul.f32 %v3469, 0.0078125
  %v3492 = vmul.f32 %v3471, 0.0078125
  %v3493 = vmul.f32 %v3473, 0.0078125
  %v3494 = vmul.f32 %v3475, 0.0078125
  %v3495 = vmul.f32 %v3477, 0.0078125
  %v3496 = vmul.f32 %v3479, 0.0078125
  %v3497 = vmul.f32 %v3481, 0.0078125
  %v3498 = vmul.f32 %v3482, %v3482
  %v3499 = vmul.f32 %v3483, %v3483
  %v3500 = vmul.f32 %v3484, %v3484
  %v3501 = vmul.f32 %v3485, %v3485
  %v3502 = vmul.f32 %v3486, %v3486
  %v3503 = vmul.f32 %v3487, %v3487
  %v3504 = vmul.f32 %v3488, %v3488
  %v3505 = vmul.f32 %v3489, %v3489
  %v3506 = vsub.f32 %v3490, %v3498
  %v3507 = vsub.f32 %v3491, %v3499
  %v3508 = vsub.f32 %v3492, %v3500
  %v3509 = vsub.f32 %v3493, %v3501
  %v3510 = vsub.f32 %v3494, %v3502
  %v3511 = vsub.f32 %v3495, %v3503
  %v3512 = vsub.f32 %v3496, %v3504
  %v3513 = vsub.f32 %v3497, %v3505
  %v3514 = vmax.f32 %v3506, 0.0
  %v3515 = vmax.f32 %v3507, 0.0
  %v3516 = vmax.f32 %v3508, 0.0
  %v3517 = vmax.f32 %v3509, 0.0
  %v3518 = vmax.f32 %v3510, 0.0
  %v3519 = vmax.f32 %v3511, 0.0
  %v3520 = vmax.f32 %v3512, 0.0
  %v3521 = vmax.f32 %v3513, 0.0
  %v3522 = vsub.f32 %v3412, %v3482
  %v3523 = vsub.f32 %v3415, %v3483
  %v3524 = vsub.f32 %v3420, %v3484
  %v3525 = vsub.f32 %v3423, %v3485
  %v3526 = vsub.f32 %v3428, %v3486
  %v3527 = vsub.f32 %v3431, %v3487
  %v3528 = vsub.f32 %v3436, %v3488
  %v3529 = vsub.f32 %v3439, %v3489
  %v3530 = vadd.f32 %v3514, 1e-05
  %v3531 = vadd.f32 %v3515, 1e-05
  %v3532 = vadd.f32 %v3516, 1e-05
  %v3533 = vadd.f32 %v3517, 1e-05
  %v3534 = vadd.f32 %v3518, 1e-05
  %v3535 = vadd.f32 %v3519, 1e-05
  %v3536 = vadd.f32 %v3520, 1e-05
  %v3537 = vadd.f32 %v3521, 1e-05
  %v3538 = vrsqrt.pop %v3530
  %v3539 = vrsqrt.pop %v3531
  %v3540 = vrsqrt.pop %v3532
  %v3541 = vrsqrt.pop %v3533
  %v3542 = vrsqrt.pop %v3534
  %v3543 = vrsqrt.pop %v3535
  %v3544 = vrsqrt.pop %v3536
  %v3545 = vrsqrt.pop %v3537
  %v3546 = vmul.f32 %v3522, %v3538
  %v3547 = vmul.f32 %v3523, %v3539
  %v3548 = vmul.f32 %v3524, %v3540
  %v3549 = vmul.f32 %v3525, %v3541
  %v3550 = vmul.f32 %v3526, %v3542
  %v3551 = vmul.f32 %v3527, %v3543
  %v3552 = vmul.f32 %v3528, %v3544
  %v3553 = vmul.f32 %v3529, %v3545
  %3555 = vset.pattern.permute.xlu0 0
  %3556 = vperm.xlu0 %3555, %v136
  %v3557 = vpop.permute.xlu0 %3556
  %3560 = vset.pattern.permute.xlu0 0
  %3561 = vperm.xlu0 %3560, %v137
  %v3562 = vpop.permute.xlu0 %3561
  %3565 = vset.pattern.permute.xlu0 0
  %3566 = vperm.xlu0 %3565, %v138
  %v3567 = vpop.permute.xlu0 %3566
  %3570 = vset.pattern.permute.xlu0 0
  %3571 = vperm.xlu0 %3570, %v139
  %v3572 = vpop.permute.xlu0 %3571
  %3575 = vset.pattern.permute.xlu0 0
  %3576 = vperm.xlu0 %3575, %v140
  %v3577 = vpop.permute.xlu0 %3576
  %3580 = vset.pattern.permute.xlu0 0
  %3581 = vperm.xlu0 %3580, %v141
  %v3582 = vpop.permute.xlu0 %3581
  %3585 = vset.pattern.permute.xlu0 0
  %3586 = vperm.xlu0 %3585, %v142
  %v3587 = vpop.permute.xlu0 %3586
  %3590 = vset.pattern.permute.xlu0 0
  %3591 = vperm.xlu0 %3590, %v143
  %v3592 = vpop.permute.xlu0 %3591
  %v3594 = vmul.f32 %v3546, %v3557
  %v3595 = vmul.f32 %v3547, %v3562
  %v3596 = vmul.f32 %v3548, %v3567
  %v3597 = vmul.f32 %v3549, %v3572
  %v3598 = vmul.f32 %v3550, %v3577
  %v3599 = vmul.f32 %v3551, %v3582
  %v3600 = vmul.f32 %v3552, %v3587
  %v3601 = vmul.f32 %v3553, %v3592
  %3603 = vset.pattern.permute.xlu0 0
  %3604 = vperm.xlu0 %3603, %v144
  %v3605 = vpop.permute.xlu0 %3604
  %3608 = vset.pattern.permute.xlu0 0
  %3609 = vperm.xlu0 %3608, %v145
  %v3610 = vpop.permute.xlu0 %3609
  %3613 = vset.pattern.permute.xlu0 0
  %3614 = vperm.xlu0 %3613, %v146
  %v3615 = vpop.permute.xlu0 %3614
  %3618 = vset.pattern.permute.xlu0 0
  %3619 = vperm.xlu0 %3618, %v147
  %v3620 = vpop.permute.xlu0 %3619
  %3623 = vset.pattern.permute.xlu0 0
  %3624 = vperm.xlu0 %3623, %v148
  %v3625 = vpop.permute.xlu0 %3624
  %3628 = vset.pattern.permute.xlu0 0
  %3629 = vperm.xlu0 %3628, %v149
  %v3630 = vpop.permute.xlu0 %3629
  %3633 = vset.pattern.permute.xlu0 0
  %3634 = vperm.xlu0 %3633, %v150
  %v3635 = vpop.permute.xlu0 %3634
  %3638 = vset.pattern.permute.xlu0 0
  %3639 = vperm.xlu0 %3638, %v151
  %v3640 = vpop.permute.xlu0 %3639
  %v3642 = vadd.f32 %v3594, %v3605
  %v3643 = vadd.f32 %v3595, %v3610
  %v3644 = vadd.f32 %v3596, %v3615
  %v3645 = vadd.f32 %v3597, %v3620
  %v3646 = vadd.f32 %v3598, %v3625
  %v3647 = vadd.f32 %v3599, %v3630
  %v3648 = vadd.f32 %v3600, %v3635
  %v3649 = vadd.f32 %v3601, %v3640
  %v3650 = vadd.f32 %v3642, %v2568
  %v3651 = vadd.f32 %v3643, %v2569
  %v3652 = vadd.f32 %v3644, %v2570
  %v3653 = vadd.f32 %v3645, %v2571
  %v3654 = vadd.f32 %v3646, %v2572
  %v3655 = vadd.f32 %v3647, %v2573
  %v3656 = vadd.f32 %v3648, %v2574
  %v3657 = vadd.f32 %v3649, %v2575
  %3658 = vst [vmem:[%s10] sm:$0xff] %v3650
  %3659 = vst [vmem:[%s10 + $0x8] sm:$0xff] %v3651
  %3660 = vst [vmem:[%s10 + $0x10] sm:$0xff] %v3652
  %3661 = vst [vmem:[%s10 + $0x18] sm:$0xff] %v3653
  %3662 = vst [vmem:[%s10 + $0x20] sm:$0xff] %v3654
  %3663 = vst [vmem:[%s10 + $0x28] sm:$0xff] %v3655
  %3664 = vst [vmem:[%s10 + $0x30] sm:$0xff] %v3656
  %3665 = vst [vmem:[%s10 + $0x38] sm:$0xff] %v3657
  // Predicated region
  $region42: #{xception_forward.1} parent=0 // pred_check
    _
  $region43: #{xception_forward.1} parent=0 // pred_check_branch
    %3667 = sbr.rel (0) target = $region45
  $region44: #{xception_forward.1} parent=0 // pred_region
    _
  $region45: #{xception_forward.1} parent=0 // pred_fallthru
    _
  // Predicated region
  $region46: #{xception_forward.1} parent=0 // pred_check
    _
  $region47: #{xception_forward.1} parent=0 // pred_check_branch
    %3669 = sbr.rel (0) target = $region49
  $region48: #{xception_forward.1} parent=0 // pred_region
    _
  $region49: #{xception_forward.1} parent=0 // pred_fallthru
    _

</llo_original>
